<compile_context>
chip_gen: v7x
topology: tpu7x:2x2x1
jax: 0.10.0
libtpu: 0.0.40
codegen_flags: <defaults>
</compile_context>

<pallas_src>
import functools

import jax
import jax.numpy as jnp
from jax import lax
from jax.experimental import pallas as pl
from jax.experimental.pallas import tpu as pltpu


def _group_size(B, K, target_rows=256):
    """Batches per grid step: G*K ~ 256 flattened rows, G | B, layout-friendly G."""
    G = max(1, min(B, target_rows // max(K, 1)))
    for g in range(G, 0, -1):
        if B % g == 0 and (g == B or g % 8 == 0):
            return g
    return B


def _nll_partial(pred, tgt):
    """Sum over rows of -log p[target] (not yet normalized by B)."""
    G, C = pred.shape
    ids = lax.broadcasted_iota(jnp.int32, (G, C), 1)
    # select-then-sum (NOT onehot * pred): avoids 0 * (-inf) = NaN; single reduce.
    return -jnp.sum(jnp.where(ids == tgt, pred, 0.0))


def _nll_only_kernel(pred_ref, target_ref, out_ref, *, inv_batch):
    out_ref[0, 0] = _nll_partial(pred_ref[...], target_ref[...]) * inv_batch


def _loss_kernel(pred_ref, target_ref, trans_ref, out_ref, *,
                 inv_batch, mat_diff_loss_scale):
    g = pl.program_id(0)

    @pl.when(g == 0)
    def _init():
        out_ref[0, 0] = jnp.float32(0.0)

    # ---- F.nll_loss partial for this group's rows ------------------------
    nll_p = _nll_partial(pred_ref[...], target_ref[...])

    # ---- feature_transform_regularizer partial (all f32, direct G - I) ---
    a = trans_ref[...]                                            # (G, K, K) f32
    _, K, _ = a.shape
    gram = jnp.einsum('bij,bkj->bik', a, a,
                      preferred_element_type=jnp.float32,
                      precision=lax.Precision.HIGHEST)            # (G, K, K)
    ii = lax.broadcasted_iota(jnp.int32, (1, K, K), 1)
    jj = lax.broadcasted_iota(jnp.int32, (1, K, K), 2)
    eye = (ii == jj).astype(jnp.float32)                          # (1, K, K)
    diff = gram - eye                                             # (G, K, K)
    sq = diff * diff
    per_b = jnp.sum(jnp.sum(sq, axis=2), axis=1, keepdims=True)   # (G, 1)
    reg_p = jnp.sum(jnp.sqrt(per_b))                              # scalar

    out_ref[0, 0] += (nll_p + reg_p * mat_diff_loss_scale) * inv_batch


def get_supervised_loss(pred, target, trans_feat=None, mat_diff_loss_scale=0.001):
    """Pallas equivalent of the PyTorch get_supervised_loss.forward."""
    B, C = pred.shape
    pred32 = pred.astype(jnp.float32)
    tgt2d = target.reshape(B, 1).astype(jnp.int32)

    vmem = pl.BlockSpec(memory_space=pltpu.MemorySpace.VMEM)
    smem_out = pl.BlockSpec(memory_space=pltpu.MemorySpace.SMEM)

    if trans_feat is None:
        out = pl.pallas_call(
            functools.partial(_nll_only_kernel, inv_batch=1.0 / B),
            out_shape=jax.ShapeDtypeStruct((1, 1), jnp.float32),
            in_specs=[vmem, vmem],
            out_specs=smem_out,
        )(pred32, tgt2d)
        return out[0, 0]

    Bt, K, K2 = trans_feat.shape
    assert Bt == B and K == K2
    trans32 = trans_feat.astype(jnp.float32)   # keep f32: G ~= I cancels badly in bf16

    G = _group_size(B, K)
    num_groups = B // G

    out = pl.pallas_call(
        functools.partial(_loss_kernel,
                          inv_batch=1.0 / B,
                          mat_diff_loss_scale=float(mat_diff_loss_scale)),
        out_shape=jax.ShapeDtypeStruct((1, 1), jnp.float32),
        grid_spec=pltpu.PrefetchScalarGridSpec(
            num_scalar_prefetch=0,
            grid=(num_groups,),
            in_specs=[
                pl.BlockSpec((G, C), lambda g: (g, 0)),
                pl.BlockSpec((G, 1), lambda g: (g, 0)),
                pl.BlockSpec((G, K, K), lambda g: (g, 0, 0)),
            ],
            out_specs=smem_out,
        ),
        compiler_params=pltpu.CompilerParams(
            dimension_semantics=("arbitrary",)),
    )(pred32, tgt2d, trans32)
    return out[0, 0]


def _reference_loss(pred, target, trans_feat, mat_diff_loss_scale=0.001):
    """Pure-JAX f32 reference (mirrors the PyTorch semantics)."""
    nll = -jnp.mean(jnp.take_along_axis(pred, target[:, None], axis=1))
    K = trans_feat.shape[1]
    gram = jnp.einsum('bij,bkj->bik', trans_feat, trans_feat,
                      precision=jax.lax.Precision.HIGHEST)
    diff = gram - jnp.eye(K, dtype=trans_feat.dtype)[None]
    fro = jnp.sqrt(jnp.sum(diff * diff, axis=(1, 2)))
    return nll + jnp.mean(fro) * mat_diff_loss_scale


if __name__ == "__main__":
    key = jax.random.PRNGKey(0)
    k1, k2, k3, k4 = jax.random.split(key, 4)

    B, C, K = 8, 16, 32   # batch, num classes, feature-transform size

    logits = jax.random.normal(k1, (B, C), dtype=jnp.float32)
    pred = jax.nn.log_softmax(logits, axis=-1)     # what F.nll_loss expects
    target = jax.random.randint(k2, (B,), 0, C, dtype=jnp.int32)
    trans_feat = jax.random.normal(k3, (B, K, K), dtype=jnp.float32) * 0.1

    total_loss = jax.block_until_ready(get_supervised_loss(pred, target, trans_feat))
    ref = _reference_loss(pred, target, trans_feat)
    # All-f32 path now: tight tolerances (previous bf16 version needed 1e-4).
    assert jnp.allclose(total_loss, ref, rtol=2e-5, atol=2e-5), (total_loss, ref)

    # Near-orthogonal trans_feat (G ~= I): the regime where the old expanded
    # sum(G^2) - 2*trace(G) + K formula in bf16 cancelled catastrophically.
    trans_near_I = (jnp.eye(K, dtype=jnp.float32)[None]
                    + 0.01 * jax.random.normal(k4, (B, K, K), dtype=jnp.float32))
    total2 = jax.block_until_ready(get_supervised_loss(pred, target, trans_near_I))
    ref2 = _reference_loss(pred, target, trans_near_I)
    assert jnp.allclose(total2, ref2, rtol=2e-5, atol=2e-5), (total2, ref2)

    # Also exercise the trans_feat=None path of the original module.
    nll_only = jax.block_until_ready(get_supervised_loss(pred, target, None))
    ref_nll = -jnp.mean(jnp.take_along_axis(pred, target[:, None], axis=1))
    assert jnp.allclose(nll_only, ref_nll, rtol=1e-5, atol=1e-5), (nll_only, ref_nll)

    print("KERNEL_OK")
</pallas_src>

<mosaic_0001>
module attributes {stable_mosaic.version = 11 : i64} {
  func.func @_loss_kernel(%arg0: i32, %arg1: memref<8x16xf32, #tpu.memory_space<vmem>>, %arg2: memref<8x1xi32, #tpu.memory_space<vmem>>, %arg3: memref<8x32x32xf32, #tpu.memory_space<vmem>>, %arg4: memref<1x1xf32, #tpu.memory_space<smem>>) attributes {dimension_semantics = [#tpu.dimension_semantics<arbitrary>], iteration_bounds = array<i64: 1>, scalar_prefetch = 0 : i64, scratch_operands = 0 : i64, tpu.core_type = #tpu.core_type<tc>, window_params = [{transform_indices = @transform_0, window_bounds = array<i64: 8, 16>}, {transform_indices = @transform_1, window_bounds = array<i64: 8, 1>}, {transform_indices = @transform_2, window_bounds = array<i64: 8, 32, 32>}, {transform_indices = @transform_3, window_bounds = array<i64: 1, 1>}]} {
    %c0_i32 = arith.constant 0 : i32
    %0 = arith.cmpi eq, %arg0, %c0_i32 : i32
    %1 = arith.extui %0 : i1 to i32
    %c0_i32_0 = arith.constant 0 : i32
    %2 = arith.cmpi ne, %1, %c0_i32_0 : i32
    scf.if %2 {
      %cst_19 = arith.constant 0.000000e+00 : f32
      %c0_20 = arith.constant 0 : index
      %c0_21 = arith.constant 0 : index
      %39 = memref.load %arg4[%c0_20, %c0_21] : memref<1x1xf32, #tpu.memory_space<smem>>
      memref.store %cst_19, %arg4[%c0_20, %c0_21] : memref<1x1xf32, #tpu.memory_space<smem>>
    } else {
    }
    %c0 = arith.constant 0 : index
    %c0_1 = arith.constant 0 : index
    %3 = vector.load %arg1[%c0, %c0_1] : memref<8x16xf32, #tpu.memory_space<vmem>>, vector<8x16xf32>
    %c0_2 = arith.constant 0 : index
    %c0_3 = arith.constant 0 : index
    %4 = vector.load %arg2[%c0_2, %c0_3] : memref<8x1xi32, #tpu.memory_space<vmem>>, vector<8x1xi32>
    %5 = tpu.iota {dimensions = array<i32: 1>} : vector<8x16xi32>
    %6 = vector.broadcast %4 : vector<8x1xi32> to vector<8x16xi32>
    %7 = arith.cmpi eq, %5, %6 : vector<8x16xi32>
    %cst = arith.constant 0.000000e+00 : f32
    %8 = vector.broadcast %cst : f32 to vector<8x16xf32>
    %9 = arith.select %7, %3, %8 : vector<8x16xi1>, vector<8x16xf32>
    %10 = vector.shape_cast %9 : vector<8x16xf32> to vector<1x8x16xf32>
    %cst_4 = arith.constant dense<0.000000e+00> : vector<1xf32>
    %11 = vector.multi_reduction <add>, %10, %cst_4 [1, 2] : vector<1x8x16xf32> to vector<1xf32>
    %12 = vector.shape_cast %11 : vector<1xf32> to vector<1x1x1xf32>
    %13 = vector.extract %12[0, 0, 0] : f32 from vector<1x1x1xf32>
    %cst_5 = arith.constant 0.000000e+00 : f32
    %14 = arith.subf %cst_5, %13 : f32
    %c0_6 = arith.constant 0 : index
    %c0_7 = arith.constant 0 : index
    %c0_8 = arith.constant 0 : index
    %15 = vector.load %arg3[%c0_6, %c0_7, %c0_8] : memref<8x32x32xf32, #tpu.memory_space<vmem>>, vector<8x32x32xf32>
    "tpu.trace_start"() <{level = 10 : i32, message = "bij,bkj->bik"}> : () -> ()
    %cst_9 = arith.constant dense<0.000000e+00> : vector<8x32x32xf32>
    %16 = tpu.matmul %15, %15, %cst_9 {dimension_numbers = #tpu.dot_dimension_numbers<[2], [2], [1], [1], [0, 0, 0, 1, 1, 1], [0], [0]>, precision = #tpu.contract_precision<fp32>} : vector<8x32x32xf32>, vector<8x32x32xf32>, vector<8x32x32xf32> -> vector<8x32x32xf32>
    "tpu.trace_stop"() : () -> ()
    %17 = tpu.iota {dimensions = array<i32: 1>} : vector<1x32x32xi32>
    %18 = tpu.iota {dimensions = array<i32: 2>} : vector<1x32x32xi32>
    %19 = arith.cmpi eq, %17, %18 : vector<1x32x32xi32>
    %20 = arith.extui %19 : vector<1x32x32xi1> to vector<1x32x32xi32>
    %21 = arith.sitofp %20 : vector<1x32x32xi32> to vector<1x32x32xf32>
    %22 = vector.broadcast %21 : vector<1x32x32xf32> to vector<8x32x32xf32>
    %23 = arith.subf %16, %22 : vector<8x32x32xf32>
    %24 = arith.mulf %23, %23 : vector<8x32x32xf32>
    %cst_10 = arith.constant dense<0.000000e+00> : vector<8x32xf32>
    %25 = vector.multi_reduction <add>, %24, %cst_10 [2] : vector<8x32x32xf32> to vector<8x32xf32>
    %cst_11 = arith.constant dense<0.000000e+00> : vector<8xf32>
    %26 = vector.multi_reduction <add>, %25, %cst_11 [1] : vector<8x32xf32> to vector<8xf32>
    %27 = vector.shape_cast %26 : vector<8xf32> to vector<8x1xf32>
    %28 = math.sqrt %27 : vector<8x1xf32>
    %29 = vector.shape_cast %28 : vector<8x1xf32> to vector<1x8x1xf32>
    %cst_12 = arith.constant dense<0.000000e+00> : vector<1xf32>
    %30 = vector.multi_reduction <add>, %29, %cst_12 [1, 2] : vector<1x8x1xf32> to vector<1xf32>
    %31 = vector.shape_cast %30 : vector<1xf32> to vector<1x1x1xf32>
    %32 = vector.extract %31[0, 0, 0] : f32 from vector<1x1x1xf32>
    %c0_13 = arith.constant 0 : index
    %c0_14 = arith.constant 0 : index
    %33 = memref.load %arg4[%c0_13, %c0_14] : memref<1x1xf32, #tpu.memory_space<smem>>
    %cst_15 = arith.constant 1.000000e-03 : f32
    %34 = arith.mulf %32, %cst_15 : f32
    %35 = arith.addf %14, %34 : f32
    %cst_16 = arith.constant 1.250000e-01 : f32
    %36 = arith.mulf %35, %cst_16 : f32
    %37 = arith.addf %33, %36 : f32
    %c0_17 = arith.constant 0 : index
    %c0_18 = arith.constant 0 : index
    %38 = memref.load %arg4[%c0_17, %c0_18] : memref<1x1xf32, #tpu.memory_space<smem>>
    memref.store %37, %arg4[%c0_17, %c0_18] : memref<1x1xf32, #tpu.memory_space<smem>>
    return
  }
  func.func @transform_0(%arg0: i32) -> (i32, i32) {
    %c0_i32 = arith.constant 0 : i32
    %c0_i32_0 = arith.constant 0 : i32
    return %arg0, %c0_i32 : i32, i32
  }
  func.func @transform_1(%arg0: i32) -> (i32, i32) {
    %c0_i32 = arith.constant 0 : i32
    %c0_i32_0 = arith.constant 0 : i32
    return %arg0, %c0_i32 : i32, i32
  }
  func.func @transform_2(%arg0: i32) -> (i32, i32, i32) {
    %c0_i32 = arith.constant 0 : i32
    %c0_i32_0 = arith.constant 0 : i32
    %c0_i32_1 = arith.constant 0 : i32
    return %arg0, %c0_i32, %c0_i32_0 : i32, i32, i32
  }
  func.func @transform_3(%arg0: i32) -> (i32, i32) {
    %c0_i32 = arith.constant 0 : i32
    %c0_i32_0 = arith.constant 0 : i32
    %c0_i32_1 = arith.constant 0 : i32
    return %c0_i32, %c0_i32_0 : i32, i32
  }
}

</mosaic_0001>

<llo_original>
// kernel: tpu_custom_call.1
$region0: #{tpu_custom_call.1}
  #allocation0 [shape = 'u32[]', space=smem, size = 0x4, offset = 0x4, fixed_abs, tag = 'smem constant byte address 0x4 - core index']
  #allocation1 [shape = 'u32[144,128]{1,0:T(1,128)}', space=vmem, size = 0x12000, scoped, tag = 'internal scratch']
  %s0 = inlined_call_operand.vmem [shape: f32[8,16], index: 0, kind: input, shape index: {}]
  %s1 = inlined_call_operand.vmem [shape: s32[8,1], index: 1, kind: input, shape index: {}]
  %s2 = inlined_call_operand.hbm [shape: f32[8,32,32], index: 2, kind: input, shape index: {}]
  %s3 = inlined_call_operand.hbm [shape: f32[1,1], index: 3, kind: output, shape index: {}]
  %s4 = sld [smem:[#allocation0]]
  $region30: #{tpu_custom_call.1} parent=0
    _
  %s6 = ssub.s32 1, %s4
  %s7 = scalar_select 0, %s6, %s4
  $region1: #{tpu_custom_call.1} parent=0
    #allocation2 [shape = 'u8[131072]{0}', space=vmem, size = 0x20000, scoped, tag = 'input window, operand 2, single buffered']
    #allocation3 [shape = 's32[1]{0}', space=sflag, size = 0x4, scoped, tag = 'scoped memory for tpu_custom_call.1']
    #allocation4 [shape = 's32[1]{0}', space=sflag, size = 0x4, scoped, tag = 'scoped memory for tpu_custom_call.1']
    #allocation5 [shape = 'u8[512]{0}', space=smem, size = 0x200, scoped, tag = 'output window, operand 0, single buffered']
    %8 = vsyncpa [#allocation3], 0
    %9 = vsyncpa [#allocation4], 0
    // Predicated region
    $region2: #{tpu_custom_call.1} parent=1 // pred_check
      _
    $region3: #{tpu_custom_call.1} parent=1 // pred_check_branch
      %11 = sbr.rel (0) target = $region5
    $region4: #{tpu_custom_call.1} parent=1 // pred_region
      _
    $region5: #{tpu_custom_call.1} parent=1 // pred_fallthru
      _
    // Predicated region
    $region6: #{tpu_custom_call.1} parent=1 // pred_check
      _
    $region7: #{tpu_custom_call.1} parent=1 // pred_check_branch
      %13 = sbr.rel (0) target = $region9
    $region8: #{tpu_custom_call.1} parent=1 // pred_region
      _
    $region9: #{tpu_custom_call.1} parent=1 // pred_fallthru
      _
    // Predicated region
    $region10: #{tpu_custom_call.1} parent=1 // pred_check
      _
    $region11: #{tpu_custom_call.1} parent=1 // pred_check_branch
      %15 = sbr.rel (0) target = $region13
    $region12: #{tpu_custom_call.1} parent=1 // pred_region
      %s17 = ssub.s32 4096, 4096
      %18 = vsyncadd [#allocation3], %s17
      %s19 = sshll.u32 [#allocation2], 4
      %s20 = int_to_ptr.vmem [resolvable:$true] %s19
      %25 = dma.hbm_to_vmem [thread:$0]  %s2, 4096, %s20, [#allocation3], 128, 128, 8
    $region13: #{tpu_custom_call.1} parent=1 // pred_fallthru
      _
    // Predicated region
    $region14: #{tpu_custom_call.1} parent=1 // pred_check
      _
    $region15: #{tpu_custom_call.1} parent=1 // pred_check_branch
      %27 = sbr.rel (0) target = $region17
    $region16: #{tpu_custom_call.1} parent=1 // pred_region
      %28 = dma.done [#allocation3], 4096
    $region17: #{tpu_custom_call.1} parent=1 // pred_fallthru
      _
    %p29 = scmp.eq.s32.totalorder 0, 0
    // Predicated region
    $region18: #{tpu_custom_call.1} parent=1 // pred_check
      %p30 = pneg %p29
    $region19: #{tpu_custom_call.1} parent=1 // pred_check_branch
      %32 = sbr.rel (%p30) target = $region21
    $region20: #{tpu_custom_call.1} parent=1 // pred_region
      %s33 = scalar_lea.smem [#allocation5], 0
      %34 = sst [smem:[%s33]] 0.0
    $region21: #{tpu_custom_call.1} parent=1 // pred_fallthru
      _
    %v35 = vld [vmem:[%s0] sm:$0xff]
    %v36 = vld [vmem:[%s1] sm:$0xff]
    %v37 = vlaneseq
    %v38 = vand.u32 %v37, 127
    %39 = vset.pattern.permute.xlu0 0
    %40 = vperm.xlu0 %39, %v36
    %v41 = vpop.permute.xlu0 %40
    %vm42 = vcmp.eq.s32.totalorder %v38, %v41
    %v43 = vsel %vm42, %v35, 0.0
    %vm44 = vcmask 130048
    %v45 = vsel %vm44, %v43, 0.0
    %46 = vadd.xlane.f32.xlu0 %v45
    %v47 = vpop.xlane.xlu0 %46
    %v48 = vrot.slane %v47, 4
    %v49 = vadd.f32 %v47, %v48
    %v50 = vrot.slane %v49, 2
    %v51 = vadd.f32 %v49, %v50
    %v52 = vrot.slane %v51, 1
    %v53 = vadd.f32 %v51, %v52
    %s54 = vtos %v53
    %s55 = ssub.f32 0.0, %s54
    %v56 = vld [vmem:[#allocation2] sm:$0xff]
    %v57 = vld [vmem:[#allocation2 + $0x8] sm:$0xff]
    %v58 = vld [vmem:[#allocation2 + $0x10] sm:$0xff]
    %v59 = vld [vmem:[#allocation2 + $0x18] sm:$0xff]
    %v60 = vld [vmem:[#allocation2 + $0x20] sm:$0xff]
    %v61 = vld [vmem:[#allocation2 + $0x28] sm:$0xff]
    %v62 = vld [vmem:[#allocation2 + $0x30] sm:$0xff]
    %v63 = vld [vmem:[#allocation2 + $0x38] sm:$0xff]
    %v64 = vld [vmem:[#allocation2 + $0x40] sm:$0xff]
    %v65 = vld [vmem:[#allocation2 + $0x48] sm:$0xff]
    %v66 = vld [vmem:[#allocation2 + $0x50] sm:$0xff]
    %v67 = vld [vmem:[#allocation2 + $0x58] sm:$0xff]
    %v68 = vld [vmem:[#allocation2 + $0x60] sm:$0xff]
    %v69 = vld [vmem:[#allocation2 + $0x68] sm:$0xff]
    %v70 = vld [vmem:[#allocation2 + $0x70] sm:$0xff]
    %v71 = vld [vmem:[#allocation2 + $0x78] sm:$0xff]
    %v72 = vld [vmem:[#allocation2 + $0x80] sm:$0xff]
    %v73 = vld [vmem:[#allocation2 + $0x88] sm:$0xff]
    %v74 = vld [vmem:[#allocation2 + $0x90] sm:$0xff]
    %v75 = vld [vmem:[#allocation2 + $0x98] sm:$0xff]
    %v76 = vld [vmem:[#allocation2 + $0xa0] sm:$0xff]
    %v77 = vld [vmem:[#allocation2 + $0xa8] sm:$0xff]
    %v78 = vld [vmem:[#allocation2 + $0xb0] sm:$0xff]
    %v79 = vld [vmem:[#allocation2 + $0xb8] sm:$0xff]
    %v80 = vld [vmem:[#allocation2 + $0xc0] sm:$0xff]
    %v81 = vld [vmem:[#allocation2 + $0xc8] sm:$0xff]
    %v82 = vld [vmem:[#allocation2 + $0xd0] sm:$0xff]
    %v83 = vld [vmem:[#allocation2 + $0xd8] sm:$0xff]
    %v84 = vld [vmem:[#allocation2 + $0xe0] sm:$0xff]
    %v85 = vld [vmem:[#allocation2 + $0xe8] sm:$0xff]
    %v86 = vld [vmem:[#allocation2 + $0xf0] sm:$0xff]
    %v87 = vld [vmem:[#allocation2 + $0xf8] sm:$0xff]
    %vm88 = vcmask 261120
    %v90 = vsel %vm88, %v56, 0
    %v93 = vsel %vm88, %v57, 0
    %v96 = vsel %vm88, %v58, 0
    %v99 = vsel %vm88, %v59, 0
    %101 = vmatprep.subr.mxu0 0.0
    %v102 = vand.u32 %v90, 4294901760
    %103 = vmatpush1.xpose.msra.mxu0 %v102
    %104 = vmatprep.subr.mxu0 0.0
    %v105 = vand.u32 %v93, 4294901760
    %106 = vmatpush1.xpose.msra.mxu0 %v105
    %107 = vmatprep.subr.mxu0 0.0
    %v108 = vand.u32 %v96, 4294901760
    %109 = vmatpush1.xpose.msra.mxu0 %v108
    %110 = vmatprep.subr.mxu0 0.0
    %v111 = vand.u32 %v99, 4294901760
    %112 = vmatpush1.xpose.msra.mxu0 %v111
    %113 = vmatprep.subr.mxu0 0.0
    %114 = vmatpush1.xpose.msra.mxu0 0.0
    %115 = vmatprep.subr.mxu0 0.0
    %116 = vmatpush1.xpose.msra.mxu0 0.0
    %117 = vmatprep.subr.mxu0 0.0
    %118 = vmatpush1.xpose.msra.mxu0 0.0
    %119 = vmatprep.subr.mxu0 0.0
    %120 = vmatpush1.xpose.msra.mxu0 0.0
    %121 = vmatprep.subr.mxu0 0.0
    %122 = vmatpush1.xpose.msra.mxu0 0.0
    %123 = vmatprep.subr.mxu0 0.0
    %124 = vmatpush1.xpose.msra.mxu0 0.0
    %125 = vmatprep.subr.mxu0 0.0
    %126 = vmatpush1.xpose.msra.mxu0 0.0
    %127 = vmatprep.subr.mxu0 0.0
    %128 = vmatpush1.xpose.msra.mxu0 0.0
    %129 = vmatprep.subr.mxu0 0.0
    %130 = vmatpush1.xpose.msra.mxu0 0.0
    %131 = vmatprep.subr.mxu0 0.0
    %132 = vmatpush1.xpose.msra.mxu0 0.0
    %133 = vmatprep.subr.mxu0 0.0
    %134 = vmatpush1.xpose.msra.mxu0 0.0
    %135 = vmatprep.subr.mxu0 0.0
    %136 = vmatpush1.xpose.msra.mxu0 0.0
    %137 = vmatprep.subr.mxu0 0.0
    %138 = vmatpush1.xpose.msra.mxu0 0.0
    %139 = vmatprep.subr.mxu0 0.0
    %140 = vmatpush1.xpose.msra.mxu0 0.0
    %141 = vmatprep.subr.mxu0 0.0
    %142 = vmatpush1.xpose.msra.mxu0 0.0
    %143 = vmatprep.subr.mxu0 0.0
    %144 = vmatpush1.xpose.msra.mxu0 0.0
    %145 = vmatprep.subr.mxu0 0.0
    %146 = vmatpush1.xpose.msra.mxu0 0.0
    %147 = vmatprep.subr.mxu0 0.0
    %148 = vmatpush1.xpose.msra.mxu0 0.0
    %149 = vmatprep.subr.mxu0 0.0
    %150 = vmatpush1.xpose.msra.mxu0 0.0
    %151 = vmatprep.subr.mxu0 0.0
    %152 = vmatpush1.xpose.msra.mxu0 0.0
    %153 = vmatprep.subr.mxu0 0.0
    %154 = vmatpush1.xpose.msra.mxu0 0.0
    %155 = vmatprep.subr.mxu0 0.0
    %156 = vmatpush1.xpose.msra.mxu0 0.0
    %157 = vmatprep.subr.mxu0 0.0
    %158 = vmatpush1.xpose.msra.mxu0 0.0
    %159 = vmatprep.subr.mxu0 0.0
    %160 = vmatpush1.xpose.msra.mxu0 0.0
    %161 = vmatprep.subr.mxu0 0.0
    %162 = vmatpush1.xpose.msra.mxu0 0.0
    %163 = vmatprep.subr.mxu0 0.0
    %164 = vmatpush1.xpose.msra.mxu0 0.0
    %165 = vmatprep.subr.mxu0 0.0
    %166 = vmatpush1.xpose.msra.mxu0 0.0
    %167 = vmatprep.subr.mxu0 0.0
    %168 = vmatpush1.xpose.msra.mxu0 0.0
    %169 = vmatprep.mubr.f32.mxu0 0.0
    %v170 = vand.u32 %v90, 4294901760
    %v171 = vsub.f32 %v90, %v170
    %v172 = vand.u32 %v171, 4294901760
    %v173 = vsub.f32 %v171, %v172
    %v174 = vand.u32 %v173, 4294901760
    %175 = vmatmul.mubr.f32.gmra.mrb[0].mxu0 %v174
    %v176 = vpop.f32.mrb[0].mxu0
    %v177 = vadd.f32 0.0, %v176
    %v178 = vpop.f32.mrb[0].mxu0
    %179 = vmatprep.mubr.f32.mxu0 0.0
    %v180 = vand.u32 %v93, 4294901760
    %v181 = vsub.f32 %v93, %v180
    %v182 = vand.u32 %v181, 4294901760
    %v183 = vsub.f32 %v181, %v182
    %v184 = vand.u32 %v183, 4294901760
    %185 = vmatmul.mubr.f32.gmra.mrb[0].mxu0 %v184
    %v186 = vpop.f32.mrb[0].mxu0
    %v187 = vadd.f32 0.0, %v186
    %v188 = vpop.f32.mrb[0].mxu0
    %189 = vmatprep.mubr.f32.mxu0 0.0
    %v190 = vand.u32 %v96, 4294901760
    %v191 = vsub.f32 %v96, %v190
    %v192 = vand.u32 %v191, 4294901760
    %v193 = vsub.f32 %v191, %v192
    %v194 = vand.u32 %v193, 4294901760
    %195 = vmatmul.mubr.f32.gmra.mrb[0].mxu0 %v194
    %v196 = vpop.f32.mrb[0].mxu0
    %v197 = vadd.f32 0.0, %v196
    %v198 = vpop.f32.mrb[0].mxu0
    %199 = vmatprep.mubr.f32.mxu0 0.0
    %v200 = vand.u32 %v99, 4294901760
    %v201 = vsub.f32 %v99, %v200
    %v202 = vand.u32 %v201, 4294901760
    %v203 = vsub.f32 %v201, %v202
    %v204 = vand.u32 %v203, 4294901760
    %205 = vmatmul.mubr.f32.gmra.mrb[0].mxu0 %v204
    %v206 = vpop.f32.mrb[0].mxu0
    %v207 = vadd.f32 0.0, %v206
    %v208 = vpop.f32.mrb[0].mxu0
    %209 = vdwg.mxu0
    %210 = vmatprep.subr.mxu0 0.0
    %v211 = vand.u32 %v90, 4294901760
    %v212 = vsub.f32 %v90, %v211
    %v213 = vand.u32 %v212, 4294901760
    %v214 = vsub.f32 %v212, %v213
    %v215 = vand.u32 %v214, 4294901760
    %216 = vmatpush1.xpose.msra.mxu0 %v215
    %217 = vmatprep.subr.mxu0 0.0
    %v218 = vand.u32 %v93, 4294901760
    %v219 = vsub.f32 %v93, %v218
    %v220 = vand.u32 %v219, 4294901760
    %v221 = vsub.f32 %v219, %v220
    %v222 = vand.u32 %v221, 4294901760
    %223 = vmatpush1.xpose.msra.mxu0 %v222
    %224 = vmatprep.subr.mxu0 0.0
    %v225 = vand.u32 %v96, 4294901760
    %v226 = vsub.f32 %v96, %v225
    %v227 = vand.u32 %v226, 4294901760
    %v228 = vsub.f32 %v226, %v227
    %v229 = vand.u32 %v228, 4294901760
    %230 = vmatpush1.xpose.msra.mxu0 %v229
    %231 = vmatprep.subr.mxu0 0.0
    %v232 = vand.u32 %v99, 4294901760
    %v233 = vsub.f32 %v99, %v232
    %v234 = vand.u32 %v233, 4294901760
    %v235 = vsub.f32 %v233, %v234
    %v236 = vand.u32 %v235, 4294901760
    %237 = vmatpush1.xpose.msra.mxu0 %v236
    %238 = vmatprep.subr.mxu0 0.0
    %239 = vmatpush1.xpose.msra.mxu0 0.0
    %240 = vmatprep.subr.mxu0 0.0
    %241 = vmatpush1.xpose.msra.mxu0 0.0
    %242 = vmatprep.subr.mxu0 0.0
    %243 = vmatpush1.xpose.msra.mxu0 0.0
    %244 = vmatprep.subr.mxu0 0.0
    %245 = vmatpush1.xpose.msra.mxu0 0.0
    %246 = vmatprep.subr.mxu0 0.0
    %247 = vmatpush1.xpose.msra.mxu0 0.0
    %248 = vmatprep.subr.mxu0 0.0
    %249 = vmatpush1.xpose.msra.mxu0 0.0
    %250 = vmatprep.subr.mxu0 0.0
    %251 = vmatpush1.xpose.msra.mxu0 0.0
    %252 = vmatprep.subr.mxu0 0.0
    %253 = vmatpush1.xpose.msra.mxu0 0.0
    %254 = vmatprep.subr.mxu0 0.0
    %255 = vmatpush1.xpose.msra.mxu0 0.0
    %256 = vmatprep.subr.mxu0 0.0
    %257 = vmatpush1.xpose.msra.mxu0 0.0
    %258 = vmatprep.subr.mxu0 0.0
    %259 = vmatpush1.xpose.msra.mxu0 0.0
    %260 = vmatprep.subr.mxu0 0.0
    %261 = vmatpush1.xpose.msra.mxu0 0.0
    %262 = vmatprep.subr.mxu0 0.0
    %263 = vmatpush1.xpose.msra.mxu0 0.0
    %264 = vmatprep.subr.mxu0 0.0
    %265 = vmatpush1.xpose.msra.mxu0 0.0
    %266 = vmatprep.subr.mxu0 0.0
    %267 = vmatpush1.xpose.msra.mxu0 0.0
    %268 = vmatprep.subr.mxu0 0.0
    %269 = vmatpush1.xpose.msra.mxu0 0.0
    %270 = vmatprep.subr.mxu0 0.0
    %271 = vmatpush1.xpose.msra.mxu0 0.0
    %272 = vmatprep.subr.mxu0 0.0
    %273 = vmatpush1.xpose.msra.mxu0 0.0
    %274 = vmatprep.subr.mxu0 0.0
    %275 = vmatpush1.xpose.msra.mxu0 0.0
    %276 = vmatprep.subr.mxu0 0.0
    %277 = vmatpush1.xpose.msra.mxu0 0.0
    %278 = vmatprep.subr.mxu0 0.0
    %279 = vmatpush1.xpose.msra.mxu0 0.0
    %280 = vmatprep.subr.mxu0 0.0
    %281 = vmatpush1.xpose.msra.mxu0 0.0
    %282 = vmatprep.subr.mxu0 0.0
    %283 = vmatpush1.xpose.msra.mxu0 0.0
    %284 = vmatprep.subr.mxu0 0.0
    %285 = vmatpush1.xpose.msra.mxu0 0.0
    %286 = vmatprep.subr.mxu0 0.0
    %287 = vmatpush1.xpose.msra.mxu0 0.0
    %288 = vmatprep.subr.mxu0 0.0
    %289 = vmatpush1.xpose.msra.mxu0 0.0
    %290 = vmatprep.subr.mxu0 0.0
    %291 = vmatpush1.xpose.msra.mxu0 0.0
    %292 = vmatprep.subr.mxu0 0.0
    %293 = vmatpush1.xpose.msra.mxu0 0.0
    %294 = vmatprep.mubr.f32.mxu0 0.0
    %v295 = vand.u32 %v90, 4294901760
    %296 = vmatmul.mubr.f32.gmra.mrb[0].mxu0 %v295
    %v297 = vpop.f32.mrb[0].mxu0
    %v298 = vadd.f32 %v177, %v297
    %v299 = vpop.f32.mrb[0].mxu0
    %300 = vmatprep.mubr.f32.mxu0 0.0
    %v301 = vand.u32 %v93, 4294901760
    %302 = vmatmul.mubr.f32.gmra.mrb[0].mxu0 %v301
    %v303 = vpop.f32.mrb[0].mxu0
    %v304 = vadd.f32 %v187, %v303
    %v305 = vpop.f32.mrb[0].mxu0
    %306 = vmatprep.mubr.f32.mxu0 0.0
    %v307 = vand.u32 %v96, 4294901760
    %308 = vmatmul.mubr.f32.gmra.mrb[0].mxu0 %v307
    %v309 = vpop.f32.mrb[0].mxu0
    %v310 = vadd.f32 %v197, %v309
    %v311 = vpop.f32.mrb[0].mxu0
    %312 = vmatprep.mubr.f32.mxu0 0.0
    %v313 = vand.u32 %v99, 4294901760
    %314 = vmatmul.mubr.f32.gmra.mrb[0].mxu0 %v313
    %v315 = vpop.f32.mrb[0].mxu0
    %v316 = vadd.f32 %v207, %v315
    %v317 = vpop.f32.mrb[0].mxu0
    %318 = vdwg.mxu0
    %319 = vmatprep.subr.mxu0 0.0
    %v320 = vand.u32 %v90, 4294901760
    %v321 = vsub.f32 %v90, %v320
    %322 = vmatpush1.xpose.msra.mxu0 %v321
    %323 = vmatprep.subr.mxu0 0.0
    %v324 = vand.u32 %v93, 4294901760
    %v325 = vsub.f32 %v93, %v324
    %326 = vmatpush1.xpose.msra.mxu0 %v325
    %327 = vmatprep.subr.mxu0 0.0
    %v328 = vand.u32 %v96, 4294901760
    %v329 = vsub.f32 %v96, %v328
    %330 = vmatpush1.xpose.msra.mxu0 %v329
    %331 = vmatprep.subr.mxu0 0.0
    %v332 = vand.u32 %v99, 4294901760
    %v333 = vsub.f32 %v99, %v332
    %334 = vmatpush1.xpose.msra.mxu0 %v333
    %335 = vmatprep.subr.mxu0 0.0
    %336 = vmatpush1.xpose.msra.mxu0 0.0
    %337 = vmatprep.subr.mxu0 0.0
    %338 = vmatpush1.xpose.msra.mxu0 0.0
    %339 = vmatprep.subr.mxu0 0.0
    %340 = vmatpush1.xpose.msra.mxu0 0.0
    %341 = vmatprep.subr.mxu0 0.0
    %342 = vmatpush1.xpose.msra.mxu0 0.0
    %343 = vmatprep.subr.mxu0 0.0
    %344 = vmatpush1.xpose.msra.mxu0 0.0
    %345 = vmatprep.subr.mxu0 0.0
    %346 = vmatpush1.xpose.msra.mxu0 0.0
    %347 = vmatprep.subr.mxu0 0.0
    %348 = vmatpush1.xpose.msra.mxu0 0.0
    %349 = vmatprep.subr.mxu0 0.0
    %350 = vmatpush1.xpose.msra.mxu0 0.0
    %351 = vmatprep.subr.mxu0 0.0
    %352 = vmatpush1.xpose.msra.mxu0 0.0
    %353 = vmatprep.subr.mxu0 0.0
    %354 = vmatpush1.xpose.msra.mxu0 0.0
    %355 = vmatprep.subr.mxu0 0.0
    %356 = vmatpush1.xpose.msra.mxu0 0.0
    %357 = vmatprep.subr.mxu0 0.0
    %358 = vmatpush1.xpose.msra.mxu0 0.0
    %359 = vmatprep.subr.mxu0 0.0
    %360 = vmatpush1.xpose.msra.mxu0 0.0
    %361 = vmatprep.subr.mxu0 0.0
    %362 = vmatpush1.xpose.msra.mxu0 0.0
    %363 = vmatprep.subr.mxu0 0.0
    %364 = vmatpush1.xpose.msra.mxu0 0.0
    %365 = vmatprep.subr.mxu0 0.0
    %366 = vmatpush1.xpose.msra.mxu0 0.0
    %367 = vmatprep.subr.mxu0 0.0
    %368 = vmatpush1.xpose.msra.mxu0 0.0
    %369 = vmatprep.subr.mxu0 0.0
    %370 = vmatpush1.xpose.msra.mxu0 0.0
    %371 = vmatprep.subr.mxu0 0.0
    %372 = vmatpush1.xpose.msra.mxu0 0.0
    %373 = vmatprep.subr.mxu0 0.0
    %374 = vmatpush1.xpose.msra.mxu0 0.0
    %375 = vmatprep.subr.mxu0 0.0
    %376 = vmatpush1.xpose.msra.mxu0 0.0
    %377 = vmatprep.subr.mxu0 0.0
    %378 = vmatpush1.xpose.msra.mxu0 0.0
    %379 = vmatprep.subr.mxu0 0.0
    %380 = vmatpush1.xpose.msra.mxu0 0.0
    %381 = vmatprep.subr.mxu0 0.0
    %382 = vmatpush1.xpose.msra.mxu0 0.0
    %383 = vmatprep.subr.mxu0 0.0
    %384 = vmatpush1.xpose.msra.mxu0 0.0
    %385 = vmatprep.subr.mxu0 0.0
    %386 = vmatpush1.xpose.msra.mxu0 0.0
    %387 = vmatprep.subr.mxu0 0.0
    %388 = vmatpush1.xpose.msra.mxu0 0.0
    %389 = vmatprep.subr.mxu0 0.0
    %390 = vmatpush1.xpose.msra.mxu0 0.0
    %391 = vmatprep.mubr.f32.mxu0 0.0
    %v392 = vand.u32 %v90, 4294901760
    %v393 = vsub.f32 %v90, %v392
    %394 = vmatmul.mubr.f32.gmra.mrb[0].mxu0 %v393
    %v395 = vpop.f32.mrb[0].mxu0
    %v396 = vadd.f32 %v298, %v395
    %v397 = vpop.f32.mrb[0].mxu0
    %398 = vmatprep.mubr.f32.mxu0 0.0
    %v399 = vand.u32 %v93, 4294901760
    %v400 = vsub.f32 %v93, %v399
    %401 = vmatmul.mubr.f32.gmra.mrb[0].mxu0 %v400
    %v402 = vpop.f32.mrb[0].mxu0
    %v403 = vadd.f32 %v304, %v402
    %v404 = vpop.f32.mrb[0].mxu0
    %405 = vmatprep.mubr.f32.mxu0 0.0
    %v406 = vand.u32 %v96, 4294901760
    %v407 = vsub.f32 %v96, %v406
    %408 = vmatmul.mubr.f32.gmra.mrb[0].mxu0 %v407
    %v409 = vpop.f32.mrb[0].mxu0
    %v410 = vadd.f32 %v310, %v409
    %v411 = vpop.f32.mrb[0].mxu0
    %412 = vmatprep.mubr.f32.mxu0 0.0
    %v413 = vand.u32 %v99, 4294901760
    %v414 = vsub.f32 %v99, %v413
    %415 = vmatmul.mubr.f32.gmra.mrb[0].mxu0 %v414
    %v416 = vpop.f32.mrb[0].mxu0
    %v417 = vadd.f32 %v316, %v416
    %v418 = vpop.f32.mrb[0].mxu0
    %419 = vdwg.mxu0
    %420 = vmatprep.subr.mxu0 0.0
    %v421 = vand.u32 %v90, 4294901760
    %422 = vmatpush1.xpose.msra.mxu0 %v421
    %423 = vmatprep.subr.mxu0 0.0
    %v424 = vand.u32 %v93, 4294901760
    %425 = vmatpush1.xpose.msra.mxu0 %v424
    %426 = vmatprep.subr.mxu0 0.0
    %v427 = vand.u32 %v96, 4294901760
    %428 = vmatpush1.xpose.msra.mxu0 %v427
    %429 = vmatprep.subr.mxu0 0.0
    %v430 = vand.u32 %v99, 4294901760
    %431 = vmatpush1.xpose.msra.mxu0 %v430
    %432 = vmatprep.subr.mxu0 0.0
    %433 = vmatpush1.xpose.msra.mxu0 0.0
    %434 = vmatprep.subr.mxu0 0.0
    %435 = vmatpush1.xpose.msra.mxu0 0.0
    %436 = vmatprep.subr.mxu0 0.0
    %437 = vmatpush1.xpose.msra.mxu0 0.0
    %438 = vmatprep.subr.mxu0 0.0
    %439 = vmatpush1.xpose.msra.mxu0 0.0
    %440 = vmatprep.subr.mxu0 0.0
    %441 = vmatpush1.xpose.msra.mxu0 0.0
    %442 = vmatprep.subr.mxu0 0.0
    %443 = vmatpush1.xpose.msra.mxu0 0.0
    %444 = vmatprep.subr.mxu0 0.0
    %445 = vmatpush1.xpose.msra.mxu0 0.0
    %446 = vmatprep.subr.mxu0 0.0
    %447 = vmatpush1.xpose.msra.mxu0 0.0
    %448 = vmatprep.subr.mxu0 0.0
    %449 = vmatpush1.xpose.msra.mxu0 0.0
    %450 = vmatprep.subr.mxu0 0.0
    %451 = vmatpush1.xpose.msra.mxu0 0.0
    %452 = vmatprep.subr.mxu0 0.0
    %453 = vmatpush1.xpose.msra.mxu0 0.0
    %454 = vmatprep.subr.mxu0 0.0
    %455 = vmatpush1.xpose.msra.mxu0 0.0
    %456 = vmatprep.subr.mxu0 0.0
    %457 = vmatpush1.xpose.msra.mxu0 0.0
    %458 = vmatprep.subr.mxu0 0.0
    %459 = vmatpush1.xpose.msra.mxu0 0.0
    %460 = vmatprep.subr.mxu0 0.0
    %461 = vmatpush1.xpose.msra.mxu0 0.0
    %462 = vmatprep.subr.mxu0 0.0
    %463 = vmatpush1.xpose.msra.mxu0 0.0
    %464 = vmatprep.subr.mxu0 0.0
    %465 = vmatpush1.xpose.msra.mxu0 0.0
    %466 = vmatprep.subr.mxu0 0.0
    %467 = vmatpush1.xpose.msra.mxu0 0.0
    %468 = vmatprep.subr.mxu0 0.0
    %469 = vmatpush1.xpose.msra.mxu0 0.0
    %470 = vmatprep.subr.mxu0 0.0
    %471 = vmatpush1.xpose.msra.mxu0 0.0
    %472 = vmatprep.subr.mxu0 0.0
    %473 = vmatpush1.xpose.msra.mxu0 0.0
    %474 = vmatprep.subr.mxu0 0.0
    %475 = vmatpush1.xpose.msra.mxu0 0.0
    %476 = vmatprep.subr.mxu0 0.0
    %477 = vmatpush1.xpose.msra.mxu0 0.0
    %478 = vmatprep.subr.mxu0 0.0
    %479 = vmatpush1.xpose.msra.mxu0 0.0
    %480 = vmatprep.subr.mxu0 0.0
    %481 = vmatpush1.xpose.msra.mxu0 0.0
    %482 = vmatprep.subr.mxu0 0.0
    %483 = vmatpush1.xpose.msra.mxu0 0.0
    %484 = vmatprep.subr.mxu0 0.0
    %485 = vmatpush1.xpose.msra.mxu0 0.0
    %486 = vmatprep.subr.mxu0 0.0
    %487 = vmatpush1.xpose.msra.mxu0 0.0
    %488 = vmatprep.mubr.f32.mxu0 0.0
    %v489 = vand.u32 %v90, 4294901760
    %v490 = vsub.f32 %v90, %v489
    %v491 = vand.u32 %v490, 4294901760
    %492 = vmatmul.mubr.f32.gmra.mrb[0].mxu0 %v491
    %v493 = vpop.f32.mrb[0].mxu0
    %v494 = vadd.f32 %v396, %v493
    %v495 = vpop.f32.mrb[0].mxu0
    %496 = vmatprep.mubr.f32.mxu0 0.0
    %v497 = vand.u32 %v93, 4294901760
    %v498 = vsub.f32 %v93, %v497
    %v499 = vand.u32 %v498, 4294901760
    %500 = vmatmul.mubr.f32.gmra.mrb[0].mxu0 %v499
    %v501 = vpop.f32.mrb[0].mxu0
    %v502 = vadd.f32 %v403, %v501
    %v503 = vpop.f32.mrb[0].mxu0
    %504 = vmatprep.mubr.f32.mxu0 0.0
    %v505 = vand.u32 %v96, 4294901760
    %v506 = vsub.f32 %v96, %v505
    %v507 = vand.u32 %v506, 4294901760
    %508 = vmatmul.mubr.f32.gmra.mrb[0].mxu0 %v507
    %v509 = vpop.f32.mrb[0].mxu0
    %v510 = vadd.f32 %v410, %v509
    %v511 = vpop.f32.mrb[0].mxu0
    %512 = vmatprep.mubr.f32.mxu0 0.0
    %v513 = vand.u32 %v99, 4294901760
    %v514 = vsub.f32 %v99, %v513
    %v515 = vand.u32 %v514, 4294901760
    %516 = vmatmul.mubr.f32.gmra.mrb[0].mxu0 %v515
    %v517 = vpop.f32.mrb[0].mxu0
    %v518 = vadd.f32 %v417, %v517
    %v519 = vpop.f32.mrb[0].mxu0
    %520 = vdwg.mxu0
    %521 = vmatprep.subr.mxu0 0.0
    %v522 = vand.u32 %v90, 4294901760
    %v523 = vsub.f32 %v90, %v522
    %v524 = vand.u32 %v523, 4294901760
    %525 = vmatpush1.xpose.msra.mxu0 %v524
    %526 = vmatprep.subr.mxu0 0.0
    %v527 = vand.u32 %v93, 4294901760
    %v528 = vsub.f32 %v93, %v527
    %v529 = vand.u32 %v528, 4294901760
    %530 = vmatpush1.xpose.msra.mxu0 %v529
    %531 = vmatprep.subr.mxu0 0.0
    %v532 = vand.u32 %v96, 4294901760
    %v533 = vsub.f32 %v96, %v532
    %v534 = vand.u32 %v533, 4294901760
    %535 = vmatpush1.xpose.msra.mxu0 %v534
    %536 = vmatprep.subr.mxu0 0.0
    %v537 = vand.u32 %v99, 4294901760
    %v538 = vsub.f32 %v99, %v537
    %v539 = vand.u32 %v538, 4294901760
    %540 = vmatpush1.xpose.msra.mxu0 %v539
    %541 = vmatprep.subr.mxu0 0.0
    %542 = vmatpush1.xpose.msra.mxu0 0.0
    %543 = vmatprep.subr.mxu0 0.0
    %544 = vmatpush1.xpose.msra.mxu0 0.0
    %545 = vmatprep.subr.mxu0 0.0
    %546 = vmatpush1.xpose.msra.mxu0 0.0
    %547 = vmatprep.subr.mxu0 0.0
    %548 = vmatpush1.xpose.msra.mxu0 0.0
    %549 = vmatprep.subr.mxu0 0.0
    %550 = vmatpush1.xpose.msra.mxu0 0.0
    %551 = vmatprep.subr.mxu0 0.0
    %552 = vmatpush1.xpose.msra.mxu0 0.0
    %553 = vmatprep.subr.mxu0 0.0
    %554 = vmatpush1.xpose.msra.mxu0 0.0
    %555 = vmatprep.subr.mxu0 0.0
    %556 = vmatpush1.xpose.msra.mxu0 0.0
    %557 = vmatprep.subr.mxu0 0.0
    %558 = vmatpush1.xpose.msra.mxu0 0.0
    %559 = vmatprep.subr.mxu0 0.0
    %560 = vmatpush1.xpose.msra.mxu0 0.0
    %561 = vmatprep.subr.mxu0 0.0
    %562 = vmatpush1.xpose.msra.mxu0 0.0
    %563 = vmatprep.subr.mxu0 0.0
    %564 = vmatpush1.xpose.msra.mxu0 0.0
    %565 = vmatprep.subr.mxu0 0.0
    %566 = vmatpush1.xpose.msra.mxu0 0.0
    %567 = vmatprep.subr.mxu0 0.0
    %568 = vmatpush1.xpose.msra.mxu0 0.0
    %569 = vmatprep.subr.mxu0 0.0
    %570 = vmatpush1.xpose.msra.mxu0 0.0
    %571 = vmatprep.subr.mxu0 0.0
    %572 = vmatpush1.xpose.msra.mxu0 0.0
    %573 = vmatprep.subr.mxu0 0.0
    %574 = vmatpush1.xpose.msra.mxu0 0.0
    %575 = vmatprep.subr.mxu0 0.0
    %576 = vmatpush1.xpose.msra.mxu0 0.0
    %577 = vmatprep.subr.mxu0 0.0
    %578 = vmatpush1.xpose.msra.mxu0 0.0
    %579 = vmatprep.subr.mxu0 0.0
    %580 = vmatpush1.xpose.msra.mxu0 0.0
    %581 = vmatprep.subr.mxu0 0.0
    %582 = vmatpush1.xpose.msra.mxu0 0.0
    %583 = vmatprep.subr.mxu0 0.0
    %584 = vmatpush1.xpose.msra.mxu0 0.0
    %585 = vmatprep.subr.mxu0 0.0
    %586 = vmatpush1.xpose.msra.mxu0 0.0
    %587 = vmatprep.subr.mxu0 0.0
    %588 = vmatpush1.xpose.msra.mxu0 0.0
    %589 = vmatprep.subr.mxu0 0.0
    %590 = vmatpush1.xpose.msra.mxu0 0.0
    %591 = vmatprep.subr.mxu0 0.0
    %592 = vmatpush1.xpose.msra.mxu0 0.0
    %593 = vmatprep.subr.mxu0 0.0
    %594 = vmatpush1.xpose.msra.mxu0 0.0
    %595 = vmatprep.subr.mxu0 0.0
    %596 = vmatpush1.xpose.msra.mxu0 0.0
    %597 = vmatprep.mubr.f32.mxu0 0.0
    %v598 = vand.u32 %v90, 4294901760
    %599 = vmatmul.mubr.f32.gmra.mrb[0].mxu0 %v598
    %v600 = vpop.f32.mrb[0].mxu0
    %v601 = vadd.f32 %v494, %v600
    %v602 = vpop.f32.mrb[0].mxu0
    %603 = vmatprep.mubr.f32.mxu0 0.0
    %v604 = vand.u32 %v93, 4294901760
    %605 = vmatmul.mubr.f32.gmra.mrb[0].mxu0 %v604
    %v606 = vpop.f32.mrb[0].mxu0
    %v607 = vadd.f32 %v502, %v606
    %v608 = vpop.f32.mrb[0].mxu0
    %609 = vmatprep.mubr.f32.mxu0 0.0
    %v610 = vand.u32 %v96, 4294901760
    %611 = vmatmul.mubr.f32.gmra.mrb[0].mxu0 %v610
    %v612 = vpop.f32.mrb[0].mxu0
    %v613 = vadd.f32 %v510, %v612
    %v614 = vpop.f32.mrb[0].mxu0
    %615 = vmatprep.mubr.f32.mxu0 0.0
    %v616 = vand.u32 %v99, 4294901760
    %617 = vmatmul.mubr.f32.gmra.mrb[0].mxu0 %v616
    %v618 = vpop.f32.mrb[0].mxu0
    %v619 = vadd.f32 %v518, %v618
    %v620 = vpop.f32.mrb[0].mxu0
    %621 = vdwg.mxu0
    %622 = vmatprep.subr.mxu0 0.0
    %v623 = vand.u32 %v90, 4294901760
    %624 = vmatpush1.xpose.msra.mxu0 %v623
    %625 = vmatprep.subr.mxu0 0.0
    %v626 = vand.u32 %v93, 4294901760
    %627 = vmatpush1.xpose.msra.mxu0 %v626
    %628 = vmatprep.subr.mxu0 0.0
    %v629 = vand.u32 %v96, 4294901760
    %630 = vmatpush1.xpose.msra.mxu0 %v629
    %631 = vmatprep.subr.mxu0 0.0
    %v632 = vand.u32 %v99, 4294901760
    %633 = vmatpush1.xpose.msra.mxu0 %v632
    %634 = vmatprep.subr.mxu0 0.0
    %635 = vmatpush1.xpose.msra.mxu0 0.0
    %636 = vmatprep.subr.mxu0 0.0
    %637 = vmatpush1.xpose.msra.mxu0 0.0
    %638 = vmatprep.subr.mxu0 0.0
    %639 = vmatpush1.xpose.msra.mxu0 0.0
    %640 = vmatprep.subr.mxu0 0.0
    %641 = vmatpush1.xpose.msra.mxu0 0.0
    %642 = vmatprep.subr.mxu0 0.0
    %643 = vmatpush1.xpose.msra.mxu0 0.0
    %644 = vmatprep.subr.mxu0 0.0
    %645 = vmatpush1.xpose.msra.mxu0 0.0
    %646 = vmatprep.subr.mxu0 0.0
    %647 = vmatpush1.xpose.msra.mxu0 0.0
    %648 = vmatprep.subr.mxu0 0.0
    %649 = vmatpush1.xpose.msra.mxu0 0.0
    %650 = vmatprep.subr.mxu0 0.0
    %651 = vmatpush1.xpose.msra.mxu0 0.0
    %652 = vmatprep.subr.mxu0 0.0
    %653 = vmatpush1.xpose.msra.mxu0 0.0
    %654 = vmatprep.subr.mxu0 0.0
    %655 = vmatpush1.xpose.msra.mxu0 0.0
    %656 = vmatprep.subr.mxu0 0.0
    %657 = vmatpush1.xpose.msra.mxu0 0.0
    %658 = vmatprep.subr.mxu0 0.0
    %659 = vmatpush1.xpose.msra.mxu0 0.0
    %660 = vmatprep.subr.mxu0 0.0
    %661 = vmatpush1.xpose.msra.mxu0 0.0
    %662 = vmatprep.subr.mxu0 0.0
    %663 = vmatpush1.xpose.msra.mxu0 0.0
    %664 = vmatprep.subr.mxu0 0.0
    %665 = vmatpush1.xpose.msra.mxu0 0.0
    %666 = vmatprep.subr.mxu0 0.0
    %667 = vmatpush1.xpose.msra.mxu0 0.0
    %668 = vmatprep.subr.mxu0 0.0
    %669 = vmatpush1.xpose.msra.mxu0 0.0
    %670 = vmatprep.subr.mxu0 0.0
    %671 = vmatpush1.xpose.msra.mxu0 0.0
    %672 = vmatprep.subr.mxu0 0.0
    %673 = vmatpush1.xpose.msra.mxu0 0.0
    %674 = vmatprep.subr.mxu0 0.0
    %675 = vmatpush1.xpose.msra.mxu0 0.0
    %676 = vmatprep.subr.mxu0 0.0
    %677 = vmatpush1.xpose.msra.mxu0 0.0
    %678 = vmatprep.subr.mxu0 0.0
    %679 = vmatpush1.xpose.msra.mxu0 0.0
    %680 = vmatprep.subr.mxu0 0.0
    %681 = vmatpush1.xpose.msra.mxu0 0.0
    %682 = vmatprep.subr.mxu0 0.0
    %683 = vmatpush1.xpose.msra.mxu0 0.0
    %684 = vmatprep.subr.mxu0 0.0
    %685 = vmatpush1.xpose.msra.mxu0 0.0
    %686 = vmatprep.subr.mxu0 0.0
    %687 = vmatpush1.xpose.msra.mxu0 0.0
    %688 = vmatprep.subr.mxu0 0.0
    %689 = vmatpush1.xpose.msra.mxu0 0.0
    %690 = vmatprep.mubr.f32.mxu0 0.0
    %v691 = vand.u32 %v90, 4294901760
    %692 = vmatmul.mubr.f32.gmra.mrb[0].mxu0 %v691
    %v693 = vpop.f32.mrb[0].mxu0
    %v694 = vadd.f32 %v601, %v693
    %v695 = vpop.f32.mrb[0].mxu0
    %696 = vmatprep.mubr.f32.mxu0 0.0
    %v697 = vand.u32 %v93, 4294901760
    %698 = vmatmul.mubr.f32.gmra.mrb[0].mxu0 %v697
    %v699 = vpop.f32.mrb[0].mxu0
    %v700 = vadd.f32 %v607, %v699
    %v701 = vpop.f32.mrb[0].mxu0
    %702 = vmatprep.mubr.f32.mxu0 0.0
    %v703 = vand.u32 %v96, 4294901760
    %704 = vmatmul.mubr.f32.gmra.mrb[0].mxu0 %v703
    %v705 = vpop.f32.mrb[0].mxu0
    %v706 = vadd.f32 %v613, %v705
    %v707 = vpop.f32.mrb[0].mxu0
    %708 = vmatprep.mubr.f32.mxu0 0.0
    %v709 = vand.u32 %v99, 4294901760
    %710 = vmatmul.mubr.f32.gmra.mrb[0].mxu0 %v709
    %v711 = vpop.f32.mrb[0].mxu0
    %v712 = vadd.f32 %v619, %v711
    %v713 = vpop.f32.mrb[0].mxu0
    %714 = vdwg.mxu0
    %v716 = vsel %vm88, %v60, 0
    %v719 = vsel %vm88, %v61, 0
    %v722 = vsel %vm88, %v62, 0
    %v725 = vsel %vm88, %v63, 0
    %727 = vmatprep.subr.mxu0 0.0
    %v728 = vand.u32 %v716, 4294901760
    %729 = vmatpush1.xpose.msra.mxu0 %v728
    %730 = vmatprep.subr.mxu0 0.0
    %v731 = vand.u32 %v719, 4294901760
    %732 = vmatpush1.xpose.msra.mxu0 %v731
    %733 = vmatprep.subr.mxu0 0.0
    %v734 = vand.u32 %v722, 4294901760
    %735 = vmatpush1.xpose.msra.mxu0 %v734
    %736 = vmatprep.subr.mxu0 0.0
    %v737 = vand.u32 %v725, 4294901760
    %738 = vmatpush1.xpose.msra.mxu0 %v737
    %739 = vmatprep.subr.mxu0 0.0
    %740 = vmatpush1.xpose.msra.mxu0 0.0
    %741 = vmatprep.subr.mxu0 0.0
    %742 = vmatpush1.xpose.msra.mxu0 0.0
    %743 = vmatprep.subr.mxu0 0.0
    %744 = vmatpush1.xpose.msra.mxu0 0.0
    %745 = vmatprep.subr.mxu0 0.0
    %746 = vmatpush1.xpose.msra.mxu0 0.0
    %747 = vmatprep.subr.mxu0 0.0
    %748 = vmatpush1.xpose.msra.mxu0 0.0
    %749 = vmatprep.subr.mxu0 0.0
    %750 = vmatpush1.xpose.msra.mxu0 0.0
    %751 = vmatprep.subr.mxu0 0.0
    %752 = vmatpush1.xpose.msra.mxu0 0.0
    %753 = vmatprep.subr.mxu0 0.0
    %754 = vmatpush1.xpose.msra.mxu0 0.0
    %755 = vmatprep.subr.mxu0 0.0
    %756 = vmatpush1.xpose.msra.mxu0 0.0
    %757 = vmatprep.subr.mxu0 0.0
    %758 = vmatpush1.xpose.msra.mxu0 0.0
    %759 = vmatprep.subr.mxu0 0.0
    %760 = vmatpush1.xpose.msra.mxu0 0.0
    %761 = vmatprep.subr.mxu0 0.0
    %762 = vmatpush1.xpose.msra.mxu0 0.0
    %763 = vmatprep.subr.mxu0 0.0
    %764 = vmatpush1.xpose.msra.mxu0 0.0
    %765 = vmatprep.subr.mxu0 0.0
    %766 = vmatpush1.xpose.msra.mxu0 0.0
    %767 = vmatprep.subr.mxu0 0.0
    %768 = vmatpush1.xpose.msra.mxu0 0.0
    %769 = vmatprep.subr.mxu0 0.0
    %770 = vmatpush1.xpose.msra.mxu0 0.0
    %771 = vmatprep.subr.mxu0 0.0
    %772 = vmatpush1.xpose.msra.mxu0 0.0
    %773 = vmatprep.subr.mxu0 0.0
    %774 = vmatpush1.xpose.msra.mxu0 0.0
    %775 = vmatprep.subr.mxu0 0.0
    %776 = vmatpush1.xpose.msra.mxu0 0.0
    %777 = vmatprep.subr.mxu0 0.0
    %778 = vmatpush1.xpose.msra.mxu0 0.0
    %779 = vmatprep.subr.mxu0 0.0
    %780 = vmatpush1.xpose.msra.mxu0 0.0
    %781 = vmatprep.subr.mxu0 0.0
    %782 = vmatpush1.xpose.msra.mxu0 0.0
    %783 = vmatprep.subr.mxu0 0.0
    %784 = vmatpush1.xpose.msra.mxu0 0.0
    %785 = vmatprep.subr.mxu0 0.0
    %786 = vmatpush1.xpose.msra.mxu0 0.0
    %787 = vmatprep.subr.mxu0 0.0
    %788 = vmatpush1.xpose.msra.mxu0 0.0
    %789 = vmatprep.subr.mxu0 0.0
    %790 = vmatpush1.xpose.msra.mxu0 0.0
    %791 = vmatprep.subr.mxu0 0.0
    %792 = vmatpush1.xpose.msra.mxu0 0.0
    %793 = vmatprep.subr.mxu0 0.0
    %794 = vmatpush1.xpose.msra.mxu0 0.0
    %795 = vmatprep.mubr.f32.mxu0 0.0
    %v796 = vand.u32 %v716, 4294901760
    %v797 = vsub.f32 %v716, %v796
    %v798 = vand.u32 %v797, 4294901760
    %v799 = vsub.f32 %v797, %v798
    %v800 = vand.u32 %v799, 4294901760
    %801 = vmatmul.mubr.f32.gmra.mrb[0].mxu0 %v800
    %v802 = vpop.f32.mrb[0].mxu0
    %v803 = vadd.f32 0.0, %v802
    %v804 = vpop.f32.mrb[0].mxu0
    %805 = vmatprep.mubr.f32.mxu0 0.0
    %v806 = vand.u32 %v719, 4294901760
    %v807 = vsub.f32 %v719, %v806
    %v808 = vand.u32 %v807, 4294901760
    %v809 = vsub.f32 %v807, %v808
    %v810 = vand.u32 %v809, 4294901760
    %811 = vmatmul.mubr.f32.gmra.mrb[0].mxu0 %v810
    %v812 = vpop.f32.mrb[0].mxu0
    %v813 = vadd.f32 0.0, %v812
    %v814 = vpop.f32.mrb[0].mxu0
    %815 = vmatprep.mubr.f32.mxu0 0.0
    %v816 = vand.u32 %v722, 4294901760
    %v817 = vsub.f32 %v722, %v816
    %v818 = vand.u32 %v817, 4294901760
    %v819 = vsub.f32 %v817, %v818
    %v820 = vand.u32 %v819, 4294901760
    %821 = vmatmul.mubr.f32.gmra.mrb[0].mxu0 %v820
    %v822 = vpop.f32.mrb[0].mxu0
    %v823 = vadd.f32 0.0, %v822
    %v824 = vpop.f32.mrb[0].mxu0
    %825 = vmatprep.mubr.f32.mxu0 0.0
    %v826 = vand.u32 %v725, 4294901760
    %v827 = vsub.f32 %v725, %v826
    %v828 = vand.u32 %v827, 4294901760
    %v829 = vsub.f32 %v827, %v828
    %v830 = vand.u32 %v829, 4294901760
    %831 = vmatmul.mubr.f32.gmra.mrb[0].mxu0 %v830
    %v832 = vpop.f32.mrb[0].mxu0
    %v833 = vadd.f32 0.0, %v832
    %v834 = vpop.f32.mrb[0].mxu0
    %835 = vdwg.mxu0
    %836 = vmatprep.subr.mxu0 0.0
    %v837 = vand.u32 %v716, 4294901760
    %v838 = vsub.f32 %v716, %v837
    %v839 = vand.u32 %v838, 4294901760
    %v840 = vsub.f32 %v838, %v839
    %v841 = vand.u32 %v840, 4294901760
    %842 = vmatpush1.xpose.msra.mxu0 %v841
    %843 = vmatprep.subr.mxu0 0.0
    %v844 = vand.u32 %v719, 4294901760
    %v845 = vsub.f32 %v719, %v844
    %v846 = vand.u32 %v845, 4294901760
    %v847 = vsub.f32 %v845, %v846
    %v848 = vand.u32 %v847, 4294901760
    %849 = vmatpush1.xpose.msra.mxu0 %v848
    %850 = vmatprep.subr.mxu0 0.0
    %v851 = vand.u32 %v722, 4294901760
    %v852 = vsub.f32 %v722, %v851
    %v853 = vand.u32 %v852, 4294901760
    %v854 = vsub.f32 %v852, %v853
    %v855 = vand.u32 %v854, 4294901760
    %856 = vmatpush1.xpose.msra.mxu0 %v855
    %857 = vmatprep.subr.mxu0 0.0
    %v858 = vand.u32 %v725, 4294901760
    %v859 = vsub.f32 %v725, %v858
    %v860 = vand.u32 %v859, 4294901760
    %v861 = vsub.f32 %v859, %v860
    %v862 = vand.u32 %v861, 4294901760
    %863 = vmatpush1.xpose.msra.mxu0 %v862
    %864 = vmatprep.subr.mxu0 0.0
    %865 = vmatpush1.xpose.msra.mxu0 0.0
    %866 = vmatprep.subr.mxu0 0.0
    %867 = vmatpush1.xpose.msra.mxu0 0.0
    %868 = vmatprep.subr.mxu0 0.0
    %869 = vmatpush1.xpose.msra.mxu0 0.0
    %870 = vmatprep.subr.mxu0 0.0
    %871 = vmatpush1.xpose.msra.mxu0 0.0
    %872 = vmatprep.subr.mxu0 0.0
    %873 = vmatpush1.xpose.msra.mxu0 0.0
    %874 = vmatprep.subr.mxu0 0.0
    %875 = vmatpush1.xpose.msra.mxu0 0.0
    %876 = vmatprep.subr.mxu0 0.0
    %877 = vmatpush1.xpose.msra.mxu0 0.0
    %878 = vmatprep.subr.mxu0 0.0
    %879 = vmatpush1.xpose.msra.mxu0 0.0
    %880 = vmatprep.subr.mxu0 0.0
    %881 = vmatpush1.xpose.msra.mxu0 0.0
    %882 = vmatprep.subr.mxu0 0.0
    %883 = vmatpush1.xpose.msra.mxu0 0.0
    %884 = vmatprep.subr.mxu0 0.0
    %885 = vmatpush1.xpose.msra.mxu0 0.0
    %886 = vmatprep.subr.mxu0 0.0
    %887 = vmatpush1.xpose.msra.mxu0 0.0
    %888 = vmatprep.subr.mxu0 0.0
    %889 = vmatpush1.xpose.msra.mxu0 0.0
    %890 = vmatprep.subr.mxu0 0.0
    %891 = vmatpush1.xpose.msra.mxu0 0.0
    %892 = vmatprep.subr.mxu0 0.0
    %893 = vmatpush1.xpose.msra.mxu0 0.0
    %894 = vmatprep.subr.mxu0 0.0
    %895 = vmatpush1.xpose.msra.mxu0 0.0
    %896 = vmatprep.subr.mxu0 0.0
    %897 = vmatpush1.xpose.msra.mxu0 0.0
    %898 = vmatprep.subr.mxu0 0.0
    %899 = vmatpush1.xpose.msra.mxu0 0.0
    %900 = vmatprep.subr.mxu0 0.0
    %901 = vmatpush1.xpose.msra.mxu0 0.0
    %902 = vmatprep.subr.mxu0 0.0
    %903 = vmatpush1.xpose.msra.mxu0 0.0
    %904 = vmatprep.subr.mxu0 0.0
    %905 = vmatpush1.xpose.msra.mxu0 0.0
    %906 = vmatprep.subr.mxu0 0.0
    %907 = vmatpush1.xpose.msra.mxu0 0.0
    %908 = vmatprep.subr.mxu0 0.0
    %909 = vmatpush1.xpose.msra.mxu0 0.0
    %910 = vmatprep.subr.mxu0 0.0
    %911 = vmatpush1.xpose.msra.mxu0 0.0
    %912 = vmatprep.subr.mxu0 0.0
    %913 = vmatpush1.xpose.msra.mxu0 0.0
    %914 = vmatprep.subr.mxu0 0.0
    %915 = vmatpush1.xpose.msra.mxu0 0.0
    %916 = vmatprep.subr.mxu0 0.0
    %917 = vmatpush1.xpose.msra.mxu0 0.0
    %918 = vmatprep.subr.mxu0 0.0
    %919 = vmatpush1.xpose.msra.mxu0 0.0
    %920 = vmatprep.mubr.f32.mxu0 0.0
    %v921 = vand.u32 %v716, 4294901760
    %922 = vmatmul.mubr.f32.gmra.mrb[0].mxu0 %v921
    %v923 = vpop.f32.mrb[0].mxu0
    %v924 = vadd.f32 %v803, %v923
    %v925 = vpop.f32.mrb[0].mxu0
    %926 = vmatprep.mubr.f32.mxu0 0.0
    %v927 = vand.u32 %v719, 4294901760
    %928 = vmatmul.mubr.f32.gmra.mrb[0].mxu0 %v927
    %v929 = vpop.f32.mrb[0].mxu0
    %v930 = vadd.f32 %v813, %v929
    %v931 = vpop.f32.mrb[0].mxu0
    %932 = vmatprep.mubr.f32.mxu0 0.0
    %v933 = vand.u32 %v722, 4294901760
    %934 = vmatmul.mubr.f32.gmra.mrb[0].mxu0 %v933
    %v935 = vpop.f32.mrb[0].mxu0
    %v936 = vadd.f32 %v823, %v935
    %v937 = vpop.f32.mrb[0].mxu0
    %938 = vmatprep.mubr.f32.mxu0 0.0
    %v939 = vand.u32 %v725, 4294901760
    %940 = vmatmul.mubr.f32.gmra.mrb[0].mxu0 %v939
    %v941 = vpop.f32.mrb[0].mxu0
    %v942 = vadd.f32 %v833, %v941
    %v943 = vpop.f32.mrb[0].mxu0
    %944 = vdwg.mxu0
    %945 = vmatprep.subr.mxu0 0.0
    %v946 = vand.u32 %v716, 4294901760
    %v947 = vsub.f32 %v716, %v946
    %948 = vmatpush1.xpose.msra.mxu0 %v947
    %949 = vmatprep.subr.mxu0 0.0
    %v950 = vand.u32 %v719, 4294901760
    %v951 = vsub.f32 %v719, %v950
    %952 = vmatpush1.xpose.msra.mxu0 %v951
    %953 = vmatprep.subr.mxu0 0.0
    %v954 = vand.u32 %v722, 4294901760
    %v955 = vsub.f32 %v722, %v954
    %956 = vmatpush1.xpose.msra.mxu0 %v955
    %957 = vmatprep.subr.mxu0 0.0
    %v958 = vand.u32 %v725, 4294901760
    %v959 = vsub.f32 %v725, %v958
    %960 = vmatpush1.xpose.msra.mxu0 %v959
    %961 = vmatprep.subr.mxu0 0.0
    %962 = vmatpush1.xpose.msra.mxu0 0.0
    %963 = vmatprep.subr.mxu0 0.0
    %964 = vmatpush1.xpose.msra.mxu0 0.0
    %965 = vmatprep.subr.mxu0 0.0
    %966 = vmatpush1.xpose.msra.mxu0 0.0
    %967 = vmatprep.subr.mxu0 0.0
    %968 = vmatpush1.xpose.msra.mxu0 0.0
    %969 = vmatprep.subr.mxu0 0.0
    %970 = vmatpush1.xpose.msra.mxu0 0.0
    %971 = vmatprep.subr.mxu0 0.0
    %972 = vmatpush1.xpose.msra.mxu0 0.0
    %973 = vmatprep.subr.mxu0 0.0
    %974 = vmatpush1.xpose.msra.mxu0 0.0
    %975 = vmatprep.subr.mxu0 0.0
    %976 = vmatpush1.xpose.msra.mxu0 0.0
    %977 = vmatprep.subr.mxu0 0.0
    %978 = vmatpush1.xpose.msra.mxu0 0.0
    %979 = vmatprep.subr.mxu0 0.0
    %980 = vmatpush1.xpose.msra.mxu0 0.0
    %981 = vmatprep.subr.mxu0 0.0
    %982 = vmatpush1.xpose.msra.mxu0 0.0
    %983 = vmatprep.subr.mxu0 0.0
    %984 = vmatpush1.xpose.msra.mxu0 0.0
    %985 = vmatprep.subr.mxu0 0.0
    %986 = vmatpush1.xpose.msra.mxu0 0.0
    %987 = vmatprep.subr.mxu0 0.0
    %988 = vmatpush1.xpose.msra.mxu0 0.0
    %989 = vmatprep.subr.mxu0 0.0
    %990 = vmatpush1.xpose.msra.mxu0 0.0
    %991 = vmatprep.subr.mxu0 0.0
    %992 = vmatpush1.xpose.msra.mxu0 0.0
    %993 = vmatprep.subr.mxu0 0.0
    %994 = vmatpush1.xpose.msra.mxu0 0.0
    %995 = vmatprep.subr.mxu0 0.0
    %996 = vmatpush1.xpose.msra.mxu0 0.0
    %997 = vmatprep.subr.mxu0 0.0
    %998 = vmatpush1.xpose.msra.mxu0 0.0
    %999 = vmatprep.subr.mxu0 0.0
    %1000 = vmatpush1.xpose.msra.mxu0 0.0
    %1001 = vmatprep.subr.mxu0 0.0
    %1002 = vmatpush1.xpose.msra.mxu0 0.0
    %1003 = vmatprep.subr.mxu0 0.0
    %1004 = vmatpush1.xpose.msra.mxu0 0.0
    %1005 = vmatprep.subr.mxu0 0.0
    %1006 = vmatpush1.xpose.msra.mxu0 0.0
    %1007 = vmatprep.subr.mxu0 0.0
    %1008 = vmatpush1.xpose.msra.mxu0 0.0
    %1009 = vmatprep.subr.mxu0 0.0
    %1010 = vmatpush1.xpose.msra.mxu0 0.0
    %1011 = vmatprep.subr.mxu0 0.0
    %1012 = vmatpush1.xpose.msra.mxu0 0.0
    %1013 = vmatprep.subr.mxu0 0.0
    %1014 = vmatpush1.xpose.msra.mxu0 0.0
    %1015 = vmatprep.subr.mxu0 0.0
    %1016 = vmatpush1.xpose.msra.mxu0 0.0
    %1017 = vmatprep.mubr.f32.mxu0 0.0
    %v1018 = vand.u32 %v716, 4294901760
    %v1019 = vsub.f32 %v716, %v1018
    %1020 = vmatmul.mubr.f32.gmra.mrb[0].mxu0 %v1019
    %v1021 = vpop.f32.mrb[0].mxu0
    %v1022 = vadd.f32 %v924, %v1021
    %v1023 = vpop.f32.mrb[0].mxu0
    %1024 = vmatprep.mubr.f32.mxu0 0.0
    %v1025 = vand.u32 %v719, 4294901760
    %v1026 = vsub.f32 %v719, %v1025
    %1027 = vmatmul.mubr.f32.gmra.mrb[0].mxu0 %v1026
    %v1028 = vpop.f32.mrb[0].mxu0
    %v1029 = vadd.f32 %v930, %v1028
    %v1030 = vpop.f32.mrb[0].mxu0
    %1031 = vmatprep.mubr.f32.mxu0 0.0
    %v1032 = vand.u32 %v722, 4294901760
    %v1033 = vsub.f32 %v722, %v1032
    %1034 = vmatmul.mubr.f32.gmra.mrb[0].mxu0 %v1033
    %v1035 = vpop.f32.mrb[0].mxu0
    %v1036 = vadd.f32 %v936, %v1035
    %v1037 = vpop.f32.mrb[0].mxu0
    %1038 = vmatprep.mubr.f32.mxu0 0.0
    %v1039 = vand.u32 %v725, 4294901760
    %v1040 = vsub.f32 %v725, %v1039
    %1041 = vmatmul.mubr.f32.gmra.mrb[0].mxu0 %v1040
    %v1042 = vpop.f32.mrb[0].mxu0
    %v1043 = vadd.f32 %v942, %v1042
    %v1044 = vpop.f32.mrb[0].mxu0
    %1045 = vdwg.mxu0
    %1046 = vmatprep.subr.mxu0 0.0
    %v1047 = vand.u32 %v716, 4294901760
    %1048 = vmatpush1.xpose.msra.mxu0 %v1047
    %1049 = vmatprep.subr.mxu0 0.0
    %v1050 = vand.u32 %v719, 4294901760
    %1051 = vmatpush1.xpose.msra.mxu0 %v1050
    %1052 = vmatprep.subr.mxu0 0.0
    %v1053 = vand.u32 %v722, 4294901760
    %1054 = vmatpush1.xpose.msra.mxu0 %v1053
    %1055 = vmatprep.subr.mxu0 0.0
    %v1056 = vand.u32 %v725, 4294901760
    %1057 = vmatpush1.xpose.msra.mxu0 %v1056
    %1058 = vmatprep.subr.mxu0 0.0
    %1059 = vmatpush1.xpose.msra.mxu0 0.0
    %1060 = vmatprep.subr.mxu0 0.0
    %1061 = vmatpush1.xpose.msra.mxu0 0.0
    %1062 = vmatprep.subr.mxu0 0.0
    %1063 = vmatpush1.xpose.msra.mxu0 0.0
    %1064 = vmatprep.subr.mxu0 0.0
    %1065 = vmatpush1.xpose.msra.mxu0 0.0
    %1066 = vmatprep.subr.mxu0 0.0
    %1067 = vmatpush1.xpose.msra.mxu0 0.0
    %1068 = vmatprep.subr.mxu0 0.0
    %1069 = vmatpush1.xpose.msra.mxu0 0.0
    %1070 = vmatprep.subr.mxu0 0.0
    %1071 = vmatpush1.xpose.msra.mxu0 0.0
    %1072 = vmatprep.subr.mxu0 0.0
    %1073 = vmatpush1.xpose.msra.mxu0 0.0
    %1074 = vmatprep.subr.mxu0 0.0
    %1075 = vmatpush1.xpose.msra.mxu0 0.0
    %1076 = vmatprep.subr.mxu0 0.0
    %1077 = vmatpush1.xpose.msra.mxu0 0.0
    %1078 = vmatprep.subr.mxu0 0.0
    %1079 = vmatpush1.xpose.msra.mxu0 0.0
    %1080 = vmatprep.subr.mxu0 0.0
    %1081 = vmatpush1.xpose.msra.mxu0 0.0
    %1082 = vmatprep.subr.mxu0 0.0
    %1083 = vmatpush1.xpose.msra.mxu0 0.0
    %1084 = vmatprep.subr.mxu0 0.0
    %1085 = vmatpush1.xpose.msra.mxu0 0.0
    %1086 = vmatprep.subr.mxu0 0.0
    %1087 = vmatpush1.xpose.msra.mxu0 0.0
    %1088 = vmatprep.subr.mxu0 0.0
    %1089 = vmatpush1.xpose.msra.mxu0 0.0
    %1090 = vmatprep.subr.mxu0 0.0
    %1091 = vmatpush1.xpose.msra.mxu0 0.0
    %1092 = vmatprep.subr.mxu0 0.0
    %1093 = vmatpush1.xpose.msra.mxu0 0.0
    %1094 = vmatprep.subr.mxu0 0.0
    %1095 = vmatpush1.xpose.msra.mxu0 0.0
    %1096 = vmatprep.subr.mxu0 0.0
    %1097 = vmatpush1.xpose.msra.mxu0 0.0
    %1098 = vmatprep.subr.mxu0 0.0
    %1099 = vmatpush1.xpose.msra.mxu0 0.0
    %1100 = vmatprep.subr.mxu0 0.0
    %1101 = vmatpush1.xpose.msra.mxu0 0.0
    %1102 = vmatprep.subr.mxu0 0.0
    %1103 = vmatpush1.xpose.msra.mxu0 0.0
    %1104 = vmatprep.subr.mxu0 0.0
    %1105 = vmatpush1.xpose.msra.mxu0 0.0
    %1106 = vmatprep.subr.mxu0 0.0
    %1107 = vmatpush1.xpose.msra.mxu0 0.0
    %1108 = vmatprep.subr.mxu0 0.0
    %1109 = vmatpush1.xpose.msra.mxu0 0.0
    %1110 = vmatprep.subr.mxu0 0.0
    %1111 = vmatpush1.xpose.msra.mxu0 0.0
    %1112 = vmatprep.subr.mxu0 0.0
    %1113 = vmatpush1.xpose.msra.mxu0 0.0
    %1114 = vmatprep.mubr.f32.mxu0 0.0
    %v1115 = vand.u32 %v716, 4294901760
    %v1116 = vsub.f32 %v716, %v1115
    %v1117 = vand.u32 %v1116, 4294901760
    %1118 = vmatmul.mubr.f32.gmra.mrb[0].mxu0 %v1117
    %v1119 = vpop.f32.mrb[0].mxu0
    %v1120 = vadd.f32 %v1022, %v1119
    %v1121 = vpop.f32.mrb[0].mxu0
    %1122 = vmatprep.mubr.f32.mxu0 0.0
    %v1123 = vand.u32 %v719, 4294901760
    %v1124 = vsub.f32 %v719, %v1123
    %v1125 = vand.u32 %v1124, 4294901760
    %1126 = vmatmul.mubr.f32.gmra.mrb[0].mxu0 %v1125
    %v1127 = vpop.f32.mrb[0].mxu0
    %v1128 = vadd.f32 %v1029, %v1127
    %v1129 = vpop.f32.mrb[0].mxu0
    %1130 = vmatprep.mubr.f32.mxu0 0.0
    %v1131 = vand.u32 %v722, 4294901760
    %v1132 = vsub.f32 %v722, %v1131
    %v1133 = vand.u32 %v1132, 4294901760
    %1134 = vmatmul.mubr.f32.gmra.mrb[0].mxu0 %v1133
    %v1135 = vpop.f32.mrb[0].mxu0
    %v1136 = vadd.f32 %v1036, %v1135
    %v1137 = vpop.f32.mrb[0].mxu0
    %1138 = vmatprep.mubr.f32.mxu0 0.0
    %v1139 = vand.u32 %v725, 4294901760
    %v1140 = vsub.f32 %v725, %v1139
    %v1141 = vand.u32 %v1140, 4294901760
    %1142 = vmatmul.mubr.f32.gmra.mrb[0].mxu0 %v1141
    %v1143 = vpop.f32.mrb[0].mxu0
    %v1144 = vadd.f32 %v1043, %v1143
    %v1145 = vpop.f32.mrb[0].mxu0
    %1146 = vdwg.mxu0
    %1147 = vmatprep.subr.mxu0 0.0
    %v1148 = vand.u32 %v716, 4294901760
    %v1149 = vsub.f32 %v716, %v1148
    %v1150 = vand.u32 %v1149, 4294901760
    %1151 = vmatpush1.xpose.msra.mxu0 %v1150
    %1152 = vmatprep.subr.mxu0 0.0
    %v1153 = vand.u32 %v719, 4294901760
    %v1154 = vsub.f32 %v719, %v1153
    %v1155 = vand.u32 %v1154, 4294901760
    %1156 = vmatpush1.xpose.msra.mxu0 %v1155
    %1157 = vmatprep.subr.mxu0 0.0
    %v1158 = vand.u32 %v722, 4294901760
    %v1159 = vsub.f32 %v722, %v1158
    %v1160 = vand.u32 %v1159, 4294901760
    %1161 = vmatpush1.xpose.msra.mxu0 %v1160
    %1162 = vmatprep.subr.mxu0 0.0
    %v1163 = vand.u32 %v725, 4294901760
    %v1164 = vsub.f32 %v725, %v1163
    %v1165 = vand.u32 %v1164, 4294901760
    %1166 = vmatpush1.xpose.msra.mxu0 %v1165
    %1167 = vmatprep.subr.mxu0 0.0
    %1168 = vmatpush1.xpose.msra.mxu0 0.0
    %1169 = vmatprep.subr.mxu0 0.0
    %1170 = vmatpush1.xpose.msra.mxu0 0.0
    %1171 = vmatprep.subr.mxu0 0.0
    %1172 = vmatpush1.xpose.msra.mxu0 0.0
    %1173 = vmatprep.subr.mxu0 0.0
    %1174 = vmatpush1.xpose.msra.mxu0 0.0
    %1175 = vmatprep.subr.mxu0 0.0
    %1176 = vmatpush1.xpose.msra.mxu0 0.0
    %1177 = vmatprep.subr.mxu0 0.0
    %1178 = vmatpush1.xpose.msra.mxu0 0.0
    %1179 = vmatprep.subr.mxu0 0.0
    %1180 = vmatpush1.xpose.msra.mxu0 0.0
    %1181 = vmatprep.subr.mxu0 0.0
    %1182 = vmatpush1.xpose.msra.mxu0 0.0
    %1183 = vmatprep.subr.mxu0 0.0
    %1184 = vmatpush1.xpose.msra.mxu0 0.0
    %1185 = vmatprep.subr.mxu0 0.0
    %1186 = vmatpush1.xpose.msra.mxu0 0.0
    %1187 = vmatprep.subr.mxu0 0.0
    %1188 = vmatpush1.xpose.msra.mxu0 0.0
    %1189 = vmatprep.subr.mxu0 0.0
    %1190 = vmatpush1.xpose.msra.mxu0 0.0
    %1191 = vmatprep.subr.mxu0 0.0
    %1192 = vmatpush1.xpose.msra.mxu0 0.0
    %1193 = vmatprep.subr.mxu0 0.0
    %1194 = vmatpush1.xpose.msra.mxu0 0.0
    %1195 = vmatprep.subr.mxu0 0.0
    %1196 = vmatpush1.xpose.msra.mxu0 0.0
    %1197 = vmatprep.subr.mxu0 0.0
    %1198 = vmatpush1.xpose.msra.mxu0 0.0
    %1199 = vmatprep.subr.mxu0 0.0
    %1200 = vmatpush1.xpose.msra.mxu0 0.0
    %1201 = vmatprep.subr.mxu0 0.0
    %1202 = vmatpush1.xpose.msra.mxu0 0.0
    %1203 = vmatprep.subr.mxu0 0.0
    %1204 = vmatpush1.xpose.msra.mxu0 0.0
    %1205 = vmatprep.subr.mxu0 0.0
    %1206 = vmatpush1.xpose.msra.mxu0 0.0
    %1207 = vmatprep.subr.mxu0 0.0
    %1208 = vmatpush1.xpose.msra.mxu0 0.0
    %1209 = vmatprep.subr.mxu0 0.0
    %1210 = vmatpush1.xpose.msra.mxu0 0.0
    %1211 = vmatprep.subr.mxu0 0.0
    %1212 = vmatpush1.xpose.msra.mxu0 0.0
    %1213 = vmatprep.subr.mxu0 0.0
    %1214 = vmatpush1.xpose.msra.mxu0 0.0
    %1215 = vmatprep.subr.mxu0 0.0
    %1216 = vmatpush1.xpose.msra.mxu0 0.0
    %1217 = vmatprep.subr.mxu0 0.0
    %1218 = vmatpush1.xpose.msra.mxu0 0.0
    %1219 = vmatprep.subr.mxu0 0.0
    %1220 = vmatpush1.xpose.msra.mxu0 0.0
    %1221 = vmatprep.subr.mxu0 0.0
    %1222 = vmatpush1.xpose.msra.mxu0 0.0
    %1223 = vmatprep.mubr.f32.mxu0 0.0
    %v1224 = vand.u32 %v716, 4294901760
    %1225 = vmatmul.mubr.f32.gmra.mrb[0].mxu0 %v1224
    %v1226 = vpop.f32.mrb[0].mxu0
    %v1227 = vadd.f32 %v1120, %v1226
    %v1228 = vpop.f32.mrb[0].mxu0
    %1229 = vmatprep.mubr.f32.mxu0 0.0
    %v1230 = vand.u32 %v719, 4294901760
    %1231 = vmatmul.mubr.f32.gmra.mrb[0].mxu0 %v1230
    %v1232 = vpop.f32.mrb[0].mxu0
    %v1233 = vadd.f32 %v1128, %v1232
    %v1234 = vpop.f32.mrb[0].mxu0
    %1235 = vmatprep.mubr.f32.mxu0 0.0
    %v1236 = vand.u32 %v722, 4294901760
    %1237 = vmatmul.mubr.f32.gmra.mrb[0].mxu0 %v1236
    %v1238 = vpop.f32.mrb[0].mxu0
    %v1239 = vadd.f32 %v1136, %v1238
    %v1240 = vpop.f32.mrb[0].mxu0
    %1241 = vmatprep.mubr.f32.mxu0 0.0
    %v1242 = vand.u32 %v725, 4294901760
    %1243 = vmatmul.mubr.f32.gmra.mrb[0].mxu0 %v1242
    %v1244 = vpop.f32.mrb[0].mxu0
    %v1245 = vadd.f32 %v1144, %v1244
    %v1246 = vpop.f32.mrb[0].mxu0
    %1247 = vdwg.mxu0
    %1248 = vmatprep.subr.mxu0 0.0
    %v1249 = vand.u32 %v716, 4294901760
    %1250 = vmatpush1.xpose.msra.mxu0 %v1249
    %1251 = vmatprep.subr.mxu0 0.0
    %v1252 = vand.u32 %v719, 4294901760
    %1253 = vmatpush1.xpose.msra.mxu0 %v1252
    %1254 = vmatprep.subr.mxu0 0.0
    %v1255 = vand.u32 %v722, 4294901760
    %1256 = vmatpush1.xpose.msra.mxu0 %v1255
    %1257 = vmatprep.subr.mxu0 0.0
    %v1258 = vand.u32 %v725, 4294901760
    %1259 = vmatpush1.xpose.msra.mxu0 %v1258
    %1260 = vmatprep.subr.mxu0 0.0
    %1261 = vmatpush1.xpose.msra.mxu0 0.0
    %1262 = vmatprep.subr.mxu0 0.0
    %1263 = vmatpush1.xpose.msra.mxu0 0.0
    %1264 = vmatprep.subr.mxu0 0.0
    %1265 = vmatpush1.xpose.msra.mxu0 0.0
    %1266 = vmatprep.subr.mxu0 0.0
    %1267 = vmatpush1.xpose.msra.mxu0 0.0
    %1268 = vmatprep.subr.mxu0 0.0
    %1269 = vmatpush1.xpose.msra.mxu0 0.0
    %1270 = vmatprep.subr.mxu0 0.0
    %1271 = vmatpush1.xpose.msra.mxu0 0.0
    %1272 = vmatprep.subr.mxu0 0.0
    %1273 = vmatpush1.xpose.msra.mxu0 0.0
    %1274 = vmatprep.subr.mxu0 0.0
    %1275 = vmatpush1.xpose.msra.mxu0 0.0
    %1276 = vmatprep.subr.mxu0 0.0
    %1277 = vmatpush1.xpose.msra.mxu0 0.0
    %1278 = vmatprep.subr.mxu0 0.0
    %1279 = vmatpush1.xpose.msra.mxu0 0.0
    %1280 = vmatprep.subr.mxu0 0.0
    %1281 = vmatpush1.xpose.msra.mxu0 0.0
    %1282 = vmatprep.subr.mxu0 0.0
    %1283 = vmatpush1.xpose.msra.mxu0 0.0
    %1284 = vmatprep.subr.mxu0 0.0
    %1285 = vmatpush1.xpose.msra.mxu0 0.0
    %1286 = vmatprep.subr.mxu0 0.0
    %1287 = vmatpush1.xpose.msra.mxu0 0.0
    %1288 = vmatprep.subr.mxu0 0.0
    %1289 = vmatpush1.xpose.msra.mxu0 0.0
    %1290 = vmatprep.subr.mxu0 0.0
    %1291 = vmatpush1.xpose.msra.mxu0 0.0
    %1292 = vmatprep.subr.mxu0 0.0
    %1293 = vmatpush1.xpose.msra.mxu0 0.0
    %1294 = vmatprep.subr.mxu0 0.0
    %1295 = vmatpush1.xpose.msra.mxu0 0.0
    %1296 = vmatprep.subr.mxu0 0.0
    %1297 = vmatpush1.xpose.msra.mxu0 0.0
    %1298 = vmatprep.subr.mxu0 0.0
    %1299 = vmatpush1.xpose.msra.mxu0 0.0
    %1300 = vmatprep.subr.mxu0 0.0
    %1301 = vmatpush1.xpose.msra.mxu0 0.0
    %1302 = vmatprep.subr.mxu0 0.0
    %1303 = vmatpush1.xpose.msra.mxu0 0.0
    %1304 = vmatprep.subr.mxu0 0.0
    %1305 = vmatpush1.xpose.msra.mxu0 0.0
    %1306 = vmatprep.subr.mxu0 0.0
    %1307 = vmatpush1.xpose.msra.mxu0 0.0
    %1308 = vmatprep.subr.mxu0 0.0
    %1309 = vmatpush1.xpose.msra.mxu0 0.0
    %1310 = vmatprep.subr.mxu0 0.0
    %1311 = vmatpush1.xpose.msra.mxu0 0.0
    %1312 = vmatprep.subr.mxu0 0.0
    %1313 = vmatpush1.xpose.msra.mxu0 0.0
    %1314 = vmatprep.subr.mxu0 0.0
    %1315 = vmatpush1.xpose.msra.mxu0 0.0
    %1316 = vmatprep.mubr.f32.mxu0 0.0
    %v1317 = vand.u32 %v716, 4294901760
    %1318 = vmatmul.mubr.f32.gmra.mrb[0].mxu0 %v1317
    %v1319 = vpop.f32.mrb[0].mxu0
    %v1320 = vadd.f32 %v1227, %v1319
    %v1321 = vpop.f32.mrb[0].mxu0
    %1322 = vmatprep.mubr.f32.mxu0 0.0
    %v1323 = vand.u32 %v719, 4294901760
    %1324 = vmatmul.mubr.f32.gmra.mrb[0].mxu0 %v1323
    %v1325 = vpop.f32.mrb[0].mxu0
    %v1326 = vadd.f32 %v1233, %v1325
    %v1327 = vpop.f32.mrb[0].mxu0
    %1328 = vmatprep.mubr.f32.mxu0 0.0
    %v1329 = vand.u32 %v722, 4294901760
    %1330 = vmatmul.mubr.f32.gmra.mrb[0].mxu0 %v1329
    %v1331 = vpop.f32.mrb[0].mxu0
    %v1332 = vadd.f32 %v1239, %v1331
    %v1333 = vpop.f32.mrb[0].mxu0
    %1334 = vmatprep.mubr.f32.mxu0 0.0
    %v1335 = vand.u32 %v725, 4294901760
    %1336 = vmatmul.mubr.f32.gmra.mrb[0].mxu0 %v1335
    %v1337 = vpop.f32.mrb[0].mxu0
    %v1338 = vadd.f32 %v1245, %v1337
    %v1339 = vpop.f32.mrb[0].mxu0
    %1340 = vdwg.mxu0
    %v1342 = vsel %vm88, %v64, 0
    %v1345 = vsel %vm88, %v65, 0
    %v1348 = vsel %vm88, %v66, 0
    %v1351 = vsel %vm88, %v67, 0
    %1353 = vmatprep.subr.mxu0 0.0
    %v1354 = vand.u32 %v1342, 4294901760
    %1355 = vmatpush1.xpose.msra.mxu0 %v1354
    %1356 = vmatprep.subr.mxu0 0.0
    %v1357 = vand.u32 %v1345, 4294901760
    %1358 = vmatpush1.xpose.msra.mxu0 %v1357
    %1359 = vmatprep.subr.mxu0 0.0
    %v1360 = vand.u32 %v1348, 4294901760
    %1361 = vmatpush1.xpose.msra.mxu0 %v1360
    %1362 = vmatprep.subr.mxu0 0.0
    %v1363 = vand.u32 %v1351, 4294901760
    %1364 = vmatpush1.xpose.msra.mxu0 %v1363
    %1365 = vmatprep.subr.mxu0 0.0
    %1366 = vmatpush1.xpose.msra.mxu0 0.0
    %1367 = vmatprep.subr.mxu0 0.0
    %1368 = vmatpush1.xpose.msra.mxu0 0.0
    %1369 = vmatprep.subr.mxu0 0.0
    %1370 = vmatpush1.xpose.msra.mxu0 0.0
    %1371 = vmatprep.subr.mxu0 0.0
    %1372 = vmatpush1.xpose.msra.mxu0 0.0
    %1373 = vmatprep.subr.mxu0 0.0
    %1374 = vmatpush1.xpose.msra.mxu0 0.0
    %1375 = vmatprep.subr.mxu0 0.0
    %1376 = vmatpush1.xpose.msra.mxu0 0.0
    %1377 = vmatprep.subr.mxu0 0.0
    %1378 = vmatpush1.xpose.msra.mxu0 0.0
    %1379 = vmatprep.subr.mxu0 0.0
    %1380 = vmatpush1.xpose.msra.mxu0 0.0
    %1381 = vmatprep.subr.mxu0 0.0
    %1382 = vmatpush1.xpose.msra.mxu0 0.0
    %1383 = vmatprep.subr.mxu0 0.0
    %1384 = vmatpush1.xpose.msra.mxu0 0.0
    %1385 = vmatprep.subr.mxu0 0.0
    %1386 = vmatpush1.xpose.msra.mxu0 0.0
    %1387 = vmatprep.subr.mxu0 0.0
    %1388 = vmatpush1.xpose.msra.mxu0 0.0
    %1389 = vmatprep.subr.mxu0 0.0
    %1390 = vmatpush1.xpose.msra.mxu0 0.0
    %1391 = vmatprep.subr.mxu0 0.0
    %1392 = vmatpush1.xpose.msra.mxu0 0.0
    %1393 = vmatprep.subr.mxu0 0.0
    %1394 = vmatpush1.xpose.msra.mxu0 0.0
    %1395 = vmatprep.subr.mxu0 0.0
    %1396 = vmatpush1.xpose.msra.mxu0 0.0
    %1397 = vmatprep.subr.mxu0 0.0
    %1398 = vmatpush1.xpose.msra.mxu0 0.0
    %1399 = vmatprep.subr.mxu0 0.0
    %1400 = vmatpush1.xpose.msra.mxu0 0.0
    %1401 = vmatprep.subr.mxu0 0.0
    %1402 = vmatpush1.xpose.msra.mxu0 0.0
    %1403 = vmatprep.subr.mxu0 0.0
    %1404 = vmatpush1.xpose.msra.mxu0 0.0
    %1405 = vmatprep.subr.mxu0 0.0
    %1406 = vmatpush1.xpose.msra.mxu0 0.0
    %1407 = vmatprep.subr.mxu0 0.0
    %1408 = vmatpush1.xpose.msra.mxu0 0.0
    %1409 = vmatprep.subr.mxu0 0.0
    %1410 = vmatpush1.xpose.msra.mxu0 0.0
    %1411 = vmatprep.subr.mxu0 0.0
    %1412 = vmatpush1.xpose.msra.mxu0 0.0
    %1413 = vmatprep.subr.mxu0 0.0
    %1414 = vmatpush1.xpose.msra.mxu0 0.0
    %1415 = vmatprep.subr.mxu0 0.0
    %1416 = vmatpush1.xpose.msra.mxu0 0.0
    %1417 = vmatprep.subr.mxu0 0.0
    %1418 = vmatpush1.xpose.msra.mxu0 0.0
    %1419 = vmatprep.subr.mxu0 0.0
    %1420 = vmatpush1.xpose.msra.mxu0 0.0
    %1421 = vmatprep.mubr.f32.mxu0 0.0
    %v1422 = vand.u32 %v1342, 4294901760
    %v1423 = vsub.f32 %v1342, %v1422
    %v1424 = vand.u32 %v1423, 4294901760
    %v1425 = vsub.f32 %v1423, %v1424
    %v1426 = vand.u32 %v1425, 4294901760
    %1427 = vmatmul.mubr.f32.gmra.mrb[0].mxu0 %v1426
    %v1428 = vpop.f32.mrb[0].mxu0
    %v1429 = vadd.f32 0.0, %v1428
    %v1430 = vpop.f32.mrb[0].mxu0
    %1431 = vmatprep.mubr.f32.mxu0 0.0
    %v1432 = vand.u32 %v1345, 4294901760
    %v1433 = vsub.f32 %v1345, %v1432
    %v1434 = vand.u32 %v1433, 4294901760
    %v1435 = vsub.f32 %v1433, %v1434
    %v1436 = vand.u32 %v1435, 4294901760
    %1437 = vmatmul.mubr.f32.gmra.mrb[0].mxu0 %v1436
    %v1438 = vpop.f32.mrb[0].mxu0
    %v1439 = vadd.f32 0.0, %v1438
    %v1440 = vpop.f32.mrb[0].mxu0
    %1441 = vmatprep.mubr.f32.mxu0 0.0
    %v1442 = vand.u32 %v1348, 4294901760
    %v1443 = vsub.f32 %v1348, %v1442
    %v1444 = vand.u32 %v1443, 4294901760
    %v1445 = vsub.f32 %v1443, %v1444
    %v1446 = vand.u32 %v1445, 4294901760
    %1447 = vmatmul.mubr.f32.gmra.mrb[0].mxu0 %v1446
    %v1448 = vpop.f32.mrb[0].mxu0
    %v1449 = vadd.f32 0.0, %v1448
    %v1450 = vpop.f32.mrb[0].mxu0
    %1451 = vmatprep.mubr.f32.mxu0 0.0
    %v1452 = vand.u32 %v1351, 4294901760
    %v1453 = vsub.f32 %v1351, %v1452
    %v1454 = vand.u32 %v1453, 4294901760
    %v1455 = vsub.f32 %v1453, %v1454
    %v1456 = vand.u32 %v1455, 4294901760
    %1457 = vmatmul.mubr.f32.gmra.mrb[0].mxu0 %v1456
    %v1458 = vpop.f32.mrb[0].mxu0
    %v1459 = vadd.f32 0.0, %v1458
    %v1460 = vpop.f32.mrb[0].mxu0
    %1461 = vdwg.mxu0
    %1462 = vmatprep.subr.mxu0 0.0
    %v1463 = vand.u32 %v1342, 4294901760
    %v1464 = vsub.f32 %v1342, %v1463
    %v1465 = vand.u32 %v1464, 4294901760
    %v1466 = vsub.f32 %v1464, %v1465
    %v1467 = vand.u32 %v1466, 4294901760
    %1468 = vmatpush1.xpose.msra.mxu0 %v1467
    %1469 = vmatprep.subr.mxu0 0.0
    %v1470 = vand.u32 %v1345, 4294901760
    %v1471 = vsub.f32 %v1345, %v1470
    %v1472 = vand.u32 %v1471, 4294901760
    %v1473 = vsub.f32 %v1471, %v1472
    %v1474 = vand.u32 %v1473, 4294901760
    %1475 = vmatpush1.xpose.msra.mxu0 %v1474
    %1476 = vmatprep.subr.mxu0 0.0
    %v1477 = vand.u32 %v1348, 4294901760
    %v1478 = vsub.f32 %v1348, %v1477
    %v1479 = vand.u32 %v1478, 4294901760
    %v1480 = vsub.f32 %v1478, %v1479
    %v1481 = vand.u32 %v1480, 4294901760
    %1482 = vmatpush1.xpose.msra.mxu0 %v1481
    %1483 = vmatprep.subr.mxu0 0.0
    %v1484 = vand.u32 %v1351, 4294901760
    %v1485 = vsub.f32 %v1351, %v1484
    %v1486 = vand.u32 %v1485, 4294901760
    %v1487 = vsub.f32 %v1485, %v1486
    %v1488 = vand.u32 %v1487, 4294901760
    %1489 = vmatpush1.xpose.msra.mxu0 %v1488
    %1490 = vmatprep.subr.mxu0 0.0
    %1491 = vmatpush1.xpose.msra.mxu0 0.0
    %1492 = vmatprep.subr.mxu0 0.0
    %1493 = vmatpush1.xpose.msra.mxu0 0.0
    %1494 = vmatprep.subr.mxu0 0.0
    %1495 = vmatpush1.xpose.msra.mxu0 0.0
    %1496 = vmatprep.subr.mxu0 0.0
    %1497 = vmatpush1.xpose.msra.mxu0 0.0
    %1498 = vmatprep.subr.mxu0 0.0
    %1499 = vmatpush1.xpose.msra.mxu0 0.0
    %1500 = vmatprep.subr.mxu0 0.0
    %1501 = vmatpush1.xpose.msra.mxu0 0.0
    %1502 = vmatprep.subr.mxu0 0.0
    %1503 = vmatpush1.xpose.msra.mxu0 0.0
    %1504 = vmatprep.subr.mxu0 0.0
    %1505 = vmatpush1.xpose.msra.mxu0 0.0
    %1506 = vmatprep.subr.mxu0 0.0
    %1507 = vmatpush1.xpose.msra.mxu0 0.0
    %1508 = vmatprep.subr.mxu0 0.0
    %1509 = vmatpush1.xpose.msra.mxu0 0.0
    %1510 = vmatprep.subr.mxu0 0.0
    %1511 = vmatpush1.xpose.msra.mxu0 0.0
    %1512 = vmatprep.subr.mxu0 0.0
    %1513 = vmatpush1.xpose.msra.mxu0 0.0
    %1514 = vmatprep.subr.mxu0 0.0
    %1515 = vmatpush1.xpose.msra.mxu0 0.0
    %1516 = vmatprep.subr.mxu0 0.0
    %1517 = vmatpush1.xpose.msra.mxu0 0.0
    %1518 = vmatprep.subr.mxu0 0.0
    %1519 = vmatpush1.xpose.msra.mxu0 0.0
    %1520 = vmatprep.subr.mxu0 0.0
    %1521 = vmatpush1.xpose.msra.mxu0 0.0
    %1522 = vmatprep.subr.mxu0 0.0
    %1523 = vmatpush1.xpose.msra.mxu0 0.0
    %1524 = vmatprep.subr.mxu0 0.0
    %1525 = vmatpush1.xpose.msra.mxu0 0.0
    %1526 = vmatprep.subr.mxu0 0.0
    %1527 = vmatpush1.xpose.msra.mxu0 0.0
    %1528 = vmatprep.subr.mxu0 0.0
    %1529 = vmatpush1.xpose.msra.mxu0 0.0
    %1530 = vmatprep.subr.mxu0 0.0
    %1531 = vmatpush1.xpose.msra.mxu0 0.0
    %1532 = vmatprep.subr.mxu0 0.0
    %1533 = vmatpush1.xpose.msra.mxu0 0.0
    %1534 = vmatprep.subr.mxu0 0.0
    %1535 = vmatpush1.xpose.msra.mxu0 0.0
    %1536 = vmatprep.subr.mxu0 0.0
    %1537 = vmatpush1.xpose.msra.mxu0 0.0
    %1538 = vmatprep.subr.mxu0 0.0
    %1539 = vmatpush1.xpose.msra.mxu0 0.0
    %1540 = vmatprep.subr.mxu0 0.0
    %1541 = vmatpush1.xpose.msra.mxu0 0.0
    %1542 = vmatprep.subr.mxu0 0.0
    %1543 = vmatpush1.xpose.msra.mxu0 0.0
    %1544 = vmatprep.subr.mxu0 0.0
    %1545 = vmatpush1.xpose.msra.mxu0 0.0
    %1546 = vmatprep.mubr.f32.mxu0 0.0
    %v1547 = vand.u32 %v1342, 4294901760
    %1548 = vmatmul.mubr.f32.gmra.mrb[0].mxu0 %v1547
    %v1549 = vpop.f32.mrb[0].mxu0
    %v1550 = vadd.f32 %v1429, %v1549
    %v1551 = vpop.f32.mrb[0].mxu0
    %1552 = vmatprep.mubr.f32.mxu0 0.0
    %v1553 = vand.u32 %v1345, 4294901760
    %1554 = vmatmul.mubr.f32.gmra.mrb[0].mxu0 %v1553
    %v1555 = vpop.f32.mrb[0].mxu0
    %v1556 = vadd.f32 %v1439, %v1555
    %v1557 = vpop.f32.mrb[0].mxu0
    %1558 = vmatprep.mubr.f32.mxu0 0.0
    %v1559 = vand.u32 %v1348, 4294901760
    %1560 = vmatmul.mubr.f32.gmra.mrb[0].mxu0 %v1559
    %v1561 = vpop.f32.mrb[0].mxu0
    %v1562 = vadd.f32 %v1449, %v1561
    %v1563 = vpop.f32.mrb[0].mxu0
    %1564 = vmatprep.mubr.f32.mxu0 0.0
    %v1565 = vand.u32 %v1351, 4294901760
    %1566 = vmatmul.mubr.f32.gmra.mrb[0].mxu0 %v1565
    %v1567 = vpop.f32.mrb[0].mxu0
    %v1568 = vadd.f32 %v1459, %v1567
    %v1569 = vpop.f32.mrb[0].mxu0
    %1570 = vdwg.mxu0
    %1571 = vmatprep.subr.mxu0 0.0
    %v1572 = vand.u32 %v1342, 4294901760
    %v1573 = vsub.f32 %v1342, %v1572
    %1574 = vmatpush1.xpose.msra.mxu0 %v1573
    %1575 = vmatprep.subr.mxu0 0.0
    %v1576 = vand.u32 %v1345, 4294901760
    %v1577 = vsub.f32 %v1345, %v1576
    %1578 = vmatpush1.xpose.msra.mxu0 %v1577
    %1579 = vmatprep.subr.mxu0 0.0
    %v1580 = vand.u32 %v1348, 4294901760
    %v1581 = vsub.f32 %v1348, %v1580
    %1582 = vmatpush1.xpose.msra.mxu0 %v1581
    %1583 = vmatprep.subr.mxu0 0.0
    %v1584 = vand.u32 %v1351, 4294901760
    %v1585 = vsub.f32 %v1351, %v1584
    %1586 = vmatpush1.xpose.msra.mxu0 %v1585
    %1587 = vmatprep.subr.mxu0 0.0
    %1588 = vmatpush1.xpose.msra.mxu0 0.0
    %1589 = vmatprep.subr.mxu0 0.0
    %1590 = vmatpush1.xpose.msra.mxu0 0.0
    %1591 = vmatprep.subr.mxu0 0.0
    %1592 = vmatpush1.xpose.msra.mxu0 0.0
    %1593 = vmatprep.subr.mxu0 0.0
    %1594 = vmatpush1.xpose.msra.mxu0 0.0
    %1595 = vmatprep.subr.mxu0 0.0
    %1596 = vmatpush1.xpose.msra.mxu0 0.0
    %1597 = vmatprep.subr.mxu0 0.0
    %1598 = vmatpush1.xpose.msra.mxu0 0.0
    %1599 = vmatprep.subr.mxu0 0.0
    %1600 = vmatpush1.xpose.msra.mxu0 0.0
    %1601 = vmatprep.subr.mxu0 0.0
    %1602 = vmatpush1.xpose.msra.mxu0 0.0
    %1603 = vmatprep.subr.mxu0 0.0
    %1604 = vmatpush1.xpose.msra.mxu0 0.0
    %1605 = vmatprep.subr.mxu0 0.0
    %1606 = vmatpush1.xpose.msra.mxu0 0.0
    %1607 = vmatprep.subr.mxu0 0.0
    %1608 = vmatpush1.xpose.msra.mxu0 0.0
    %1609 = vmatprep.subr.mxu0 0.0
    %1610 = vmatpush1.xpose.msra.mxu0 0.0
    %1611 = vmatprep.subr.mxu0 0.0
    %1612 = vmatpush1.xpose.msra.mxu0 0.0
    %1613 = vmatprep.subr.mxu0 0.0
    %1614 = vmatpush1.xpose.msra.mxu0 0.0
    %1615 = vmatprep.subr.mxu0 0.0
    %1616 = vmatpush1.xpose.msra.mxu0 0.0
    %1617 = vmatprep.subr.mxu0 0.0
    %1618 = vmatpush1.xpose.msra.mxu0 0.0
    %1619 = vmatprep.subr.mxu0 0.0
    %1620 = vmatpush1.xpose.msra.mxu0 0.0
    %1621 = vmatprep.subr.mxu0 0.0
    %1622 = vmatpush1.xpose.msra.mxu0 0.0
    %1623 = vmatprep.subr.mxu0 0.0
    %1624 = vmatpush1.xpose.msra.mxu0 0.0
    %1625 = vmatprep.subr.mxu0 0.0
    %1626 = vmatpush1.xpose.msra.mxu0 0.0
    %1627 = vmatprep.subr.mxu0 0.0
    %1628 = vmatpush1.xpose.msra.mxu0 0.0
    %1629 = vmatprep.subr.mxu0 0.0
    %1630 = vmatpush1.xpose.msra.mxu0 0.0
    %1631 = vmatprep.subr.mxu0 0.0
    %1632 = vmatpush1.xpose.msra.mxu0 0.0
    %1633 = vmatprep.subr.mxu0 0.0
    %1634 = vmatpush1.xpose.msra.mxu0 0.0
    %1635 = vmatprep.subr.mxu0 0.0
    %1636 = vmatpush1.xpose.msra.mxu0 0.0
    %1637 = vmatprep.subr.mxu0 0.0
    %1638 = vmatpush1.xpose.msra.mxu0 0.0
    %1639 = vmatprep.subr.mxu0 0.0
    %1640 = vmatpush1.xpose.msra.mxu0 0.0
    %1641 = vmatprep.subr.mxu0 0.0
    %1642 = vmatpush1.xpose.msra.mxu0 0.0
    %1643 = vmatprep.mubr.f32.mxu0 0.0
    %v1644 = vand.u32 %v1342, 4294901760
    %v1645 = vsub.f32 %v1342, %v1644
    %1646 = vmatmul.mubr.f32.gmra.mrb[0].mxu0 %v1645
    %v1647 = vpop.f32.mrb[0].mxu0
    %v1648 = vadd.f32 %v1550, %v1647
    %v1649 = vpop.f32.mrb[0].mxu0
    %1650 = vmatprep.mubr.f32.mxu0 0.0
    %v1651 = vand.u32 %v1345, 4294901760
    %v1652 = vsub.f32 %v1345, %v1651
    %1653 = vmatmul.mubr.f32.gmra.mrb[0].mxu0 %v1652
    %v1654 = vpop.f32.mrb[0].mxu0
    %v1655 = vadd.f32 %v1556, %v1654
    %v1656 = vpop.f32.mrb[0].mxu0
    %1657 = vmatprep.mubr.f32.mxu0 0.0
    %v1658 = vand.u32 %v1348, 4294901760
    %v1659 = vsub.f32 %v1348, %v1658
    %1660 = vmatmul.mubr.f32.gmra.mrb[0].mxu0 %v1659
    %v1661 = vpop.f32.mrb[0].mxu0
    %v1662 = vadd.f32 %v1562, %v1661
    %v1663 = vpop.f32.mrb[0].mxu0
    %1664 = vmatprep.mubr.f32.mxu0 0.0
    %v1665 = vand.u32 %v1351, 4294901760
    %v1666 = vsub.f32 %v1351, %v1665
    %1667 = vmatmul.mubr.f32.gmra.mrb[0].mxu0 %v1666
    %v1668 = vpop.f32.mrb[0].mxu0
    %v1669 = vadd.f32 %v1568, %v1668
    %v1670 = vpop.f32.mrb[0].mxu0
    %1671 = vdwg.mxu0
    %1672 = vmatprep.subr.mxu0 0.0
    %v1673 = vand.u32 %v1342, 4294901760
    %1674 = vmatpush1.xpose.msra.mxu0 %v1673
    %1675 = vmatprep.subr.mxu0 0.0
    %v1676 = vand.u32 %v1345, 4294901760
    %1677 = vmatpush1.xpose.msra.mxu0 %v1676
    %1678 = vmatprep.subr.mxu0 0.0
    %v1679 = vand.u32 %v1348, 4294901760
    %1680 = vmatpush1.xpose.msra.mxu0 %v1679
    %1681 = vmatprep.subr.mxu0 0.0
    %v1682 = vand.u32 %v1351, 4294901760
    %1683 = vmatpush1.xpose.msra.mxu0 %v1682
    %1684 = vmatprep.subr.mxu0 0.0
    %1685 = vmatpush1.xpose.msra.mxu0 0.0
    %1686 = vmatprep.subr.mxu0 0.0
    %1687 = vmatpush1.xpose.msra.mxu0 0.0
    %1688 = vmatprep.subr.mxu0 0.0
    %1689 = vmatpush1.xpose.msra.mxu0 0.0
    %1690 = vmatprep.subr.mxu0 0.0
    %1691 = vmatpush1.xpose.msra.mxu0 0.0
    %1692 = vmatprep.subr.mxu0 0.0
    %1693 = vmatpush1.xpose.msra.mxu0 0.0
    %1694 = vmatprep.subr.mxu0 0.0
    %1695 = vmatpush1.xpose.msra.mxu0 0.0
    %1696 = vmatprep.subr.mxu0 0.0
    %1697 = vmatpush1.xpose.msra.mxu0 0.0
    %1698 = vmatprep.subr.mxu0 0.0
    %1699 = vmatpush1.xpose.msra.mxu0 0.0
    %1700 = vmatprep.subr.mxu0 0.0
    %1701 = vmatpush1.xpose.msra.mxu0 0.0
    %1702 = vmatprep.subr.mxu0 0.0
    %1703 = vmatpush1.xpose.msra.mxu0 0.0
    %1704 = vmatprep.subr.mxu0 0.0
    %1705 = vmatpush1.xpose.msra.mxu0 0.0
    %1706 = vmatprep.subr.mxu0 0.0
    %1707 = vmatpush1.xpose.msra.mxu0 0.0
    %1708 = vmatprep.subr.mxu0 0.0
    %1709 = vmatpush1.xpose.msra.mxu0 0.0
    %1710 = vmatprep.subr.mxu0 0.0
    %1711 = vmatpush1.xpose.msra.mxu0 0.0
    %1712 = vmatprep.subr.mxu0 0.0
    %1713 = vmatpush1.xpose.msra.mxu0 0.0
    %1714 = vmatprep.subr.mxu0 0.0
    %1715 = vmatpush1.xpose.msra.mxu0 0.0
    %1716 = vmatprep.subr.mxu0 0.0
    %1717 = vmatpush1.xpose.msra.mxu0 0.0
    %1718 = vmatprep.subr.mxu0 0.0
    %1719 = vmatpush1.xpose.msra.mxu0 0.0
    %1720 = vmatprep.subr.mxu0 0.0
    %1721 = vmatpush1.xpose.msra.mxu0 0.0
    %1722 = vmatprep.subr.mxu0 0.0
    %1723 = vmatpush1.xpose.msra.mxu0 0.0
    %1724 = vmatprep.subr.mxu0 0.0
    %1725 = vmatpush1.xpose.msra.mxu0 0.0
    %1726 = vmatprep.subr.mxu0 0.0
    %1727 = vmatpush1.xpose.msra.mxu0 0.0
    %1728 = vmatprep.subr.mxu0 0.0
    %1729 = vmatpush1.xpose.msra.mxu0 0.0
    %1730 = vmatprep.subr.mxu0 0.0
    %1731 = vmatpush1.xpose.msra.mxu0 0.0
    %1732 = vmatprep.subr.mxu0 0.0
    %1733 = vmatpush1.xpose.msra.mxu0 0.0
    %1734 = vmatprep.subr.mxu0 0.0
    %1735 = vmatpush1.xpose.msra.mxu0 0.0
    %1736 = vmatprep.subr.mxu0 0.0
    %1737 = vmatpush1.xpose.msra.mxu0 0.0
    %1738 = vmatprep.subr.mxu0 0.0
    %1739 = vmatpush1.xpose.msra.mxu0 0.0
    %1740 = vmatprep.mubr.f32.mxu0 0.0
    %v1741 = vand.u32 %v1342, 4294901760
    %v1742 = vsub.f32 %v1342, %v1741
    %v1743 = vand.u32 %v1742, 4294901760
    %1744 = vmatmul.mubr.f32.gmra.mrb[0].mxu0 %v1743
    %v1745 = vpop.f32.mrb[0].mxu0
    %v1746 = vadd.f32 %v1648, %v1745
    %v1747 = vpop.f32.mrb[0].mxu0
    %1748 = vmatprep.mubr.f32.mxu0 0.0
    %v1749 = vand.u32 %v1345, 4294901760
    %v1750 = vsub.f32 %v1345, %v1749
    %v1751 = vand.u32 %v1750, 4294901760
    %1752 = vmatmul.mubr.f32.gmra.mrb[0].mxu0 %v1751
    %v1753 = vpop.f32.mrb[0].mxu0
    %v1754 = vadd.f32 %v1655, %v1753
    %v1755 = vpop.f32.mrb[0].mxu0
    %1756 = vmatprep.mubr.f32.mxu0 0.0
    %v1757 = vand.u32 %v1348, 4294901760
    %v1758 = vsub.f32 %v1348, %v1757
    %v1759 = vand.u32 %v1758, 4294901760
    %1760 = vmatmul.mubr.f32.gmra.mrb[0].mxu0 %v1759
    %v1761 = vpop.f32.mrb[0].mxu0
    %v1762 = vadd.f32 %v1662, %v1761
    %v1763 = vpop.f32.mrb[0].mxu0
    %1764 = vmatprep.mubr.f32.mxu0 0.0
    %v1765 = vand.u32 %v1351, 4294901760
    %v1766 = vsub.f32 %v1351, %v1765
    %v1767 = vand.u32 %v1766, 4294901760
    %1768 = vmatmul.mubr.f32.gmra.mrb[0].mxu0 %v1767
    %v1769 = vpop.f32.mrb[0].mxu0
    %v1770 = vadd.f32 %v1669, %v1769
    %v1771 = vpop.f32.mrb[0].mxu0
    %1772 = vdwg.mxu0
    %1773 = vmatprep.subr.mxu0 0.0
    %v1774 = vand.u32 %v1342, 4294901760
    %v1775 = vsub.f32 %v1342, %v1774
    %v1776 = vand.u32 %v1775, 4294901760
    %1777 = vmatpush1.xpose.msra.mxu0 %v1776
    %1778 = vmatprep.subr.mxu0 0.0
    %v1779 = vand.u32 %v1345, 4294901760
    %v1780 = vsub.f32 %v1345, %v1779
    %v1781 = vand.u32 %v1780, 4294901760
    %1782 = vmatpush1.xpose.msra.mxu0 %v1781
    %1783 = vmatprep.subr.mxu0 0.0
    %v1784 = vand.u32 %v1348, 4294901760
    %v1785 = vsub.f32 %v1348, %v1784
    %v1786 = vand.u32 %v1785, 4294901760
    %1787 = vmatpush1.xpose.msra.mxu0 %v1786
    %1788 = vmatprep.subr.mxu0 0.0
    %v1789 = vand.u32 %v1351, 4294901760
    %v1790 = vsub.f32 %v1351, %v1789
    %v1791 = vand.u32 %v1790, 4294901760
    %1792 = vmatpush1.xpose.msra.mxu0 %v1791
    %1793 = vmatprep.subr.mxu0 0.0
    %1794 = vmatpush1.xpose.msra.mxu0 0.0
    %1795 = vmatprep.subr.mxu0 0.0
    %1796 = vmatpush1.xpose.msra.mxu0 0.0
    %1797 = vmatprep.subr.mxu0 0.0
    %1798 = vmatpush1.xpose.msra.mxu0 0.0
    %1799 = vmatprep.subr.mxu0 0.0
    %1800 = vmatpush1.xpose.msra.mxu0 0.0
    %1801 = vmatprep.subr.mxu0 0.0
    %1802 = vmatpush1.xpose.msra.mxu0 0.0
    %1803 = vmatprep.subr.mxu0 0.0
    %1804 = vmatpush1.xpose.msra.mxu0 0.0
    %1805 = vmatprep.subr.mxu0 0.0
    %1806 = vmatpush1.xpose.msra.mxu0 0.0
    %1807 = vmatprep.subr.mxu0 0.0
    %1808 = vmatpush1.xpose.msra.mxu0 0.0
    %1809 = vmatprep.subr.mxu0 0.0
    %1810 = vmatpush1.xpose.msra.mxu0 0.0
    %1811 = vmatprep.subr.mxu0 0.0
    %1812 = vmatpush1.xpose.msra.mxu0 0.0
    %1813 = vmatprep.subr.mxu0 0.0
    %1814 = vmatpush1.xpose.msra.mxu0 0.0
    %1815 = vmatprep.subr.mxu0 0.0
    %1816 = vmatpush1.xpose.msra.mxu0 0.0
    %1817 = vmatprep.subr.mxu0 0.0
    %1818 = vmatpush1.xpose.msra.mxu0 0.0
    %1819 = vmatprep.subr.mxu0 0.0
    %1820 = vmatpush1.xpose.msra.mxu0 0.0
    %1821 = vmatprep.subr.mxu0 0.0
    %1822 = vmatpush1.xpose.msra.mxu0 0.0
    %1823 = vmatprep.subr.mxu0 0.0
    %1824 = vmatpush1.xpose.msra.mxu0 0.0
    %1825 = vmatprep.subr.mxu0 0.0
    %1826 = vmatpush1.xpose.msra.mxu0 0.0
    %1827 = vmatprep.subr.mxu0 0.0
    %1828 = vmatpush1.xpose.msra.mxu0 0.0
    %1829 = vmatprep.subr.mxu0 0.0
    %1830 = vmatpush1.xpose.msra.mxu0 0.0
    %1831 = vmatprep.subr.mxu0 0.0
    %1832 = vmatpush1.xpose.msra.mxu0 0.0
    %1833 = vmatprep.subr.mxu0 0.0
    %1834 = vmatpush1.xpose.msra.mxu0 0.0
    %1835 = vmatprep.subr.mxu0 0.0
    %1836 = vmatpush1.xpose.msra.mxu0 0.0
    %1837 = vmatprep.subr.mxu0 0.0
    %1838 = vmatpush1.xpose.msra.mxu0 0.0
    %1839 = vmatprep.subr.mxu0 0.0
    %1840 = vmatpush1.xpose.msra.mxu0 0.0
    %1841 = vmatprep.subr.mxu0 0.0
    %1842 = vmatpush1.xpose.msra.mxu0 0.0
    %1843 = vmatprep.subr.mxu0 0.0
    %1844 = vmatpush1.xpose.msra.mxu0 0.0
    %1845 = vmatprep.subr.mxu0 0.0
    %1846 = vmatpush1.xpose.msra.mxu0 0.0
    %1847 = vmatprep.subr.mxu0 0.0
    %1848 = vmatpush1.xpose.msra.mxu0 0.0
    %1849 = vmatprep.mubr.f32.mxu0 0.0
    %v1850 = vand.u32 %v1342, 4294901760
    %1851 = vmatmul.mubr.f32.gmra.mrb[0].mxu0 %v1850
    %v1852 = vpop.f32.mrb[0].mxu0
    %v1853 = vadd.f32 %v1746, %v1852
    %v1854 = vpop.f32.mrb[0].mxu0
    %1855 = vmatprep.mubr.f32.mxu0 0.0
    %v1856 = vand.u32 %v1345, 4294901760
    %1857 = vmatmul.mubr.f32.gmra.mrb[0].mxu0 %v1856
    %v1858 = vpop.f32.mrb[0].mxu0
    %v1859 = vadd.f32 %v1754, %v1858
    %v1860 = vpop.f32.mrb[0].mxu0
    %1861 = vmatprep.mubr.f32.mxu0 0.0
    %v1862 = vand.u32 %v1348, 4294901760
    %1863 = vmatmul.mubr.f32.gmra.mrb[0].mxu0 %v1862
    %v1864 = vpop.f32.mrb[0].mxu0
    %v1865 = vadd.f32 %v1762, %v1864
    %v1866 = vpop.f32.mrb[0].mxu0
    %1867 = vmatprep.mubr.f32.mxu0 0.0
    %v1868 = vand.u32 %v1351, 4294901760
    %1869 = vmatmul.mubr.f32.gmra.mrb[0].mxu0 %v1868
    %v1870 = vpop.f32.mrb[0].mxu0
    %v1871 = vadd.f32 %v1770, %v1870
    %v1872 = vpop.f32.mrb[0].mxu0
    %1873 = vdwg.mxu0
    %1874 = vmatprep.subr.mxu0 0.0
    %v1875 = vand.u32 %v1342, 4294901760
    %1876 = vmatpush1.xpose.msra.mxu0 %v1875
    %1877 = vmatprep.subr.mxu0 0.0
    %v1878 = vand.u32 %v1345, 4294901760
    %1879 = vmatpush1.xpose.msra.mxu0 %v1878
    %1880 = vmatprep.subr.mxu0 0.0
    %v1881 = vand.u32 %v1348, 4294901760
    %1882 = vmatpush1.xpose.msra.mxu0 %v1881
    %1883 = vmatprep.subr.mxu0 0.0
    %v1884 = vand.u32 %v1351, 4294901760
    %1885 = vmatpush1.xpose.msra.mxu0 %v1884
    %1886 = vmatprep.subr.mxu0 0.0
    %1887 = vmatpush1.xpose.msra.mxu0 0.0
    %1888 = vmatprep.subr.mxu0 0.0
    %1889 = vmatpush1.xpose.msra.mxu0 0.0
    %1890 = vmatprep.subr.mxu0 0.0
    %1891 = vmatpush1.xpose.msra.mxu0 0.0
    %1892 = vmatprep.subr.mxu0 0.0
    %1893 = vmatpush1.xpose.msra.mxu0 0.0
    %1894 = vmatprep.subr.mxu0 0.0
    %1895 = vmatpush1.xpose.msra.mxu0 0.0
    %1896 = vmatprep.subr.mxu0 0.0
    %1897 = vmatpush1.xpose.msra.mxu0 0.0
    %1898 = vmatprep.subr.mxu0 0.0
    %1899 = vmatpush1.xpose.msra.mxu0 0.0
    %1900 = vmatprep.subr.mxu0 0.0
    %1901 = vmatpush1.xpose.msra.mxu0 0.0
    %1902 = vmatprep.subr.mxu0 0.0
    %1903 = vmatpush1.xpose.msra.mxu0 0.0
    %1904 = vmatprep.subr.mxu0 0.0
    %1905 = vmatpush1.xpose.msra.mxu0 0.0
    %1906 = vmatprep.subr.mxu0 0.0
    %1907 = vmatpush1.xpose.msra.mxu0 0.0
    %1908 = vmatprep.subr.mxu0 0.0
    %1909 = vmatpush1.xpose.msra.mxu0 0.0
    %1910 = vmatprep.subr.mxu0 0.0
    %1911 = vmatpush1.xpose.msra.mxu0 0.0
    %1912 = vmatprep.subr.mxu0 0.0
    %1913 = vmatpush1.xpose.msra.mxu0 0.0
    %1914 = vmatprep.subr.mxu0 0.0
    %1915 = vmatpush1.xpose.msra.mxu0 0.0
    %1916 = vmatprep.subr.mxu0 0.0
    %1917 = vmatpush1.xpose.msra.mxu0 0.0
    %1918 = vmatprep.subr.mxu0 0.0
    %1919 = vmatpush1.xpose.msra.mxu0 0.0
    %1920 = vmatprep.subr.mxu0 0.0
    %1921 = vmatpush1.xpose.msra.mxu0 0.0
    %1922 = vmatprep.subr.mxu0 0.0
    %1923 = vmatpush1.xpose.msra.mxu0 0.0
    %1924 = vmatprep.subr.mxu0 0.0
    %1925 = vmatpush1.xpose.msra.mxu0 0.0
    %1926 = vmatprep.subr.mxu0 0.0
    %1927 = vmatpush1.xpose.msra.mxu0 0.0
    %1928 = vmatprep.subr.mxu0 0.0
    %1929 = vmatpush1.xpose.msra.mxu0 0.0
    %1930 = vmatprep.subr.mxu0 0.0
    %1931 = vmatpush1.xpose.msra.mxu0 0.0
    %1932 = vmatprep.subr.mxu0 0.0
    %1933 = vmatpush1.xpose.msra.mxu0 0.0
    %1934 = vmatprep.subr.mxu0 0.0
    %1935 = vmatpush1.xpose.msra.mxu0 0.0
    %1936 = vmatprep.subr.mxu0 0.0
    %1937 = vmatpush1.xpose.msra.mxu0 0.0
    %1938 = vmatprep.subr.mxu0 0.0
    %1939 = vmatpush1.xpose.msra.mxu0 0.0
    %1940 = vmatprep.subr.mxu0 0.0
    %1941 = vmatpush1.xpose.msra.mxu0 0.0
    %1942 = vmatprep.mubr.f32.mxu0 0.0
    %v1943 = vand.u32 %v1342, 4294901760
    %1944 = vmatmul.mubr.f32.gmra.mrb[0].mxu0 %v1943
    %v1945 = vpop.f32.mrb[0].mxu0
    %v1946 = vadd.f32 %v1853, %v1945
    %v1947 = vpop.f32.mrb[0].mxu0
    %1948 = vmatprep.mubr.f32.mxu0 0.0
    %v1949 = vand.u32 %v1345, 4294901760
    %1950 = vmatmul.mubr.f32.gmra.mrb[0].mxu0 %v1949
    %v1951 = vpop.f32.mrb[0].mxu0
    %v1952 = vadd.f32 %v1859, %v1951
    %v1953 = vpop.f32.mrb[0].mxu0
    %1954 = vmatprep.mubr.f32.mxu0 0.0
    %v1955 = vand.u32 %v1348, 4294901760
    %1956 = vmatmul.mubr.f32.gmra.mrb[0].mxu0 %v1955
    %v1957 = vpop.f32.mrb[0].mxu0
    %v1958 = vadd.f32 %v1865, %v1957
    %v1959 = vpop.f32.mrb[0].mxu0
    %1960 = vmatprep.mubr.f32.mxu0 0.0
    %v1961 = vand.u32 %v1351, 4294901760
    %1962 = vmatmul.mubr.f32.gmra.mrb[0].mxu0 %v1961
    %v1963 = vpop.f32.mrb[0].mxu0
    %v1964 = vadd.f32 %v1871, %v1963
    %v1965 = vpop.f32.mrb[0].mxu0
    %1966 = vdwg.mxu0
    %v1968 = vsel %vm88, %v68, 0
    %v1971 = vsel %vm88, %v69, 0
    %v1974 = vsel %vm88, %v70, 0
    %v1977 = vsel %vm88, %v71, 0
    %1979 = vmatprep.subr.mxu0 0.0
    %v1980 = vand.u32 %v1968, 4294901760
    %1981 = vmatpush1.xpose.msra.mxu0 %v1980
    %1982 = vmatprep.subr.mxu0 0.0
    %v1983 = vand.u32 %v1971, 4294901760
    %1984 = vmatpush1.xpose.msra.mxu0 %v1983
    %1985 = vmatprep.subr.mxu0 0.0
    %v1986 = vand.u32 %v1974, 4294901760
    %1987 = vmatpush1.xpose.msra.mxu0 %v1986
    %1988 = vmatprep.subr.mxu0 0.0
    %v1989 = vand.u32 %v1977, 4294901760
    %1990 = vmatpush1.xpose.msra.mxu0 %v1989
    %1991 = vmatprep.subr.mxu0 0.0
    %1992 = vmatpush1.xpose.msra.mxu0 0.0
    %1993 = vmatprep.subr.mxu0 0.0
    %1994 = vmatpush1.xpose.msra.mxu0 0.0
    %1995 = vmatprep.subr.mxu0 0.0
    %1996 = vmatpush1.xpose.msra.mxu0 0.0
    %1997 = vmatprep.subr.mxu0 0.0
    %1998 = vmatpush1.xpose.msra.mxu0 0.0
    %1999 = vmatprep.subr.mxu0 0.0
    %2000 = vmatpush1.xpose.msra.mxu0 0.0
    %2001 = vmatprep.subr.mxu0 0.0
    %2002 = vmatpush1.xpose.msra.mxu0 0.0
    %2003 = vmatprep.subr.mxu0 0.0
    %2004 = vmatpush1.xpose.msra.mxu0 0.0
    %2005 = vmatprep.subr.mxu0 0.0
    %2006 = vmatpush1.xpose.msra.mxu0 0.0
    %2007 = vmatprep.subr.mxu0 0.0
    %2008 = vmatpush1.xpose.msra.mxu0 0.0
    %2009 = vmatprep.subr.mxu0 0.0
    %2010 = vmatpush1.xpose.msra.mxu0 0.0
    %2011 = vmatprep.subr.mxu0 0.0
    %2012 = vmatpush1.xpose.msra.mxu0 0.0
    %2013 = vmatprep.subr.mxu0 0.0
    %2014 = vmatpush1.xpose.msra.mxu0 0.0
    %2015 = vmatprep.subr.mxu0 0.0
    %2016 = vmatpush1.xpose.msra.mxu0 0.0
    %2017 = vmatprep.subr.mxu0 0.0
    %2018 = vmatpush1.xpose.msra.mxu0 0.0
    %2019 = vmatprep.subr.mxu0 0.0
    %2020 = vmatpush1.xpose.msra.mxu0 0.0
    %2021 = vmatprep.subr.mxu0 0.0
    %2022 = vmatpush1.xpose.msra.mxu0 0.0
    %2023 = vmatprep.subr.mxu0 0.0
    %2024 = vmatpush1.xpose.msra.mxu0 0.0
    %2025 = vmatprep.subr.mxu0 0.0
    %2026 = vmatpush1.xpose.msra.mxu0 0.0
    %2027 = vmatprep.subr.mxu0 0.0
    %2028 = vmatpush1.xpose.msra.mxu0 0.0
    %2029 = vmatprep.subr.mxu0 0.0
    %2030 = vmatpush1.xpose.msra.mxu0 0.0
    %2031 = vmatprep.subr.mxu0 0.0
    %2032 = vmatpush1.xpose.msra.mxu0 0.0
    %2033 = vmatprep.subr.mxu0 0.0
    %2034 = vmatpush1.xpose.msra.mxu0 0.0
    %2035 = vmatprep.subr.mxu0 0.0
    %2036 = vmatpush1.xpose.msra.mxu0 0.0
    %2037 = vmatprep.subr.mxu0 0.0
    %2038 = vmatpush1.xpose.msra.mxu0 0.0
    %2039 = vmatprep.subr.mxu0 0.0
    %2040 = vmatpush1.xpose.msra.mxu0 0.0
    %2041 = vmatprep.subr.mxu0 0.0
    %2042 = vmatpush1.xpose.msra.mxu0 0.0
    %2043 = vmatprep.subr.mxu0 0.0
    %2044 = vmatpush1.xpose.msra.mxu0 0.0
    %2045 = vmatprep.subr.mxu0 0.0
    %2046 = vmatpush1.xpose.msra.mxu0 0.0
    %2047 = vmatprep.mubr.f32.mxu0 0.0
    %v2048 = vand.u32 %v1968, 4294901760
    %v2049 = vsub.f32 %v1968, %v2048
    %v2050 = vand.u32 %v2049, 4294901760
    %v2051 = vsub.f32 %v2049, %v2050
    %v2052 = vand.u32 %v2051, 4294901760
    %2053 = vmatmul.mubr.f32.gmra.mrb[0].mxu0 %v2052
    %v2054 = vpop.f32.mrb[0].mxu0
    %v2055 = vadd.f32 0.0, %v2054
    %v2056 = vpop.f32.mrb[0].mxu0
    %2057 = vmatprep.mubr.f32.mxu0 0.0
    %v2058 = vand.u32 %v1971, 4294901760
    %v2059 = vsub.f32 %v1971, %v2058
    %v2060 = vand.u32 %v2059, 4294901760
    %v2061 = vsub.f32 %v2059, %v2060
    %v2062 = vand.u32 %v2061, 4294901760
    %2063 = vmatmul.mubr.f32.gmra.mrb[0].mxu0 %v2062
    %v2064 = vpop.f32.mrb[0].mxu0
    %v2065 = vadd.f32 0.0, %v2064
    %v2066 = vpop.f32.mrb[0].mxu0
    %2067 = vmatprep.mubr.f32.mxu0 0.0
    %v2068 = vand.u32 %v1974, 4294901760
    %v2069 = vsub.f32 %v1974, %v2068
    %v2070 = vand.u32 %v2069, 4294901760
    %v2071 = vsub.f32 %v2069, %v2070
    %v2072 = vand.u32 %v2071, 4294901760
    %2073 = vmatmul.mubr.f32.gmra.mrb[0].mxu0 %v2072
    %v2074 = vpop.f32.mrb[0].mxu0
    %v2075 = vadd.f32 0.0, %v2074
    %v2076 = vpop.f32.mrb[0].mxu0
    %2077 = vmatprep.mubr.f32.mxu0 0.0
    %v2078 = vand.u32 %v1977, 4294901760
    %v2079 = vsub.f32 %v1977, %v2078
    %v2080 = vand.u32 %v2079, 4294901760
    %v2081 = vsub.f32 %v2079, %v2080
    %v2082 = vand.u32 %v2081, 4294901760
    %2083 = vmatmul.mubr.f32.gmra.mrb[0].mxu0 %v2082
    %v2084 = vpop.f32.mrb[0].mxu0
    %v2085 = vadd.f32 0.0, %v2084
    %v2086 = vpop.f32.mrb[0].mxu0
    %2087 = vdwg.mxu0
    %2088 = vmatprep.subr.mxu0 0.0
    %v2089 = vand.u32 %v1968, 4294901760
    %v2090 = vsub.f32 %v1968, %v2089
    %v2091 = vand.u32 %v2090, 4294901760
    %v2092 = vsub.f32 %v2090, %v2091
    %v2093 = vand.u32 %v2092, 4294901760
    %2094 = vmatpush1.xpose.msra.mxu0 %v2093
    %2095 = vmatprep.subr.mxu0 0.0
    %v2096 = vand.u32 %v1971, 4294901760
    %v2097 = vsub.f32 %v1971, %v2096
    %v2098 = vand.u32 %v2097, 4294901760
    %v2099 = vsub.f32 %v2097, %v2098
    %v2100 = vand.u32 %v2099, 4294901760
    %2101 = vmatpush1.xpose.msra.mxu0 %v2100
    %2102 = vmatprep.subr.mxu0 0.0
    %v2103 = vand.u32 %v1974, 4294901760
    %v2104 = vsub.f32 %v1974, %v2103
    %v2105 = vand.u32 %v2104, 4294901760
    %v2106 = vsub.f32 %v2104, %v2105
    %v2107 = vand.u32 %v2106, 4294901760
    %2108 = vmatpush1.xpose.msra.mxu0 %v2107
    %2109 = vmatprep.subr.mxu0 0.0
    %v2110 = vand.u32 %v1977, 4294901760
    %v2111 = vsub.f32 %v1977, %v2110
    %v2112 = vand.u32 %v2111, 4294901760
    %v2113 = vsub.f32 %v2111, %v2112
    %v2114 = vand.u32 %v2113, 4294901760
    %2115 = vmatpush1.xpose.msra.mxu0 %v2114
    %2116 = vmatprep.subr.mxu0 0.0
    %2117 = vmatpush1.xpose.msra.mxu0 0.0
    %2118 = vmatprep.subr.mxu0 0.0
    %2119 = vmatpush1.xpose.msra.mxu0 0.0
    %2120 = vmatprep.subr.mxu0 0.0
    %2121 = vmatpush1.xpose.msra.mxu0 0.0
    %2122 = vmatprep.subr.mxu0 0.0
    %2123 = vmatpush1.xpose.msra.mxu0 0.0
    %2124 = vmatprep.subr.mxu0 0.0
    %2125 = vmatpush1.xpose.msra.mxu0 0.0
    %2126 = vmatprep.subr.mxu0 0.0
    %2127 = vmatpush1.xpose.msra.mxu0 0.0
    %2128 = vmatprep.subr.mxu0 0.0
    %2129 = vmatpush1.xpose.msra.mxu0 0.0
    %2130 = vmatprep.subr.mxu0 0.0
    %2131 = vmatpush1.xpose.msra.mxu0 0.0
    %2132 = vmatprep.subr.mxu0 0.0
    %2133 = vmatpush1.xpose.msra.mxu0 0.0
    %2134 = vmatprep.subr.mxu0 0.0
    %2135 = vmatpush1.xpose.msra.mxu0 0.0
    %2136 = vmatprep.subr.mxu0 0.0
    %2137 = vmatpush1.xpose.msra.mxu0 0.0
    %2138 = vmatprep.subr.mxu0 0.0
    %2139 = vmatpush1.xpose.msra.mxu0 0.0
    %2140 = vmatprep.subr.mxu0 0.0
    %2141 = vmatpush1.xpose.msra.mxu0 0.0
    %2142 = vmatprep.subr.mxu0 0.0
    %2143 = vmatpush1.xpose.msra.mxu0 0.0
    %2144 = vmatprep.subr.mxu0 0.0
    %2145 = vmatpush1.xpose.msra.mxu0 0.0
    %2146 = vmatprep.subr.mxu0 0.0
    %2147 = vmatpush1.xpose.msra.mxu0 0.0
    %2148 = vmatprep.subr.mxu0 0.0
    %2149 = vmatpush1.xpose.msra.mxu0 0.0
    %2150 = vmatprep.subr.mxu0 0.0
    %2151 = vmatpush1.xpose.msra.mxu0 0.0
    %2152 = vmatprep.subr.mxu0 0.0
    %2153 = vmatpush1.xpose.msra.mxu0 0.0
    %2154 = vmatprep.subr.mxu0 0.0
    %2155 = vmatpush1.xpose.msra.mxu0 0.0
    %2156 = vmatprep.subr.mxu0 0.0
    %2157 = vmatpush1.xpose.msra.mxu0 0.0
    %2158 = vmatprep.subr.mxu0 0.0
    %2159 = vmatpush1.xpose.msra.mxu0 0.0
    %2160 = vmatprep.subr.mxu0 0.0
    %2161 = vmatpush1.xpose.msra.mxu0 0.0
    %2162 = vmatprep.subr.mxu0 0.0
    %2163 = vmatpush1.xpose.msra.mxu0 0.0
    %2164 = vmatprep.subr.mxu0 0.0
    %2165 = vmatpush1.xpose.msra.mxu0 0.0
    %2166 = vmatprep.subr.mxu0 0.0
    %2167 = vmatpush1.xpose.msra.mxu0 0.0
    %2168 = vmatprep.subr.mxu0 0.0
    %2169 = vmatpush1.xpose.msra.mxu0 0.0
    %2170 = vmatprep.subr.mxu0 0.0
    %2171 = vmatpush1.xpose.msra.mxu0 0.0
    %2172 = vmatprep.mubr.f32.mxu0 0.0
    %v2173 = vand.u32 %v1968, 4294901760
    %2174 = vmatmul.mubr.f32.gmra.mrb[0].mxu0 %v2173
    %v2175 = vpop.f32.mrb[0].mxu0
    %v2176 = vadd.f32 %v2055, %v2175
    %v2177 = vpop.f32.mrb[0].mxu0
    %2178 = vmatprep.mubr.f32.mxu0 0.0
    %v2179 = vand.u32 %v1971, 4294901760
    %2180 = vmatmul.mubr.f32.gmra.mrb[0].mxu0 %v2179
    %v2181 = vpop.f32.mrb[0].mxu0
    %v2182 = vadd.f32 %v2065, %v2181
    %v2183 = vpop.f32.mrb[0].mxu0
    %2184 = vmatprep.mubr.f32.mxu0 0.0
    %v2185 = vand.u32 %v1974, 4294901760
    %2186 = vmatmul.mubr.f32.gmra.mrb[0].mxu0 %v2185
    %v2187 = vpop.f32.mrb[0].mxu0
    %v2188 = vadd.f32 %v2075, %v2187
    %v2189 = vpop.f32.mrb[0].mxu0
    %2190 = vmatprep.mubr.f32.mxu0 0.0
    %v2191 = vand.u32 %v1977, 4294901760
    %2192 = vmatmul.mubr.f32.gmra.mrb[0].mxu0 %v2191
    %v2193 = vpop.f32.mrb[0].mxu0
    %v2194 = vadd.f32 %v2085, %v2193
    %v2195 = vpop.f32.mrb[0].mxu0
    %2196 = vdwg.mxu0
    %2197 = vmatprep.subr.mxu0 0.0
    %v2198 = vand.u32 %v1968, 4294901760
    %v2199 = vsub.f32 %v1968, %v2198
    %2200 = vmatpush1.xpose.msra.mxu0 %v2199
    %2201 = vmatprep.subr.mxu0 0.0
    %v2202 = vand.u32 %v1971, 4294901760
    %v2203 = vsub.f32 %v1971, %v2202
    %2204 = vmatpush1.xpose.msra.mxu0 %v2203
    %2205 = vmatprep.subr.mxu0 0.0
    %v2206 = vand.u32 %v1974, 4294901760
    %v2207 = vsub.f32 %v1974, %v2206
    %2208 = vmatpush1.xpose.msra.mxu0 %v2207
    %2209 = vmatprep.subr.mxu0 0.0
    %v2210 = vand.u32 %v1977, 4294901760
    %v2211 = vsub.f32 %v1977, %v2210
    %2212 = vmatpush1.xpose.msra.mxu0 %v2211
    %2213 = vmatprep.subr.mxu0 0.0
    %2214 = vmatpush1.xpose.msra.mxu0 0.0
    %2215 = vmatprep.subr.mxu0 0.0
    %2216 = vmatpush1.xpose.msra.mxu0 0.0
    %2217 = vmatprep.subr.mxu0 0.0
    %2218 = vmatpush1.xpose.msra.mxu0 0.0
    %2219 = vmatprep.subr.mxu0 0.0
    %2220 = vmatpush1.xpose.msra.mxu0 0.0
    %2221 = vmatprep.subr.mxu0 0.0
    %2222 = vmatpush1.xpose.msra.mxu0 0.0
    %2223 = vmatprep.subr.mxu0 0.0
    %2224 = vmatpush1.xpose.msra.mxu0 0.0
    %2225 = vmatprep.subr.mxu0 0.0
    %2226 = vmatpush1.xpose.msra.mxu0 0.0
    %2227 = vmatprep.subr.mxu0 0.0
    %2228 = vmatpush1.xpose.msra.mxu0 0.0
    %2229 = vmatprep.subr.mxu0 0.0
    %2230 = vmatpush1.xpose.msra.mxu0 0.0
    %2231 = vmatprep.subr.mxu0 0.0
    %2232 = vmatpush1.xpose.msra.mxu0 0.0
    %2233 = vmatprep.subr.mxu0 0.0
    %2234 = vmatpush1.xpose.msra.mxu0 0.0
    %2235 = vmatprep.subr.mxu0 0.0
    %2236 = vmatpush1.xpose.msra.mxu0 0.0
    %2237 = vmatprep.subr.mxu0 0.0
    %2238 = vmatpush1.xpose.msra.mxu0 0.0
    %2239 = vmatprep.subr.mxu0 0.0
    %2240 = vmatpush1.xpose.msra.mxu0 0.0
    %2241 = vmatprep.subr.mxu0 0.0
    %2242 = vmatpush1.xpose.msra.mxu0 0.0
    %2243 = vmatprep.subr.mxu0 0.0
    %2244 = vmatpush1.xpose.msra.mxu0 0.0
    %2245 = vmatprep.subr.mxu0 0.0
    %2246 = vmatpush1.xpose.msra.mxu0 0.0
    %2247 = vmatprep.subr.mxu0 0.0
    %2248 = vmatpush1.xpose.msra.mxu0 0.0
    %2249 = vmatprep.subr.mxu0 0.0
    %2250 = vmatpush1.xpose.msra.mxu0 0.0
    %2251 = vmatprep.subr.mxu0 0.0
    %2252 = vmatpush1.xpose.msra.mxu0 0.0
    %2253 = vmatprep.subr.mxu0 0.0
    %2254 = vmatpush1.xpose.msra.mxu0 0.0
    %2255 = vmatprep.subr.mxu0 0.0
    %2256 = vmatpush1.xpose.msra.mxu0 0.0
    %2257 = vmatprep.subr.mxu0 0.0
    %2258 = vmatpush1.xpose.msra.mxu0 0.0
    %2259 = vmatprep.subr.mxu0 0.0
    %2260 = vmatpush1.xpose.msra.mxu0 0.0
    %2261 = vmatprep.subr.mxu0 0.0
    %2262 = vmatpush1.xpose.msra.mxu0 0.0
    %2263 = vmatprep.subr.mxu0 0.0
    %2264 = vmatpush1.xpose.msra.mxu0 0.0
    %2265 = vmatprep.subr.mxu0 0.0
    %2266 = vmatpush1.xpose.msra.mxu0 0.0
    %2267 = vmatprep.subr.mxu0 0.0
    %2268 = vmatpush1.xpose.msra.mxu0 0.0
    %2269 = vmatprep.mubr.f32.mxu0 0.0
    %v2270 = vand.u32 %v1968, 4294901760
    %v2271 = vsub.f32 %v1968, %v2270
    %2272 = vmatmul.mubr.f32.gmra.mrb[0].mxu0 %v2271
    %v2273 = vpop.f32.mrb[0].mxu0
    %v2274 = vadd.f32 %v2176, %v2273
    %v2275 = vpop.f32.mrb[0].mxu0
    %2276 = vmatprep.mubr.f32.mxu0 0.0
    %v2277 = vand.u32 %v1971, 4294901760
    %v2278 = vsub.f32 %v1971, %v2277
    %2279 = vmatmul.mubr.f32.gmra.mrb[0].mxu0 %v2278
    %v2280 = vpop.f32.mrb[0].mxu0
    %v2281 = vadd.f32 %v2182, %v2280
    %v2282 = vpop.f32.mrb[0].mxu0
    %2283 = vmatprep.mubr.f32.mxu0 0.0
    %v2284 = vand.u32 %v1974, 4294901760
    %v2285 = vsub.f32 %v1974, %v2284
    %2286 = vmatmul.mubr.f32.gmra.mrb[0].mxu0 %v2285
    %v2287 = vpop.f32.mrb[0].mxu0
    %v2288 = vadd.f32 %v2188, %v2287
    %v2289 = vpop.f32.mrb[0].mxu0
    %2290 = vmatprep.mubr.f32.mxu0 0.0
    %v2291 = vand.u32 %v1977, 4294901760
    %v2292 = vsub.f32 %v1977, %v2291
    %2293 = vmatmul.mubr.f32.gmra.mrb[0].mxu0 %v2292
    %v2294 = vpop.f32.mrb[0].mxu0
    %v2295 = vadd.f32 %v2194, %v2294
    %v2296 = vpop.f32.mrb[0].mxu0
    %2297 = vdwg.mxu0
    %2298 = vmatprep.subr.mxu0 0.0
    %v2299 = vand.u32 %v1968, 4294901760
    %2300 = vmatpush1.xpose.msra.mxu0 %v2299
    %2301 = vmatprep.subr.mxu0 0.0
    %v2302 = vand.u32 %v1971, 4294901760
    %2303 = vmatpush1.xpose.msra.mxu0 %v2302
    %2304 = vmatprep.subr.mxu0 0.0
    %v2305 = vand.u32 %v1974, 4294901760
    %2306 = vmatpush1.xpose.msra.mxu0 %v2305
    %2307 = vmatprep.subr.mxu0 0.0
    %v2308 = vand.u32 %v1977, 4294901760
    %2309 = vmatpush1.xpose.msra.mxu0 %v2308
    %2310 = vmatprep.subr.mxu0 0.0
    %2311 = vmatpush1.xpose.msra.mxu0 0.0
    %2312 = vmatprep.subr.mxu0 0.0
    %2313 = vmatpush1.xpose.msra.mxu0 0.0
    %2314 = vmatprep.subr.mxu0 0.0
    %2315 = vmatpush1.xpose.msra.mxu0 0.0
    %2316 = vmatprep.subr.mxu0 0.0
    %2317 = vmatpush1.xpose.msra.mxu0 0.0
    %2318 = vmatprep.subr.mxu0 0.0
    %2319 = vmatpush1.xpose.msra.mxu0 0.0
    %2320 = vmatprep.subr.mxu0 0.0
    %2321 = vmatpush1.xpose.msra.mxu0 0.0
    %2322 = vmatprep.subr.mxu0 0.0
    %2323 = vmatpush1.xpose.msra.mxu0 0.0
    %2324 = vmatprep.subr.mxu0 0.0
    %2325 = vmatpush1.xpose.msra.mxu0 0.0
    %2326 = vmatprep.subr.mxu0 0.0
    %2327 = vmatpush1.xpose.msra.mxu0 0.0
    %2328 = vmatprep.subr.mxu0 0.0
    %2329 = vmatpush1.xpose.msra.mxu0 0.0
    %2330 = vmatprep.subr.mxu0 0.0
    %2331 = vmatpush1.xpose.msra.mxu0 0.0
    %2332 = vmatprep.subr.mxu0 0.0
    %2333 = vmatpush1.xpose.msra.mxu0 0.0
    %2334 = vmatprep.subr.mxu0 0.0
    %2335 = vmatpush1.xpose.msra.mxu0 0.0
    %2336 = vmatprep.subr.mxu0 0.0
    %2337 = vmatpush1.xpose.msra.mxu0 0.0
    %2338 = vmatprep.subr.mxu0 0.0
    %2339 = vmatpush1.xpose.msra.mxu0 0.0
    %2340 = vmatprep.subr.mxu0 0.0
    %2341 = vmatpush1.xpose.msra.mxu0 0.0
    %2342 = vmatprep.subr.mxu0 0.0
    %2343 = vmatpush1.xpose.msra.mxu0 0.0
    %2344 = vmatprep.subr.mxu0 0.0
    %2345 = vmatpush1.xpose.msra.mxu0 0.0
    %2346 = vmatprep.subr.mxu0 0.0
    %2347 = vmatpush1.xpose.msra.mxu0 0.0
    %2348 = vmatprep.subr.mxu0 0.0
    %2349 = vmatpush1.xpose.msra.mxu0 0.0
    %2350 = vmatprep.subr.mxu0 0.0
    %2351 = vmatpush1.xpose.msra.mxu0 0.0
    %2352 = vmatprep.subr.mxu0 0.0
    %2353 = vmatpush1.xpose.msra.mxu0 0.0
    %2354 = vmatprep.subr.mxu0 0.0
    %2355 = vmatpush1.xpose.msra.mxu0 0.0
    %2356 = vmatprep.subr.mxu0 0.0
    %2357 = vmatpush1.xpose.msra.mxu0 0.0
    %2358 = vmatprep.subr.mxu0 0.0
    %2359 = vmatpush1.xpose.msra.mxu0 0.0
    %2360 = vmatprep.subr.mxu0 0.0
    %2361 = vmatpush1.xpose.msra.mxu0 0.0
    %2362 = vmatprep.subr.mxu0 0.0
    %2363 = vmatpush1.xpose.msra.mxu0 0.0
    %2364 = vmatprep.subr.mxu0 0.0
    %2365 = vmatpush1.xpose.msra.mxu0 0.0
    %2366 = vmatprep.mubr.f32.mxu0 0.0
    %v2367 = vand.u32 %v1968, 4294901760
    %v2368 = vsub.f32 %v1968, %v2367
    %v2369 = vand.u32 %v2368, 4294901760
    %2370 = vmatmul.mubr.f32.gmra.mrb[0].mxu0 %v2369
    %v2371 = vpop.f32.mrb[0].mxu0
    %v2372 = vadd.f32 %v2274, %v2371
    %v2373 = vpop.f32.mrb[0].mxu0
    %2374 = vmatprep.mubr.f32.mxu0 0.0
    %v2375 = vand.u32 %v1971, 4294901760
    %v2376 = vsub.f32 %v1971, %v2375
    %v2377 = vand.u32 %v2376, 4294901760
    %2378 = vmatmul.mubr.f32.gmra.mrb[0].mxu0 %v2377
    %v2379 = vpop.f32.mrb[0].mxu0
    %v2380 = vadd.f32 %v2281, %v2379
    %v2381 = vpop.f32.mrb[0].mxu0
    %2382 = vmatprep.mubr.f32.mxu0 0.0
    %v2383 = vand.u32 %v1974, 4294901760
    %v2384 = vsub.f32 %v1974, %v2383
    %v2385 = vand.u32 %v2384, 4294901760
    %2386 = vmatmul.mubr.f32.gmra.mrb[0].mxu0 %v2385
    %v2387 = vpop.f32.mrb[0].mxu0
    %v2388 = vadd.f32 %v2288, %v2387
    %v2389 = vpop.f32.mrb[0].mxu0
    %2390 = vmatprep.mubr.f32.mxu0 0.0
    %v2391 = vand.u32 %v1977, 4294901760
    %v2392 = vsub.f32 %v1977, %v2391
    %v2393 = vand.u32 %v2392, 4294901760
    %2394 = vmatmul.mubr.f32.gmra.mrb[0].mxu0 %v2393
    %v2395 = vpop.f32.mrb[0].mxu0
    %v2396 = vadd.f32 %v2295, %v2395
    %v2397 = vpop.f32.mrb[0].mxu0
    %2398 = vdwg.mxu0
    %2399 = vmatprep.subr.mxu0 0.0
    %v2400 = vand.u32 %v1968, 4294901760
    %v2401 = vsub.f32 %v1968, %v2400
    %v2402 = vand.u32 %v2401, 4294901760
    %2403 = vmatpush1.xpose.msra.mxu0 %v2402
    %2404 = vmatprep.subr.mxu0 0.0
    %v2405 = vand.u32 %v1971, 4294901760
    %v2406 = vsub.f32 %v1971, %v2405
    %v2407 = vand.u32 %v2406, 4294901760
    %2408 = vmatpush1.xpose.msra.mxu0 %v2407
    %2409 = vmatprep.subr.mxu0 0.0
    %v2410 = vand.u32 %v1974, 4294901760
    %v2411 = vsub.f32 %v1974, %v2410
    %v2412 = vand.u32 %v2411, 4294901760
    %2413 = vmatpush1.xpose.msra.mxu0 %v2412
    %2414 = vmatprep.subr.mxu0 0.0
    %v2415 = vand.u32 %v1977, 4294901760
    %v2416 = vsub.f32 %v1977, %v2415
    %v2417 = vand.u32 %v2416, 4294901760
    %2418 = vmatpush1.xpose.msra.mxu0 %v2417
    %2419 = vmatprep.subr.mxu0 0.0
    %2420 = vmatpush1.xpose.msra.mxu0 0.0
    %2421 = vmatprep.subr.mxu0 0.0
    %2422 = vmatpush1.xpose.msra.mxu0 0.0
    %2423 = vmatprep.subr.mxu0 0.0
    %2424 = vmatpush1.xpose.msra.mxu0 0.0
    %2425 = vmatprep.subr.mxu0 0.0
    %2426 = vmatpush1.xpose.msra.mxu0 0.0
    %2427 = vmatprep.subr.mxu0 0.0
    %2428 = vmatpush1.xpose.msra.mxu0 0.0
    %2429 = vmatprep.subr.mxu0 0.0
    %2430 = vmatpush1.xpose.msra.mxu0 0.0
    %2431 = vmatprep.subr.mxu0 0.0
    %2432 = vmatpush1.xpose.msra.mxu0 0.0
    %2433 = vmatprep.subr.mxu0 0.0
    %2434 = vmatpush1.xpose.msra.mxu0 0.0
    %2435 = vmatprep.subr.mxu0 0.0
    %2436 = vmatpush1.xpose.msra.mxu0 0.0
    %2437 = vmatprep.subr.mxu0 0.0
    %2438 = vmatpush1.xpose.msra.mxu0 0.0
    %2439 = vmatprep.subr.mxu0 0.0
    %2440 = vmatpush1.xpose.msra.mxu0 0.0
    %2441 = vmatprep.subr.mxu0 0.0
    %2442 = vmatpush1.xpose.msra.mxu0 0.0
    %2443 = vmatprep.subr.mxu0 0.0
    %2444 = vmatpush1.xpose.msra.mxu0 0.0
    %2445 = vmatprep.subr.mxu0 0.0
    %2446 = vmatpush1.xpose.msra.mxu0 0.0
    %2447 = vmatprep.subr.mxu0 0.0
    %2448 = vmatpush1.xpose.msra.mxu0 0.0
    %2449 = vmatprep.subr.mxu0 0.0
    %2450 = vmatpush1.xpose.msra.mxu0 0.0
    %2451 = vmatprep.subr.mxu0 0.0
    %2452 = vmatpush1.xpose.msra.mxu0 0.0
    %2453 = vmatprep.subr.mxu0 0.0
    %2454 = vmatpush1.xpose.msra.mxu0 0.0
    %2455 = vmatprep.subr.mxu0 0.0
    %2456 = vmatpush1.xpose.msra.mxu0 0.0
    %2457 = vmatprep.subr.mxu0 0.0
    %2458 = vmatpush1.xpose.msra.mxu0 0.0
    %2459 = vmatprep.subr.mxu0 0.0
    %2460 = vmatpush1.xpose.msra.mxu0 0.0
    %2461 = vmatprep.subr.mxu0 0.0
    %2462 = vmatpush1.xpose.msra.mxu0 0.0
    %2463 = vmatprep.subr.mxu0 0.0
    %2464 = vmatpush1.xpose.msra.mxu0 0.0
    %2465 = vmatprep.subr.mxu0 0.0
    %2466 = vmatpush1.xpose.msra.mxu0 0.0
    %2467 = vmatprep.subr.mxu0 0.0
    %2468 = vmatpush1.xpose.msra.mxu0 0.0
    %2469 = vmatprep.subr.mxu0 0.0
    %2470 = vmatpush1.xpose.msra.mxu0 0.0
    %2471 = vmatprep.subr.mxu0 0.0
    %2472 = vmatpush1.xpose.msra.mxu0 0.0
    %2473 = vmatprep.subr.mxu0 0.0
    %2474 = vmatpush1.xpose.msra.mxu0 0.0
    %2475 = vmatprep.mubr.f32.mxu0 0.0
    %v2476 = vand.u32 %v1968, 4294901760
    %2477 = vmatmul.mubr.f32.gmra.mrb[0].mxu0 %v2476
    %v2478 = vpop.f32.mrb[0].mxu0
    %v2479 = vadd.f32 %v2372, %v2478
    %v2480 = vpop.f32.mrb[0].mxu0
    %2481 = vmatprep.mubr.f32.mxu0 0.0
    %v2482 = vand.u32 %v1971, 4294901760
    %2483 = vmatmul.mubr.f32.gmra.mrb[0].mxu0 %v2482
    %v2484 = vpop.f32.mrb[0].mxu0
    %v2485 = vadd.f32 %v2380, %v2484
    %v2486 = vpop.f32.mrb[0].mxu0
    %2487 = vmatprep.mubr.f32.mxu0 0.0
    %v2488 = vand.u32 %v1974, 4294901760
    %2489 = vmatmul.mubr.f32.gmra.mrb[0].mxu0 %v2488
    %v2490 = vpop.f32.mrb[0].mxu0
    %v2491 = vadd.f32 %v2388, %v2490
    %v2492 = vpop.f32.mrb[0].mxu0
    %2493 = vmatprep.mubr.f32.mxu0 0.0
    %v2494 = vand.u32 %v1977, 4294901760
    %2495 = vmatmul.mubr.f32.gmra.mrb[0].mxu0 %v2494
    %v2496 = vpop.f32.mrb[0].mxu0
    %v2497 = vadd.f32 %v2396, %v2496
    %v2498 = vpop.f32.mrb[0].mxu0
    %2499 = vdwg.mxu0
    %2500 = vmatprep.subr.mxu0 0.0
    %v2501 = vand.u32 %v1968, 4294901760
    %2502 = vmatpush1.xpose.msra.mxu0 %v2501
    %2503 = vmatprep.subr.mxu0 0.0
    %v2504 = vand.u32 %v1971, 4294901760
    %2505 = vmatpush1.xpose.msra.mxu0 %v2504
    %2506 = vmatprep.subr.mxu0 0.0
    %v2507 = vand.u32 %v1974, 4294901760
    %2508 = vmatpush1.xpose.msra.mxu0 %v2507
    %2509 = vmatprep.subr.mxu0 0.0
    %v2510 = vand.u32 %v1977, 4294901760
    %2511 = vmatpush1.xpose.msra.mxu0 %v2510
    %2512 = vmatprep.subr.mxu0 0.0
    %2513 = vmatpush1.xpose.msra.mxu0 0.0
    %2514 = vmatprep.subr.mxu0 0.0
    %2515 = vmatpush1.xpose.msra.mxu0 0.0
    %2516 = vmatprep.subr.mxu0 0.0
    %2517 = vmatpush1.xpose.msra.mxu0 0.0
    %2518 = vmatprep.subr.mxu0 0.0
    %2519 = vmatpush1.xpose.msra.mxu0 0.0
    %2520 = vmatprep.subr.mxu0 0.0
    %2521 = vmatpush1.xpose.msra.mxu0 0.0
    %2522 = vmatprep.subr.mxu0 0.0
    %2523 = vmatpush1.xpose.msra.mxu0 0.0
    %2524 = vmatprep.subr.mxu0 0.0
    %2525 = vmatpush1.xpose.msra.mxu0 0.0
    %2526 = vmatprep.subr.mxu0 0.0
    %2527 = vmatpush1.xpose.msra.mxu0 0.0
    %2528 = vmatprep.subr.mxu0 0.0
    %2529 = vmatpush1.xpose.msra.mxu0 0.0
    %2530 = vmatprep.subr.mxu0 0.0
    %2531 = vmatpush1.xpose.msra.mxu0 0.0
    %2532 = vmatprep.subr.mxu0 0.0
    %2533 = vmatpush1.xpose.msra.mxu0 0.0
    %2534 = vmatprep.subr.mxu0 0.0
    %2535 = vmatpush1.xpose.msra.mxu0 0.0
    %2536 = vmatprep.subr.mxu0 0.0
    %2537 = vmatpush1.xpose.msra.mxu0 0.0
    %2538 = vmatprep.subr.mxu0 0.0
    %2539 = vmatpush1.xpose.msra.mxu0 0.0
    %2540 = vmatprep.subr.mxu0 0.0
    %2541 = vmatpush1.xpose.msra.mxu0 0.0
    %2542 = vmatprep.subr.mxu0 0.0
    %2543 = vmatpush1.xpose.msra.mxu0 0.0
    %2544 = vmatprep.subr.mxu0 0.0
    %2545 = vmatpush1.xpose.msra.mxu0 0.0
    %2546 = vmatprep.subr.mxu0 0.0
    %2547 = vmatpush1.xpose.msra.mxu0 0.0
    %2548 = vmatprep.subr.mxu0 0.0
    %2549 = vmatpush1.xpose.msra.mxu0 0.0
    %2550 = vmatprep.subr.mxu0 0.0
    %2551 = vmatpush1.xpose.msra.mxu0 0.0
    %2552 = vmatprep.subr.mxu0 0.0
    %2553 = vmatpush1.xpose.msra.mxu0 0.0
    %2554 = vmatprep.subr.mxu0 0.0
    %2555 = vmatpush1.xpose.msra.mxu0 0.0
    %2556 = vmatprep.subr.mxu0 0.0
    %2557 = vmatpush1.xpose.msra.mxu0 0.0
    %2558 = vmatprep.subr.mxu0 0.0
    %2559 = vmatpush1.xpose.msra.mxu0 0.0
    %2560 = vmatprep.subr.mxu0 0.0
    %2561 = vmatpush1.xpose.msra.mxu0 0.0
    %2562 = vmatprep.subr.mxu0 0.0
    %2563 = vmatpush1.xpose.msra.mxu0 0.0
    %2564 = vmatprep.subr.mxu0 0.0
    %2565 = vmatpush1.xpose.msra.mxu0 0.0
    %2566 = vmatprep.subr.mxu0 0.0
    %2567 = vmatpush1.xpose.msra.mxu0 0.0
    %2568 = vmatprep.mubr.f32.mxu0 0.0
    %v2569 = vand.u32 %v1968, 4294901760
    %2570 = vmatmul.mubr.f32.gmra.mrb[0].mxu0 %v2569
    %v2571 = vpop.f32.mrb[0].mxu0
    %v2572 = vadd.f32 %v2479, %v2571
    %v2573 = vpop.f32.mrb[0].mxu0
    %2574 = vmatprep.mubr.f32.mxu0 0.0
    %v2575 = vand.u32 %v1971, 4294901760
    %2576 = vmatmul.mubr.f32.gmra.mrb[0].mxu0 %v2575
    %v2577 = vpop.f32.mrb[0].mxu0
    %v2578 = vadd.f32 %v2485, %v2577
    %v2579 = vpop.f32.mrb[0].mxu0
    %2580 = vmatprep.mubr.f32.mxu0 0.0
    %v2581 = vand.u32 %v1974, 4294901760
    %2582 = vmatmul.mubr.f32.gmra.mrb[0].mxu0 %v2581
    %v2583 = vpop.f32.mrb[0].mxu0
    %v2584 = vadd.f32 %v2491, %v2583
    %v2585 = vpop.f32.mrb[0].mxu0
    %2586 = vmatprep.mubr.f32.mxu0 0.0
    %v2587 = vand.u32 %v1977, 4294901760
    %2588 = vmatmul.mubr.f32.gmra.mrb[0].mxu0 %v2587
    %v2589 = vpop.f32.mrb[0].mxu0
    %v2590 = vadd.f32 %v2497, %v2589
    %v2591 = vpop.f32.mrb[0].mxu0
    %2592 = vdwg.mxu0
    %v2594 = vsel %vm88, %v72, 0
    %v2597 = vsel %vm88, %v73, 0
    %v2600 = vsel %vm88, %v74, 0
    %v2603 = vsel %vm88, %v75, 0
    %2605 = vmatprep.subr.mxu0 0.0
    %v2606 = vand.u32 %v2594, 4294901760
    %2607 = vmatpush1.xpose.msra.mxu0 %v2606
    %2608 = vmatprep.subr.mxu0 0.0
    %v2609 = vand.u32 %v2597, 4294901760
    %2610 = vmatpush1.xpose.msra.mxu0 %v2609
    %2611 = vmatprep.subr.mxu0 0.0
    %v2612 = vand.u32 %v2600, 4294901760
    %2613 = vmatpush1.xpose.msra.mxu0 %v2612
    %2614 = vmatprep.subr.mxu0 0.0
    %v2615 = vand.u32 %v2603, 4294901760
    %2616 = vmatpush1.xpose.msra.mxu0 %v2615
    %2617 = vmatprep.subr.mxu0 0.0
    %2618 = vmatpush1.xpose.msra.mxu0 0.0
    %2619 = vmatprep.subr.mxu0 0.0
    %2620 = vmatpush1.xpose.msra.mxu0 0.0
    %2621 = vmatprep.subr.mxu0 0.0
    %2622 = vmatpush1.xpose.msra.mxu0 0.0
    %2623 = vmatprep.subr.mxu0 0.0
    %2624 = vmatpush1.xpose.msra.mxu0 0.0
    %2625 = vmatprep.subr.mxu0 0.0
    %2626 = vmatpush1.xpose.msra.mxu0 0.0
    %2627 = vmatprep.subr.mxu0 0.0
    %2628 = vmatpush1.xpose.msra.mxu0 0.0
    %2629 = vmatprep.subr.mxu0 0.0
    %2630 = vmatpush1.xpose.msra.mxu0 0.0
    %2631 = vmatprep.subr.mxu0 0.0
    %2632 = vmatpush1.xpose.msra.mxu0 0.0
    %2633 = vmatprep.subr.mxu0 0.0
    %2634 = vmatpush1.xpose.msra.mxu0 0.0
    %2635 = vmatprep.subr.mxu0 0.0
    %2636 = vmatpush1.xpose.msra.mxu0 0.0
    %2637 = vmatprep.subr.mxu0 0.0
    %2638 = vmatpush1.xpose.msra.mxu0 0.0
    %2639 = vmatprep.subr.mxu0 0.0
    %2640 = vmatpush1.xpose.msra.mxu0 0.0
    %2641 = vmatprep.subr.mxu0 0.0
    %2642 = vmatpush1.xpose.msra.mxu0 0.0
    %2643 = vmatprep.subr.mxu0 0.0
    %2644 = vmatpush1.xpose.msra.mxu0 0.0
    %2645 = vmatprep.subr.mxu0 0.0
    %2646 = vmatpush1.xpose.msra.mxu0 0.0
    %2647 = vmatprep.subr.mxu0 0.0
    %2648 = vmatpush1.xpose.msra.mxu0 0.0
    %2649 = vmatprep.subr.mxu0 0.0
    %2650 = vmatpush1.xpose.msra.mxu0 0.0
    %2651 = vmatprep.subr.mxu0 0.0
    %2652 = vmatpush1.xpose.msra.mxu0 0.0
    %2653 = vmatprep.subr.mxu0 0.0
    %2654 = vmatpush1.xpose.msra.mxu0 0.0
    %2655 = vmatprep.subr.mxu0 0.0
    %2656 = vmatpush1.xpose.msra.mxu0 0.0
    %2657 = vmatprep.subr.mxu0 0.0
    %2658 = vmatpush1.xpose.msra.mxu0 0.0
    %2659 = vmatprep.subr.mxu0 0.0
    %2660 = vmatpush1.xpose.msra.mxu0 0.0
    %2661 = vmatprep.subr.mxu0 0.0
    %2662 = vmatpush1.xpose.msra.mxu0 0.0
    %2663 = vmatprep.subr.mxu0 0.0
    %2664 = vmatpush1.xpose.msra.mxu0 0.0
    %2665 = vmatprep.subr.mxu0 0.0
    %2666 = vmatpush1.xpose.msra.mxu0 0.0
    %2667 = vmatprep.subr.mxu0 0.0
    %2668 = vmatpush1.xpose.msra.mxu0 0.0
    %2669 = vmatprep.subr.mxu0 0.0
    %2670 = vmatpush1.xpose.msra.mxu0 0.0
    %2671 = vmatprep.subr.mxu0 0.0
    %2672 = vmatpush1.xpose.msra.mxu0 0.0
    %2673 = vmatprep.mubr.f32.mxu0 0.0
    %v2674 = vand.u32 %v2594, 4294901760
    %v2675 = vsub.f32 %v2594, %v2674
    %v2676 = vand.u32 %v2675, 4294901760
    %v2677 = vsub.f32 %v2675, %v2676
    %v2678 = vand.u32 %v2677, 4294901760
    %2679 = vmatmul.mubr.f32.gmra.mrb[0].mxu0 %v2678
    %v2680 = vpop.f32.mrb[0].mxu0
    %v2681 = vadd.f32 0.0, %v2680
    %v2682 = vpop.f32.mrb[0].mxu0
    %2683 = vmatprep.mubr.f32.mxu0 0.0
    %v2684 = vand.u32 %v2597, 4294901760
    %v2685 = vsub.f32 %v2597, %v2684
    %v2686 = vand.u32 %v2685, 4294901760
    %v2687 = vsub.f32 %v2685, %v2686
    %v2688 = vand.u32 %v2687, 4294901760
    %2689 = vmatmul.mubr.f32.gmra.mrb[0].mxu0 %v2688
    %v2690 = vpop.f32.mrb[0].mxu0
    %v2691 = vadd.f32 0.0, %v2690
    %v2692 = vpop.f32.mrb[0].mxu0
    %2693 = vmatprep.mubr.f32.mxu0 0.0
    %v2694 = vand.u32 %v2600, 4294901760
    %v2695 = vsub.f32 %v2600, %v2694
    %v2696 = vand.u32 %v2695, 4294901760
    %v2697 = vsub.f32 %v2695, %v2696
    %v2698 = vand.u32 %v2697, 4294901760
    %2699 = vmatmul.mubr.f32.gmra.mrb[0].mxu0 %v2698
    %v2700 = vpop.f32.mrb[0].mxu0
    %v2701 = vadd.f32 0.0, %v2700
    %v2702 = vpop.f32.mrb[0].mxu0
    %2703 = vmatprep.mubr.f32.mxu0 0.0
    %v2704 = vand.u32 %v2603, 4294901760
    %v2705 = vsub.f32 %v2603, %v2704
    %v2706 = vand.u32 %v2705, 4294901760
    %v2707 = vsub.f32 %v2705, %v2706
    %v2708 = vand.u32 %v2707, 4294901760
    %2709 = vmatmul.mubr.f32.gmra.mrb[0].mxu0 %v2708
    %v2710 = vpop.f32.mrb[0].mxu0
    %v2711 = vadd.f32 0.0, %v2710
    %v2712 = vpop.f32.mrb[0].mxu0
    %2713 = vdwg.mxu0
    %2714 = vmatprep.subr.mxu0 0.0
    %v2715 = vand.u32 %v2594, 4294901760
    %v2716 = vsub.f32 %v2594, %v2715
    %v2717 = vand.u32 %v2716, 4294901760
    %v2718 = vsub.f32 %v2716, %v2717
    %v2719 = vand.u32 %v2718, 4294901760
    %2720 = vmatpush1.xpose.msra.mxu0 %v2719
    %2721 = vmatprep.subr.mxu0 0.0
    %v2722 = vand.u32 %v2597, 4294901760
    %v2723 = vsub.f32 %v2597, %v2722
    %v2724 = vand.u32 %v2723, 4294901760
    %v2725 = vsub.f32 %v2723, %v2724
    %v2726 = vand.u32 %v2725, 4294901760
    %2727 = vmatpush1.xpose.msra.mxu0 %v2726
    %2728 = vmatprep.subr.mxu0 0.0
    %v2729 = vand.u32 %v2600, 4294901760
    %v2730 = vsub.f32 %v2600, %v2729
    %v2731 = vand.u32 %v2730, 4294901760
    %v2732 = vsub.f32 %v2730, %v2731
    %v2733 = vand.u32 %v2732, 4294901760
    %2734 = vmatpush1.xpose.msra.mxu0 %v2733
    %2735 = vmatprep.subr.mxu0 0.0
    %v2736 = vand.u32 %v2603, 4294901760
    %v2737 = vsub.f32 %v2603, %v2736
    %v2738 = vand.u32 %v2737, 4294901760
    %v2739 = vsub.f32 %v2737, %v2738
    %v2740 = vand.u32 %v2739, 4294901760
    %2741 = vmatpush1.xpose.msra.mxu0 %v2740
    %2742 = vmatprep.subr.mxu0 0.0
    %2743 = vmatpush1.xpose.msra.mxu0 0.0
    %2744 = vmatprep.subr.mxu0 0.0
    %2745 = vmatpush1.xpose.msra.mxu0 0.0
    %2746 = vmatprep.subr.mxu0 0.0
    %2747 = vmatpush1.xpose.msra.mxu0 0.0
    %2748 = vmatprep.subr.mxu0 0.0
    %2749 = vmatpush1.xpose.msra.mxu0 0.0
    %2750 = vmatprep.subr.mxu0 0.0
    %2751 = vmatpush1.xpose.msra.mxu0 0.0
    %2752 = vmatprep.subr.mxu0 0.0
    %2753 = vmatpush1.xpose.msra.mxu0 0.0
    %2754 = vmatprep.subr.mxu0 0.0
    %2755 = vmatpush1.xpose.msra.mxu0 0.0
    %2756 = vmatprep.subr.mxu0 0.0
    %2757 = vmatpush1.xpose.msra.mxu0 0.0
    %2758 = vmatprep.subr.mxu0 0.0
    %2759 = vmatpush1.xpose.msra.mxu0 0.0
    %2760 = vmatprep.subr.mxu0 0.0
    %2761 = vmatpush1.xpose.msra.mxu0 0.0
    %2762 = vmatprep.subr.mxu0 0.0
    %2763 = vmatpush1.xpose.msra.mxu0 0.0
    %2764 = vmatprep.subr.mxu0 0.0
    %2765 = vmatpush1.xpose.msra.mxu0 0.0
    %2766 = vmatprep.subr.mxu0 0.0
    %2767 = vmatpush1.xpose.msra.mxu0 0.0
    %2768 = vmatprep.subr.mxu0 0.0
    %2769 = vmatpush1.xpose.msra.mxu0 0.0
    %2770 = vmatprep.subr.mxu0 0.0
    %2771 = vmatpush1.xpose.msra.mxu0 0.0
    %2772 = vmatprep.subr.mxu0 0.0
    %2773 = vmatpush1.xpose.msra.mxu0 0.0
    %2774 = vmatprep.subr.mxu0 0.0
    %2775 = vmatpush1.xpose.msra.mxu0 0.0
    %2776 = vmatprep.subr.mxu0 0.0
    %2777 = vmatpush1.xpose.msra.mxu0 0.0
    %2778 = vmatprep.subr.mxu0 0.0
    %2779 = vmatpush1.xpose.msra.mxu0 0.0
    %2780 = vmatprep.subr.mxu0 0.0
    %2781 = vmatpush1.xpose.msra.mxu0 0.0
    %2782 = vmatprep.subr.mxu0 0.0
    %2783 = vmatpush1.xpose.msra.mxu0 0.0
    %2784 = vmatprep.subr.mxu0 0.0
    %2785 = vmatpush1.xpose.msra.mxu0 0.0
    %2786 = vmatprep.subr.mxu0 0.0
    %2787 = vmatpush1.xpose.msra.mxu0 0.0
    %2788 = vmatprep.subr.mxu0 0.0
    %2789 = vmatpush1.xpose.msra.mxu0 0.0
    %2790 = vmatprep.subr.mxu0 0.0
    %2791 = vmatpush1.xpose.msra.mxu0 0.0
    %2792 = vmatprep.subr.mxu0 0.0
    %2793 = vmatpush1.xpose.msra.mxu0 0.0
    %2794 = vmatprep.subr.mxu0 0.0
    %2795 = vmatpush1.xpose.msra.mxu0 0.0
    %2796 = vmatprep.subr.mxu0 0.0
    %2797 = vmatpush1.xpose.msra.mxu0 0.0
    %2798 = vmatprep.mubr.f32.mxu0 0.0
    %v2799 = vand.u32 %v2594, 4294901760
    %2800 = vmatmul.mubr.f32.gmra.mrb[0].mxu0 %v2799
    %v2801 = vpop.f32.mrb[0].mxu0
    %v2802 = vadd.f32 %v2681, %v2801
    %v2803 = vpop.f32.mrb[0].mxu0
    %2804 = vmatprep.mubr.f32.mxu0 0.0
    %v2805 = vand.u32 %v2597, 4294901760
    %2806 = vmatmul.mubr.f32.gmra.mrb[0].mxu0 %v2805
    %v2807 = vpop.f32.mrb[0].mxu0
    %v2808 = vadd.f32 %v2691, %v2807
    %v2809 = vpop.f32.mrb[0].mxu0
    %2810 = vmatprep.mubr.f32.mxu0 0.0
    %v2811 = vand.u32 %v2600, 4294901760
    %2812 = vmatmul.mubr.f32.gmra.mrb[0].mxu0 %v2811
    %v2813 = vpop.f32.mrb[0].mxu0
    %v2814 = vadd.f32 %v2701, %v2813
    %v2815 = vpop.f32.mrb[0].mxu0
    %2816 = vmatprep.mubr.f32.mxu0 0.0
    %v2817 = vand.u32 %v2603, 4294901760
    %2818 = vmatmul.mubr.f32.gmra.mrb[0].mxu0 %v2817
    %v2819 = vpop.f32.mrb[0].mxu0
    %v2820 = vadd.f32 %v2711, %v2819
    %v2821 = vpop.f32.mrb[0].mxu0
    %2822 = vdwg.mxu0
    %2823 = vmatprep.subr.mxu0 0.0
    %v2824 = vand.u32 %v2594, 4294901760
    %v2825 = vsub.f32 %v2594, %v2824
    %2826 = vmatpush1.xpose.msra.mxu0 %v2825
    %2827 = vmatprep.subr.mxu0 0.0
    %v2828 = vand.u32 %v2597, 4294901760
    %v2829 = vsub.f32 %v2597, %v2828
    %2830 = vmatpush1.xpose.msra.mxu0 %v2829
    %2831 = vmatprep.subr.mxu0 0.0
    %v2832 = vand.u32 %v2600, 4294901760
    %v2833 = vsub.f32 %v2600, %v2832
    %2834 = vmatpush1.xpose.msra.mxu0 %v2833
    %2835 = vmatprep.subr.mxu0 0.0
    %v2836 = vand.u32 %v2603, 4294901760
    %v2837 = vsub.f32 %v2603, %v2836
    %2838 = vmatpush1.xpose.msra.mxu0 %v2837
    %2839 = vmatprep.subr.mxu0 0.0
    %2840 = vmatpush1.xpose.msra.mxu0 0.0
    %2841 = vmatprep.subr.mxu0 0.0
    %2842 = vmatpush1.xpose.msra.mxu0 0.0
    %2843 = vmatprep.subr.mxu0 0.0
    %2844 = vmatpush1.xpose.msra.mxu0 0.0
    %2845 = vmatprep.subr.mxu0 0.0
    %2846 = vmatpush1.xpose.msra.mxu0 0.0
    %2847 = vmatprep.subr.mxu0 0.0
    %2848 = vmatpush1.xpose.msra.mxu0 0.0
    %2849 = vmatprep.subr.mxu0 0.0
    %2850 = vmatpush1.xpose.msra.mxu0 0.0
    %2851 = vmatprep.subr.mxu0 0.0
    %2852 = vmatpush1.xpose.msra.mxu0 0.0
    %2853 = vmatprep.subr.mxu0 0.0
    %2854 = vmatpush1.xpose.msra.mxu0 0.0
    %2855 = vmatprep.subr.mxu0 0.0
    %2856 = vmatpush1.xpose.msra.mxu0 0.0
    %2857 = vmatprep.subr.mxu0 0.0
    %2858 = vmatpush1.xpose.msra.mxu0 0.0
    %2859 = vmatprep.subr.mxu0 0.0
    %2860 = vmatpush1.xpose.msra.mxu0 0.0
    %2861 = vmatprep.subr.mxu0 0.0
    %2862 = vmatpush1.xpose.msra.mxu0 0.0
    %2863 = vmatprep.subr.mxu0 0.0
    %2864 = vmatpush1.xpose.msra.mxu0 0.0
    %2865 = vmatprep.subr.mxu0 0.0
    %2866 = vmatpush1.xpose.msra.mxu0 0.0
    %2867 = vmatprep.subr.mxu0 0.0
    %2868 = vmatpush1.xpose.msra.mxu0 0.0
    %2869 = vmatprep.subr.mxu0 0.0
    %2870 = vmatpush1.xpose.msra.mxu0 0.0
    %2871 = vmatprep.subr.mxu0 0.0
    %2872 = vmatpush1.xpose.msra.mxu0 0.0
    %2873 = vmatprep.subr.mxu0 0.0
    %2874 = vmatpush1.xpose.msra.mxu0 0.0
    %2875 = vmatprep.subr.mxu0 0.0
    %2876 = vmatpush1.xpose.msra.mxu0 0.0
    %2877 = vmatprep.subr.mxu0 0.0
    %2878 = vmatpush1.xpose.msra.mxu0 0.0
    %2879 = vmatprep.subr.mxu0 0.0
    %2880 = vmatpush1.xpose.msra.mxu0 0.0
    %2881 = vmatprep.subr.mxu0 0.0
    %2882 = vmatpush1.xpose.msra.mxu0 0.0
    %2883 = vmatprep.subr.mxu0 0.0
    %2884 = vmatpush1.xpose.msra.mxu0 0.0
    %2885 = vmatprep.subr.mxu0 0.0
    %2886 = vmatpush1.xpose.msra.mxu0 0.0
    %2887 = vmatprep.subr.mxu0 0.0
    %2888 = vmatpush1.xpose.msra.mxu0 0.0
    %2889 = vmatprep.subr.mxu0 0.0
    %2890 = vmatpush1.xpose.msra.mxu0 0.0
    %2891 = vmatprep.subr.mxu0 0.0
    %2892 = vmatpush1.xpose.msra.mxu0 0.0
    %2893 = vmatprep.subr.mxu0 0.0
    %2894 = vmatpush1.xpose.msra.mxu0 0.0
    %2895 = vmatprep.mubr.f32.mxu0 0.0
    %v2896 = vand.u32 %v2594, 4294901760
    %v2897 = vsub.f32 %v2594, %v2896
    %2898 = vmatmul.mubr.f32.gmra.mrb[0].mxu0 %v2897
    %v2899 = vpop.f32.mrb[0].mxu0
    %v2900 = vadd.f32 %v2802, %v2899
    %v2901 = vpop.f32.mrb[0].mxu0
    %2902 = vmatprep.mubr.f32.mxu0 0.0
    %v2903 = vand.u32 %v2597, 4294901760
    %v2904 = vsub.f32 %v2597, %v2903
    %2905 = vmatmul.mubr.f32.gmra.mrb[0].mxu0 %v2904
    %v2906 = vpop.f32.mrb[0].mxu0
    %v2907 = vadd.f32 %v2808, %v2906
    %v2908 = vpop.f32.mrb[0].mxu0
    %2909 = vmatprep.mubr.f32.mxu0 0.0
    %v2910 = vand.u32 %v2600, 4294901760
    %v2911 = vsub.f32 %v2600, %v2910
    %2912 = vmatmul.mubr.f32.gmra.mrb[0].mxu0 %v2911
    %v2913 = vpop.f32.mrb[0].mxu0
    %v2914 = vadd.f32 %v2814, %v2913
    %v2915 = vpop.f32.mrb[0].mxu0
    %2916 = vmatprep.mubr.f32.mxu0 0.0
    %v2917 = vand.u32 %v2603, 4294901760
    %v2918 = vsub.f32 %v2603, %v2917
    %2919 = vmatmul.mubr.f32.gmra.mrb[0].mxu0 %v2918
    %v2920 = vpop.f32.mrb[0].mxu0
    %v2921 = vadd.f32 %v2820, %v2920
    %v2922 = vpop.f32.mrb[0].mxu0
    %2923 = vdwg.mxu0
    %2924 = vmatprep.subr.mxu0 0.0
    %v2925 = vand.u32 %v2594, 4294901760
    %2926 = vmatpush1.xpose.msra.mxu0 %v2925
    %2927 = vmatprep.subr.mxu0 0.0
    %v2928 = vand.u32 %v2597, 4294901760
    %2929 = vmatpush1.xpose.msra.mxu0 %v2928
    %2930 = vmatprep.subr.mxu0 0.0
    %v2931 = vand.u32 %v2600, 4294901760
    %2932 = vmatpush1.xpose.msra.mxu0 %v2931
    %2933 = vmatprep.subr.mxu0 0.0
    %v2934 = vand.u32 %v2603, 4294901760
    %2935 = vmatpush1.xpose.msra.mxu0 %v2934
    %2936 = vmatprep.subr.mxu0 0.0
    %2937 = vmatpush1.xpose.msra.mxu0 0.0
    %2938 = vmatprep.subr.mxu0 0.0
    %2939 = vmatpush1.xpose.msra.mxu0 0.0
    %2940 = vmatprep.subr.mxu0 0.0
    %2941 = vmatpush1.xpose.msra.mxu0 0.0
    %2942 = vmatprep.subr.mxu0 0.0
    %2943 = vmatpush1.xpose.msra.mxu0 0.0
    %2944 = vmatprep.subr.mxu0 0.0
    %2945 = vmatpush1.xpose.msra.mxu0 0.0
    %2946 = vmatprep.subr.mxu0 0.0
    %2947 = vmatpush1.xpose.msra.mxu0 0.0
    %2948 = vmatprep.subr.mxu0 0.0
    %2949 = vmatpush1.xpose.msra.mxu0 0.0
    %2950 = vmatprep.subr.mxu0 0.0
    %2951 = vmatpush1.xpose.msra.mxu0 0.0
    %2952 = vmatprep.subr.mxu0 0.0
    %2953 = vmatpush1.xpose.msra.mxu0 0.0
    %2954 = vmatprep.subr.mxu0 0.0
    %2955 = vmatpush1.xpose.msra.mxu0 0.0
    %2956 = vmatprep.subr.mxu0 0.0
    %2957 = vmatpush1.xpose.msra.mxu0 0.0
    %2958 = vmatprep.subr.mxu0 0.0
    %2959 = vmatpush1.xpose.msra.mxu0 0.0
    %2960 = vmatprep.subr.mxu0 0.0
    %2961 = vmatpush1.xpose.msra.mxu0 0.0
    %2962 = vmatprep.subr.mxu0 0.0
    %2963 = vmatpush1.xpose.msra.mxu0 0.0
    %2964 = vmatprep.subr.mxu0 0.0
    %2965 = vmatpush1.xpose.msra.mxu0 0.0
    %2966 = vmatprep.subr.mxu0 0.0
    %2967 = vmatpush1.xpose.msra.mxu0 0.0
    %2968 = vmatprep.subr.mxu0 0.0
    %2969 = vmatpush1.xpose.msra.mxu0 0.0
    %2970 = vmatprep.subr.mxu0 0.0
    %2971 = vmatpush1.xpose.msra.mxu0 0.0
    %2972 = vmatprep.subr.mxu0 0.0
    %2973 = vmatpush1.xpose.msra.mxu0 0.0
    %2974 = vmatprep.subr.mxu0 0.0
    %2975 = vmatpush1.xpose.msra.mxu0 0.0
    %2976 = vmatprep.subr.mxu0 0.0
    %2977 = vmatpush1.xpose.msra.mxu0 0.0
    %2978 = vmatprep.subr.mxu0 0.0
    %2979 = vmatpush1.xpose.msra.mxu0 0.0
    %2980 = vmatprep.subr.mxu0 0.0
    %2981 = vmatpush1.xpose.msra.mxu0 0.0
    %2982 = vmatprep.subr.mxu0 0.0
    %2983 = vmatpush1.xpose.msra.mxu0 0.0
    %2984 = vmatprep.subr.mxu0 0.0
    %2985 = vmatpush1.xpose.msra.mxu0 0.0
    %2986 = vmatprep.subr.mxu0 0.0
    %2987 = vmatpush1.xpose.msra.mxu0 0.0
    %2988 = vmatprep.subr.mxu0 0.0
    %2989 = vmatpush1.xpose.msra.mxu0 0.0
    %2990 = vmatprep.subr.mxu0 0.0
    %2991 = vmatpush1.xpose.msra.mxu0 0.0
    %2992 = vmatprep.mubr.f32.mxu0 0.0
    %v2993 = vand.u32 %v2594, 4294901760
    %v2994 = vsub.f32 %v2594, %v2993
    %v2995 = vand.u32 %v2994, 4294901760
    %2996 = vmatmul.mubr.f32.gmra.mrb[0].mxu0 %v2995
    %v2997 = vpop.f32.mrb[0].mxu0
    %v2998 = vadd.f32 %v2900, %v2997
    %v2999 = vpop.f32.mrb[0].mxu0
    %3000 = vmatprep.mubr.f32.mxu0 0.0
    %v3001 = vand.u32 %v2597, 4294901760
    %v3002 = vsub.f32 %v2597, %v3001
    %v3003 = vand.u32 %v3002, 4294901760
    %3004 = vmatmul.mubr.f32.gmra.mrb[0].mxu0 %v3003
    %v3005 = vpop.f32.mrb[0].mxu0
    %v3006 = vadd.f32 %v2907, %v3005
    %v3007 = vpop.f32.mrb[0].mxu0
    %3008 = vmatprep.mubr.f32.mxu0 0.0
    %v3009 = vand.u32 %v2600, 4294901760
    %v3010 = vsub.f32 %v2600, %v3009
    %v3011 = vand.u32 %v3010, 4294901760
    %3012 = vmatmul.mubr.f32.gmra.mrb[0].mxu0 %v3011
    %v3013 = vpop.f32.mrb[0].mxu0
    %v3014 = vadd.f32 %v2914, %v3013
    %v3015 = vpop.f32.mrb[0].mxu0
    %3016 = vmatprep.mubr.f32.mxu0 0.0
    %v3017 = vand.u32 %v2603, 4294901760
    %v3018 = vsub.f32 %v2603, %v3017
    %v3019 = vand.u32 %v3018, 4294901760
    %3020 = vmatmul.mubr.f32.gmra.mrb[0].mxu0 %v3019
    %v3021 = vpop.f32.mrb[0].mxu0
    %v3022 = vadd.f32 %v2921, %v3021
    %v3023 = vpop.f32.mrb[0].mxu0
    %3024 = vdwg.mxu0
    %3025 = vmatprep.subr.mxu0 0.0
    %v3026 = vand.u32 %v2594, 4294901760
    %v3027 = vsub.f32 %v2594, %v3026
    %v3028 = vand.u32 %v3027, 4294901760
    %3029 = vmatpush1.xpose.msra.mxu0 %v3028
    %3030 = vmatprep.subr.mxu0 0.0
    %v3031 = vand.u32 %v2597, 4294901760
    %v3032 = vsub.f32 %v2597, %v3031
    %v3033 = vand.u32 %v3032, 4294901760
    %3034 = vmatpush1.xpose.msra.mxu0 %v3033
    %3035 = vmatprep.subr.mxu0 0.0
    %v3036 = vand.u32 %v2600, 4294901760
    %v3037 = vsub.f32 %v2600, %v3036
    %v3038 = vand.u32 %v3037, 4294901760
    %3039 = vmatpush1.xpose.msra.mxu0 %v3038
    %3040 = vmatprep.subr.mxu0 0.0
    %v3041 = vand.u32 %v2603, 4294901760
    %v3042 = vsub.f32 %v2603, %v3041
    %v3043 = vand.u32 %v3042, 4294901760
    %3044 = vmatpush1.xpose.msra.mxu0 %v3043
    %3045 = vmatprep.subr.mxu0 0.0
    %3046 = vmatpush1.xpose.msra.mxu0 0.0
    %3047 = vmatprep.subr.mxu0 0.0
    %3048 = vmatpush1.xpose.msra.mxu0 0.0
    %3049 = vmatprep.subr.mxu0 0.0
    %3050 = vmatpush1.xpose.msra.mxu0 0.0
    %3051 = vmatprep.subr.mxu0 0.0
    %3052 = vmatpush1.xpose.msra.mxu0 0.0
    %3053 = vmatprep.subr.mxu0 0.0
    %3054 = vmatpush1.xpose.msra.mxu0 0.0
    %3055 = vmatprep.subr.mxu0 0.0
    %3056 = vmatpush1.xpose.msra.mxu0 0.0
    %3057 = vmatprep.subr.mxu0 0.0
    %3058 = vmatpush1.xpose.msra.mxu0 0.0
    %3059 = vmatprep.subr.mxu0 0.0
    %3060 = vmatpush1.xpose.msra.mxu0 0.0
    %3061 = vmatprep.subr.mxu0 0.0
    %3062 = vmatpush1.xpose.msra.mxu0 0.0
    %3063 = vmatprep.subr.mxu0 0.0
    %3064 = vmatpush1.xpose.msra.mxu0 0.0
    %3065 = vmatprep.subr.mxu0 0.0
    %3066 = vmatpush1.xpose.msra.mxu0 0.0
    %3067 = vmatprep.subr.mxu0 0.0
    %3068 = vmatpush1.xpose.msra.mxu0 0.0
    %3069 = vmatprep.subr.mxu0 0.0
    %3070 = vmatpush1.xpose.msra.mxu0 0.0
    %3071 = vmatprep.subr.mxu0 0.0
    %3072 = vmatpush1.xpose.msra.mxu0 0.0
    %3073 = vmatprep.subr.mxu0 0.0
    %3074 = vmatpush1.xpose.msra.mxu0 0.0
    %3075 = vmatprep.subr.mxu0 0.0
    %3076 = vmatpush1.xpose.msra.mxu0 0.0
    %3077 = vmatprep.subr.mxu0 0.0
    %3078 = vmatpush1.xpose.msra.mxu0 0.0
    %3079 = vmatprep.subr.mxu0 0.0
    %3080 = vmatpush1.xpose.msra.mxu0 0.0
    %3081 = vmatprep.subr.mxu0 0.0
    %3082 = vmatpush1.xpose.msra.mxu0 0.0
    %3083 = vmatprep.subr.mxu0 0.0
    %3084 = vmatpush1.xpose.msra.mxu0 0.0
    %3085 = vmatprep.subr.mxu0 0.0
    %3086 = vmatpush1.xpose.msra.mxu0 0.0
    %3087 = vmatprep.subr.mxu0 0.0
    %3088 = vmatpush1.xpose.msra.mxu0 0.0
    %3089 = vmatprep.subr.mxu0 0.0
    %3090 = vmatpush1.xpose.msra.mxu0 0.0
    %3091 = vmatprep.subr.mxu0 0.0
    %3092 = vmatpush1.xpose.msra.mxu0 0.0
    %3093 = vmatprep.subr.mxu0 0.0
    %3094 = vmatpush1.xpose.msra.mxu0 0.0
    %3095 = vmatprep.subr.mxu0 0.0
    %3096 = vmatpush1.xpose.msra.mxu0 0.0
    %3097 = vmatprep.subr.mxu0 0.0
    %3098 = vmatpush1.xpose.msra.mxu0 0.0
    %3099 = vmatprep.subr.mxu0 0.0
    %3100 = vmatpush1.xpose.msra.mxu0 0.0
    %3101 = vmatprep.mubr.f32.mxu0 0.0
    %v3102 = vand.u32 %v2594, 4294901760
    %3103 = vmatmul.mubr.f32.gmra.mrb[0].mxu0 %v3102
    %v3104 = vpop.f32.mrb[0].mxu0
    %v3105 = vadd.f32 %v2998, %v3104
    %v3106 = vpop.f32.mrb[0].mxu0
    %3107 = vmatprep.mubr.f32.mxu0 0.0
    %v3108 = vand.u32 %v2597, 4294901760
    %3109 = vmatmul.mubr.f32.gmra.mrb[0].mxu0 %v3108
    %v3110 = vpop.f32.mrb[0].mxu0
    %v3111 = vadd.f32 %v3006, %v3110
    %v3112 = vpop.f32.mrb[0].mxu0
    %3113 = vmatprep.mubr.f32.mxu0 0.0
    %v3114 = vand.u32 %v2600, 4294901760
    %3115 = vmatmul.mubr.f32.gmra.mrb[0].mxu0 %v3114
    %v3116 = vpop.f32.mrb[0].mxu0
    %v3117 = vadd.f32 %v3014, %v3116
    %v3118 = vpop.f32.mrb[0].mxu0
    %3119 = vmatprep.mubr.f32.mxu0 0.0
    %v3120 = vand.u32 %v2603, 4294901760
    %3121 = vmatmul.mubr.f32.gmra.mrb[0].mxu0 %v3120
    %v3122 = vpop.f32.mrb[0].mxu0
    %v3123 = vadd.f32 %v3022, %v3122
    %v3124 = vpop.f32.mrb[0].mxu0
    %3125 = vdwg.mxu0
    %3126 = vmatprep.subr.mxu0 0.0
    %v3127 = vand.u32 %v2594, 4294901760
    %3128 = vmatpush1.xpose.msra.mxu0 %v3127
    %3129 = vmatprep.subr.mxu0 0.0
    %v3130 = vand.u32 %v2597, 4294901760
    %3131 = vmatpush1.xpose.msra.mxu0 %v3130
    %3132 = vmatprep.subr.mxu0 0.0
    %v3133 = vand.u32 %v2600, 4294901760
    %3134 = vmatpush1.xpose.msra.mxu0 %v3133
    %3135 = vmatprep.subr.mxu0 0.0
    %v3136 = vand.u32 %v2603, 4294901760
    %3137 = vmatpush1.xpose.msra.mxu0 %v3136
    %3138 = vmatprep.subr.mxu0 0.0
    %3139 = vmatpush1.xpose.msra.mxu0 0.0
    %3140 = vmatprep.subr.mxu0 0.0
    %3141 = vmatpush1.xpose.msra.mxu0 0.0
    %3142 = vmatprep.subr.mxu0 0.0
    %3143 = vmatpush1.xpose.msra.mxu0 0.0
    %3144 = vmatprep.subr.mxu0 0.0
    %3145 = vmatpush1.xpose.msra.mxu0 0.0
    %3146 = vmatprep.subr.mxu0 0.0
    %3147 = vmatpush1.xpose.msra.mxu0 0.0
    %3148 = vmatprep.subr.mxu0 0.0
    %3149 = vmatpush1.xpose.msra.mxu0 0.0
    %3150 = vmatprep.subr.mxu0 0.0
    %3151 = vmatpush1.xpose.msra.mxu0 0.0
    %3152 = vmatprep.subr.mxu0 0.0
    %3153 = vmatpush1.xpose.msra.mxu0 0.0
    %3154 = vmatprep.subr.mxu0 0.0
    %3155 = vmatpush1.xpose.msra.mxu0 0.0
    %3156 = vmatprep.subr.mxu0 0.0
    %3157 = vmatpush1.xpose.msra.mxu0 0.0
    %3158 = vmatprep.subr.mxu0 0.0
    %3159 = vmatpush1.xpose.msra.mxu0 0.0
    %3160 = vmatprep.subr.mxu0 0.0
    %3161 = vmatpush1.xpose.msra.mxu0 0.0
    %3162 = vmatprep.subr.mxu0 0.0
    %3163 = vmatpush1.xpose.msra.mxu0 0.0
    %3164 = vmatprep.subr.mxu0 0.0
    %3165 = vmatpush1.xpose.msra.mxu0 0.0
    %3166 = vmatprep.subr.mxu0 0.0
    %3167 = vmatpush1.xpose.msra.mxu0 0.0
    %3168 = vmatprep.subr.mxu0 0.0
    %3169 = vmatpush1.xpose.msra.mxu0 0.0
    %3170 = vmatprep.subr.mxu0 0.0
    %3171 = vmatpush1.xpose.msra.mxu0 0.0
    %3172 = vmatprep.subr.mxu0 0.0
    %3173 = vmatpush1.xpose.msra.mxu0 0.0
    %3174 = vmatprep.subr.mxu0 0.0
    %3175 = vmatpush1.xpose.msra.mxu0 0.0
    %3176 = vmatprep.subr.mxu0 0.0
    %3177 = vmatpush1.xpose.msra.mxu0 0.0
    %3178 = vmatprep.subr.mxu0 0.0
    %3179 = vmatpush1.xpose.msra.mxu0 0.0
    %3180 = vmatprep.subr.mxu0 0.0
    %3181 = vmatpush1.xpose.msra.mxu0 0.0
    %3182 = vmatprep.subr.mxu0 0.0
    %3183 = vmatpush1.xpose.msra.mxu0 0.0
    %3184 = vmatprep.subr.mxu0 0.0
    %3185 = vmatpush1.xpose.msra.mxu0 0.0
    %3186 = vmatprep.subr.mxu0 0.0
    %3187 = vmatpush1.xpose.msra.mxu0 0.0
    %3188 = vmatprep.subr.mxu0 0.0
    %3189 = vmatpush1.xpose.msra.mxu0 0.0
    %3190 = vmatprep.subr.mxu0 0.0
    %3191 = vmatpush1.xpose.msra.mxu0 0.0
    %3192 = vmatprep.subr.mxu0 0.0
    %3193 = vmatpush1.xpose.msra.mxu0 0.0
    %3194 = vmatprep.mubr.f32.mxu0 0.0
    %v3195 = vand.u32 %v2594, 4294901760
    %3196 = vmatmul.mubr.f32.gmra.mrb[0].mxu0 %v3195
    %v3197 = vpop.f32.mrb[0].mxu0
    %v3198 = vadd.f32 %v3105, %v3197
    %v3199 = vpop.f32.mrb[0].mxu0
    %3200 = vmatprep.mubr.f32.mxu0 0.0
    %v3201 = vand.u32 %v2597, 4294901760
    %3202 = vmatmul.mubr.f32.gmra.mrb[0].mxu0 %v3201
    %v3203 = vpop.f32.mrb[0].mxu0
    %v3204 = vadd.f32 %v3111, %v3203
    %v3205 = vpop.f32.mrb[0].mxu0
    %3206 = vmatprep.mubr.f32.mxu0 0.0
    %v3207 = vand.u32 %v2600, 4294901760
    %3208 = vmatmul.mubr.f32.gmra.mrb[0].mxu0 %v3207
    %v3209 = vpop.f32.mrb[0].mxu0
    %v3210 = vadd.f32 %v3117, %v3209
    %v3211 = vpop.f32.mrb[0].mxu0
    %3212 = vmatprep.mubr.f32.mxu0 0.0
    %v3213 = vand.u32 %v2603, 4294901760
    %3214 = vmatmul.mubr.f32.gmra.mrb[0].mxu0 %v3213
    %v3215 = vpop.f32.mrb[0].mxu0
    %v3216 = vadd.f32 %v3123, %v3215
    %v3217 = vpop.f32.mrb[0].mxu0
    %3218 = vdwg.mxu0
    %v3220 = vsel %vm88, %v76, 0
    %v3223 = vsel %vm88, %v77, 0
    %v3226 = vsel %vm88, %v78, 0
    %v3229 = vsel %vm88, %v79, 0
    %3231 = vmatprep.subr.mxu0 0.0
    %v3232 = vand.u32 %v3220, 4294901760
    %3233 = vmatpush1.xpose.msra.mxu0 %v3232
    %3234 = vmatprep.subr.mxu0 0.0
    %v3235 = vand.u32 %v3223, 4294901760
    %3236 = vmatpush1.xpose.msra.mxu0 %v3235
    %3237 = vmatprep.subr.mxu0 0.0
    %v3238 = vand.u32 %v3226, 4294901760
    %3239 = vmatpush1.xpose.msra.mxu0 %v3238
    %3240 = vmatprep.subr.mxu0 0.0
    %v3241 = vand.u32 %v3229, 4294901760
    %3242 = vmatpush1.xpose.msra.mxu0 %v3241
    %3243 = vmatprep.subr.mxu0 0.0
    %3244 = vmatpush1.xpose.msra.mxu0 0.0
    %3245 = vmatprep.subr.mxu0 0.0
    %3246 = vmatpush1.xpose.msra.mxu0 0.0
    %3247 = vmatprep.subr.mxu0 0.0
    %3248 = vmatpush1.xpose.msra.mxu0 0.0
    %3249 = vmatprep.subr.mxu0 0.0
    %3250 = vmatpush1.xpose.msra.mxu0 0.0
    %3251 = vmatprep.subr.mxu0 0.0
    %3252 = vmatpush1.xpose.msra.mxu0 0.0
    %3253 = vmatprep.subr.mxu0 0.0
    %3254 = vmatpush1.xpose.msra.mxu0 0.0
    %3255 = vmatprep.subr.mxu0 0.0
    %3256 = vmatpush1.xpose.msra.mxu0 0.0
    %3257 = vmatprep.subr.mxu0 0.0
    %3258 = vmatpush1.xpose.msra.mxu0 0.0
    %3259 = vmatprep.subr.mxu0 0.0
    %3260 = vmatpush1.xpose.msra.mxu0 0.0
    %3261 = vmatprep.subr.mxu0 0.0
    %3262 = vmatpush1.xpose.msra.mxu0 0.0
    %3263 = vmatprep.subr.mxu0 0.0
    %3264 = vmatpush1.xpose.msra.mxu0 0.0
    %3265 = vmatprep.subr.mxu0 0.0
    %3266 = vmatpush1.xpose.msra.mxu0 0.0
    %3267 = vmatprep.subr.mxu0 0.0
    %3268 = vmatpush1.xpose.msra.mxu0 0.0
    %3269 = vmatprep.subr.mxu0 0.0
    %3270 = vmatpush1.xpose.msra.mxu0 0.0
    %3271 = vmatprep.subr.mxu0 0.0
    %3272 = vmatpush1.xpose.msra.mxu0 0.0
    %3273 = vmatprep.subr.mxu0 0.0
    %3274 = vmatpush1.xpose.msra.mxu0 0.0
    %3275 = vmatprep.subr.mxu0 0.0
    %3276 = vmatpush1.xpose.msra.mxu0 0.0
    %3277 = vmatprep.subr.mxu0 0.0
    %3278 = vmatpush1.xpose.msra.mxu0 0.0
    %3279 = vmatprep.subr.mxu0 0.0
    %3280 = vmatpush1.xpose.msra.mxu0 0.0
    %3281 = vmatprep.subr.mxu0 0.0
    %3282 = vmatpush1.xpose.msra.mxu0 0.0
    %3283 = vmatprep.subr.mxu0 0.0
    %3284 = vmatpush1.xpose.msra.mxu0 0.0
    %3285 = vmatprep.subr.mxu0 0.0
    %3286 = vmatpush1.xpose.msra.mxu0 0.0
    %3287 = vmatprep.subr.mxu0 0.0
    %3288 = vmatpush1.xpose.msra.mxu0 0.0
    %3289 = vmatprep.subr.mxu0 0.0
    %3290 = vmatpush1.xpose.msra.mxu0 0.0
    %3291 = vmatprep.subr.mxu0 0.0
    %3292 = vmatpush1.xpose.msra.mxu0 0.0
    %3293 = vmatprep.subr.mxu0 0.0
    %3294 = vmatpush1.xpose.msra.mxu0 0.0
    %3295 = vmatprep.subr.mxu0 0.0
    %3296 = vmatpush1.xpose.msra.mxu0 0.0
    %3297 = vmatprep.subr.mxu0 0.0
    %3298 = vmatpush1.xpose.msra.mxu0 0.0
    %3299 = vmatprep.mubr.f32.mxu0 0.0
    %v3300 = vand.u32 %v3220, 4294901760
    %v3301 = vsub.f32 %v3220, %v3300
    %v3302 = vand.u32 %v3301, 4294901760
    %v3303 = vsub.f32 %v3301, %v3302
    %v3304 = vand.u32 %v3303, 4294901760
    %3305 = vmatmul.mubr.f32.gmra.mrb[0].mxu0 %v3304
    %v3306 = vpop.f32.mrb[0].mxu0
    %v3307 = vadd.f32 0.0, %v3306
    %v3308 = vpop.f32.mrb[0].mxu0
    %3309 = vmatprep.mubr.f32.mxu0 0.0
    %v3310 = vand.u32 %v3223, 4294901760
    %v3311 = vsub.f32 %v3223, %v3310
    %v3312 = vand.u32 %v3311, 4294901760
    %v3313 = vsub.f32 %v3311, %v3312
    %v3314 = vand.u32 %v3313, 4294901760
    %3315 = vmatmul.mubr.f32.gmra.mrb[0].mxu0 %v3314
    %v3316 = vpop.f32.mrb[0].mxu0
    %v3317 = vadd.f32 0.0, %v3316
    %v3318 = vpop.f32.mrb[0].mxu0
    %3319 = vmatprep.mubr.f32.mxu0 0.0
    %v3320 = vand.u32 %v3226, 4294901760
    %v3321 = vsub.f32 %v3226, %v3320
    %v3322 = vand.u32 %v3321, 4294901760
    %v3323 = vsub.f32 %v3321, %v3322
    %v3324 = vand.u32 %v3323, 4294901760
    %3325 = vmatmul.mubr.f32.gmra.mrb[0].mxu0 %v3324
    %v3326 = vpop.f32.mrb[0].mxu0
    %v3327 = vadd.f32 0.0, %v3326
    %v3328 = vpop.f32.mrb[0].mxu0
    %3329 = vmatprep.mubr.f32.mxu0 0.0
    %v3330 = vand.u32 %v3229, 4294901760
    %v3331 = vsub.f32 %v3229, %v3330
    %v3332 = vand.u32 %v3331, 4294901760
    %v3333 = vsub.f32 %v3331, %v3332
    %v3334 = vand.u32 %v3333, 4294901760
    %3335 = vmatmul.mubr.f32.gmra.mrb[0].mxu0 %v3334
    %v3336 = vpop.f32.mrb[0].mxu0
    %v3337 = vadd.f32 0.0, %v3336
    %v3338 = vpop.f32.mrb[0].mxu0
    %3339 = vdwg.mxu0
    %3340 = vmatprep.subr.mxu0 0.0
    %v3341 = vand.u32 %v3220, 4294901760
    %v3342 = vsub.f32 %v3220, %v3341
    %v3343 = vand.u32 %v3342, 4294901760
    %v3344 = vsub.f32 %v3342, %v3343
    %v3345 = vand.u32 %v3344, 4294901760
    %3346 = vmatpush1.xpose.msra.mxu0 %v3345
    %3347 = vmatprep.subr.mxu0 0.0
    %v3348 = vand.u32 %v3223, 4294901760
    %v3349 = vsub.f32 %v3223, %v3348
    %v3350 = vand.u32 %v3349, 4294901760
    %v3351 = vsub.f32 %v3349, %v3350
    %v3352 = vand.u32 %v3351, 4294901760
    %3353 = vmatpush1.xpose.msra.mxu0 %v3352
    %3354 = vmatprep.subr.mxu0 0.0
    %v3355 = vand.u32 %v3226, 4294901760
    %v3356 = vsub.f32 %v3226, %v3355
    %v3357 = vand.u32 %v3356, 4294901760
    %v3358 = vsub.f32 %v3356, %v3357
    %v3359 = vand.u32 %v3358, 4294901760
    %3360 = vmatpush1.xpose.msra.mxu0 %v3359
    %3361 = vmatprep.subr.mxu0 0.0
    %v3362 = vand.u32 %v3229, 4294901760
    %v3363 = vsub.f32 %v3229, %v3362
    %v3364 = vand.u32 %v3363, 4294901760
    %v3365 = vsub.f32 %v3363, %v3364
    %v3366 = vand.u32 %v3365, 4294901760
    %3367 = vmatpush1.xpose.msra.mxu0 %v3366
    %3368 = vmatprep.subr.mxu0 0.0
    %3369 = vmatpush1.xpose.msra.mxu0 0.0
    %3370 = vmatprep.subr.mxu0 0.0
    %3371 = vmatpush1.xpose.msra.mxu0 0.0
    %3372 = vmatprep.subr.mxu0 0.0
    %3373 = vmatpush1.xpose.msra.mxu0 0.0
    %3374 = vmatprep.subr.mxu0 0.0
    %3375 = vmatpush1.xpose.msra.mxu0 0.0
    %3376 = vmatprep.subr.mxu0 0.0
    %3377 = vmatpush1.xpose.msra.mxu0 0.0
    %3378 = vmatprep.subr.mxu0 0.0
    %3379 = vmatpush1.xpose.msra.mxu0 0.0
    %3380 = vmatprep.subr.mxu0 0.0
    %3381 = vmatpush1.xpose.msra.mxu0 0.0
    %3382 = vmatprep.subr.mxu0 0.0
    %3383 = vmatpush1.xpose.msra.mxu0 0.0
    %3384 = vmatprep.subr.mxu0 0.0
    %3385 = vmatpush1.xpose.msra.mxu0 0.0
    %3386 = vmatprep.subr.mxu0 0.0
    %3387 = vmatpush1.xpose.msra.mxu0 0.0
    %3388 = vmatprep.subr.mxu0 0.0
    %3389 = vmatpush1.xpose.msra.mxu0 0.0
    %3390 = vmatprep.subr.mxu0 0.0
    %3391 = vmatpush1.xpose.msra.mxu0 0.0
    %3392 = vmatprep.subr.mxu0 0.0
    %3393 = vmatpush1.xpose.msra.mxu0 0.0
    %3394 = vmatprep.subr.mxu0 0.0
    %3395 = vmatpush1.xpose.msra.mxu0 0.0
    %3396 = vmatprep.subr.mxu0 0.0
    %3397 = vmatpush1.xpose.msra.mxu0 0.0
    %3398 = vmatprep.subr.mxu0 0.0
    %3399 = vmatpush1.xpose.msra.mxu0 0.0
    %3400 = vmatprep.subr.mxu0 0.0
    %3401 = vmatpush1.xpose.msra.mxu0 0.0
    %3402 = vmatprep.subr.mxu0 0.0
    %3403 = vmatpush1.xpose.msra.mxu0 0.0
    %3404 = vmatprep.subr.mxu0 0.0
    %3405 = vmatpush1.xpose.msra.mxu0 0.0
    %3406 = vmatprep.subr.mxu0 0.0
    %3407 = vmatpush1.xpose.msra.mxu0 0.0
    %3408 = vmatprep.subr.mxu0 0.0
    %3409 = vmatpush1.xpose.msra.mxu0 0.0
    %3410 = vmatprep.subr.mxu0 0.0
    %3411 = vmatpush1.xpose.msra.mxu0 0.0
    %3412 = vmatprep.subr.mxu0 0.0
    %3413 = vmatpush1.xpose.msra.mxu0 0.0
    %3414 = vmatprep.subr.mxu0 0.0
    %3415 = vmatpush1.xpose.msra.mxu0 0.0
    %3416 = vmatprep.subr.mxu0 0.0
    %3417 = vmatpush1.xpose.msra.mxu0 0.0
    %3418 = vmatprep.subr.mxu0 0.0
    %3419 = vmatpush1.xpose.msra.mxu0 0.0
    %3420 = vmatprep.subr.mxu0 0.0
    %3421 = vmatpush1.xpose.msra.mxu0 0.0
    %3422 = vmatprep.subr.mxu0 0.0
    %3423 = vmatpush1.xpose.msra.mxu0 0.0
    %3424 = vmatprep.mubr.f32.mxu0 0.0
    %v3425 = vand.u32 %v3220, 4294901760
    %3426 = vmatmul.mubr.f32.gmra.mrb[0].mxu0 %v3425
    %v3427 = vpop.f32.mrb[0].mxu0
    %v3428 = vadd.f32 %v3307, %v3427
    %v3429 = vpop.f32.mrb[0].mxu0
    %3430 = vmatprep.mubr.f32.mxu0 0.0
    %v3431 = vand.u32 %v3223, 4294901760
    %3432 = vmatmul.mubr.f32.gmra.mrb[0].mxu0 %v3431
    %v3433 = vpop.f32.mrb[0].mxu0
    %v3434 = vadd.f32 %v3317, %v3433
    %v3435 = vpop.f32.mrb[0].mxu0
    %3436 = vmatprep.mubr.f32.mxu0 0.0
    %v3437 = vand.u32 %v3226, 4294901760
    %3438 = vmatmul.mubr.f32.gmra.mrb[0].mxu0 %v3437
    %v3439 = vpop.f32.mrb[0].mxu0
    %v3440 = vadd.f32 %v3327, %v3439
    %v3441 = vpop.f32.mrb[0].mxu0
    %3442 = vmatprep.mubr.f32.mxu0 0.0
    %v3443 = vand.u32 %v3229, 4294901760
    %3444 = vmatmul.mubr.f32.gmra.mrb[0].mxu0 %v3443
    %v3445 = vpop.f32.mrb[0].mxu0
    %v3446 = vadd.f32 %v3337, %v3445
    %v3447 = vpop.f32.mrb[0].mxu0
    %3448 = vdwg.mxu0
    %3449 = vmatprep.subr.mxu0 0.0
    %v3450 = vand.u32 %v3220, 4294901760
    %v3451 = vsub.f32 %v3220, %v3450
    %3452 = vmatpush1.xpose.msra.mxu0 %v3451
    %3453 = vmatprep.subr.mxu0 0.0
    %v3454 = vand.u32 %v3223, 4294901760
    %v3455 = vsub.f32 %v3223, %v3454
    %3456 = vmatpush1.xpose.msra.mxu0 %v3455
    %3457 = vmatprep.subr.mxu0 0.0
    %v3458 = vand.u32 %v3226, 4294901760
    %v3459 = vsub.f32 %v3226, %v3458
    %3460 = vmatpush1.xpose.msra.mxu0 %v3459
    %3461 = vmatprep.subr.mxu0 0.0
    %v3462 = vand.u32 %v3229, 4294901760
    %v3463 = vsub.f32 %v3229, %v3462
    %3464 = vmatpush1.xpose.msra.mxu0 %v3463
    %3465 = vmatprep.subr.mxu0 0.0
    %3466 = vmatpush1.xpose.msra.mxu0 0.0
    %3467 = vmatprep.subr.mxu0 0.0
    %3468 = vmatpush1.xpose.msra.mxu0 0.0
    %3469 = vmatprep.subr.mxu0 0.0
    %3470 = vmatpush1.xpose.msra.mxu0 0.0
    %3471 = vmatprep.subr.mxu0 0.0
    %3472 = vmatpush1.xpose.msra.mxu0 0.0
    %3473 = vmatprep.subr.mxu0 0.0
    %3474 = vmatpush1.xpose.msra.mxu0 0.0
    %3475 = vmatprep.subr.mxu0 0.0
    %3476 = vmatpush1.xpose.msra.mxu0 0.0
    %3477 = vmatprep.subr.mxu0 0.0
    %3478 = vmatpush1.xpose.msra.mxu0 0.0
    %3479 = vmatprep.subr.mxu0 0.0
    %3480 = vmatpush1.xpose.msra.mxu0 0.0
    %3481 = vmatprep.subr.mxu0 0.0
    %3482 = vmatpush1.xpose.msra.mxu0 0.0
    %3483 = vmatprep.subr.mxu0 0.0
    %3484 = vmatpush1.xpose.msra.mxu0 0.0
    %3485 = vmatprep.subr.mxu0 0.0
    %3486 = vmatpush1.xpose.msra.mxu0 0.0
    %3487 = vmatprep.subr.mxu0 0.0
    %3488 = vmatpush1.xpose.msra.mxu0 0.0
    %3489 = vmatprep.subr.mxu0 0.0
    %3490 = vmatpush1.xpose.msra.mxu0 0.0
    %3491 = vmatprep.subr.mxu0 0.0
    %3492 = vmatpush1.xpose.msra.mxu0 0.0
    %3493 = vmatprep.subr.mxu0 0.0
    %3494 = vmatpush1.xpose.msra.mxu0 0.0
    %3495 = vmatprep.subr.mxu0 0.0
    %3496 = vmatpush1.xpose.msra.mxu0 0.0
    %3497 = vmatprep.subr.mxu0 0.0
    %3498 = vmatpush1.xpose.msra.mxu0 0.0
    %3499 = vmatprep.subr.mxu0 0.0
    %3500 = vmatpush1.xpose.msra.mxu0 0.0
    %3501 = vmatprep.subr.mxu0 0.0
    %3502 = vmatpush1.xpose.msra.mxu0 0.0
    %3503 = vmatprep.subr.mxu0 0.0
    %3504 = vmatpush1.xpose.msra.mxu0 0.0
    %3505 = vmatprep.subr.mxu0 0.0
    %3506 = vmatpush1.xpose.msra.mxu0 0.0
    %3507 = vmatprep.subr.mxu0 0.0
    %3508 = vmatpush1.xpose.msra.mxu0 0.0
    %3509 = vmatprep.subr.mxu0 0.0
    %3510 = vmatpush1.xpose.msra.mxu0 0.0
    %3511 = vmatprep.subr.mxu0 0.0
    %3512 = vmatpush1.xpose.msra.mxu0 0.0
    %3513 = vmatprep.subr.mxu0 0.0
    %3514 = vmatpush1.xpose.msra.mxu0 0.0
    %3515 = vmatprep.subr.mxu0 0.0
    %3516 = vmatpush1.xpose.msra.mxu0 0.0
    %3517 = vmatprep.subr.mxu0 0.0
    %3518 = vmatpush1.xpose.msra.mxu0 0.0
    %3519 = vmatprep.subr.mxu0 0.0
    %3520 = vmatpush1.xpose.msra.mxu0 0.0
    %3521 = vmatprep.mubr.f32.mxu0 0.0
    %v3522 = vand.u32 %v3220, 4294901760
    %v3523 = vsub.f32 %v3220, %v3522
    %3524 = vmatmul.mubr.f32.gmra.mrb[0].mxu0 %v3523
    %v3525 = vpop.f32.mrb[0].mxu0
    %v3526 = vadd.f32 %v3428, %v3525
    %v3527 = vpop.f32.mrb[0].mxu0
    %3528 = vmatprep.mubr.f32.mxu0 0.0
    %v3529 = vand.u32 %v3223, 4294901760
    %v3530 = vsub.f32 %v3223, %v3529
    %3531 = vmatmul.mubr.f32.gmra.mrb[0].mxu0 %v3530
    %v3532 = vpop.f32.mrb[0].mxu0
    %v3533 = vadd.f32 %v3434, %v3532
    %v3534 = vpop.f32.mrb[0].mxu0
    %3535 = vmatprep.mubr.f32.mxu0 0.0
    %v3536 = vand.u32 %v3226, 4294901760
    %v3537 = vsub.f32 %v3226, %v3536
    %3538 = vmatmul.mubr.f32.gmra.mrb[0].mxu0 %v3537
    %v3539 = vpop.f32.mrb[0].mxu0
    %v3540 = vadd.f32 %v3440, %v3539
    %v3541 = vpop.f32.mrb[0].mxu0
    %3542 = vmatprep.mubr.f32.mxu0 0.0
    %v3543 = vand.u32 %v3229, 4294901760
    %v3544 = vsub.f32 %v3229, %v3543
    %3545 = vmatmul.mubr.f32.gmra.mrb[0].mxu0 %v3544
    %v3546 = vpop.f32.mrb[0].mxu0
    %v3547 = vadd.f32 %v3446, %v3546
    %v3548 = vpop.f32.mrb[0].mxu0
    %3549 = vdwg.mxu0
    %3550 = vmatprep.subr.mxu0 0.0
    %v3551 = vand.u32 %v3220, 4294901760
    %3552 = vmatpush1.xpose.msra.mxu0 %v3551
    %3553 = vmatprep.subr.mxu0 0.0
    %v3554 = vand.u32 %v3223, 4294901760
    %3555 = vmatpush1.xpose.msra.mxu0 %v3554
    %3556 = vmatprep.subr.mxu0 0.0
    %v3557 = vand.u32 %v3226, 4294901760
    %3558 = vmatpush1.xpose.msra.mxu0 %v3557
    %3559 = vmatprep.subr.mxu0 0.0
    %v3560 = vand.u32 %v3229, 4294901760
    %3561 = vmatpush1.xpose.msra.mxu0 %v3560
    %3562 = vmatprep.subr.mxu0 0.0
    %3563 = vmatpush1.xpose.msra.mxu0 0.0
    %3564 = vmatprep.subr.mxu0 0.0
    %3565 = vmatpush1.xpose.msra.mxu0 0.0
    %3566 = vmatprep.subr.mxu0 0.0
    %3567 = vmatpush1.xpose.msra.mxu0 0.0
    %3568 = vmatprep.subr.mxu0 0.0
    %3569 = vmatpush1.xpose.msra.mxu0 0.0
    %3570 = vmatprep.subr.mxu0 0.0
    %3571 = vmatpush1.xpose.msra.mxu0 0.0
    %3572 = vmatprep.subr.mxu0 0.0
    %3573 = vmatpush1.xpose.msra.mxu0 0.0
    %3574 = vmatprep.subr.mxu0 0.0
    %3575 = vmatpush1.xpose.msra.mxu0 0.0
    %3576 = vmatprep.subr.mxu0 0.0
    %3577 = vmatpush1.xpose.msra.mxu0 0.0
    %3578 = vmatprep.subr.mxu0 0.0
    %3579 = vmatpush1.xpose.msra.mxu0 0.0
    %3580 = vmatprep.subr.mxu0 0.0
    %3581 = vmatpush1.xpose.msra.mxu0 0.0
    %3582 = vmatprep.subr.mxu0 0.0
    %3583 = vmatpush1.xpose.msra.mxu0 0.0
    %3584 = vmatprep.subr.mxu0 0.0
    %3585 = vmatpush1.xpose.msra.mxu0 0.0
    %3586 = vmatprep.subr.mxu0 0.0
    %3587 = vmatpush1.xpose.msra.mxu0 0.0
    %3588 = vmatprep.subr.mxu0 0.0
    %3589 = vmatpush1.xpose.msra.mxu0 0.0
    %3590 = vmatprep.subr.mxu0 0.0
    %3591 = vmatpush1.xpose.msra.mxu0 0.0
    %3592 = vmatprep.subr.mxu0 0.0
    %3593 = vmatpush1.xpose.msra.mxu0 0.0
    %3594 = vmatprep.subr.mxu0 0.0
    %3595 = vmatpush1.xpose.msra.mxu0 0.0
    %3596 = vmatprep.subr.mxu0 0.0
    %3597 = vmatpush1.xpose.msra.mxu0 0.0
    %3598 = vmatprep.subr.mxu0 0.0
    %3599 = vmatpush1.xpose.msra.mxu0 0.0
    %3600 = vmatprep.subr.mxu0 0.0
    %3601 = vmatpush1.xpose.msra.mxu0 0.0
    %3602 = vmatprep.subr.mxu0 0.0
    %3603 = vmatpush1.xpose.msra.mxu0 0.0
    %3604 = vmatprep.subr.mxu0 0.0
    %3605 = vmatpush1.xpose.msra.mxu0 0.0
    %3606 = vmatprep.subr.mxu0 0.0
    %3607 = vmatpush1.xpose.msra.mxu0 0.0
    %3608 = vmatprep.subr.mxu0 0.0
    %3609 = vmatpush1.xpose.msra.mxu0 0.0
    %3610 = vmatprep.subr.mxu0 0.0
    %3611 = vmatpush1.xpose.msra.mxu0 0.0
    %3612 = vmatprep.subr.mxu0 0.0
    %3613 = vmatpush1.xpose.msra.mxu0 0.0
    %3614 = vmatprep.subr.mxu0 0.0
    %3615 = vmatpush1.xpose.msra.mxu0 0.0
    %3616 = vmatprep.subr.mxu0 0.0
    %3617 = vmatpush1.xpose.msra.mxu0 0.0
    %3618 = vmatprep.mubr.f32.mxu0 0.0
    %v3619 = vand.u32 %v3220, 4294901760
    %v3620 = vsub.f32 %v3220, %v3619
    %v3621 = vand.u32 %v3620, 4294901760
    %3622 = vmatmul.mubr.f32.gmra.mrb[0].mxu0 %v3621
    %v3623 = vpop.f32.mrb[0].mxu0
    %v3624 = vadd.f32 %v3526, %v3623
    %v3625 = vpop.f32.mrb[0].mxu0
    %3626 = vmatprep.mubr.f32.mxu0 0.0
    %v3627 = vand.u32 %v3223, 4294901760
    %v3628 = vsub.f32 %v3223, %v3627
    %v3629 = vand.u32 %v3628, 4294901760
    %3630 = vmatmul.mubr.f32.gmra.mrb[0].mxu0 %v3629
    %v3631 = vpop.f32.mrb[0].mxu0
    %v3632 = vadd.f32 %v3533, %v3631
    %v3633 = vpop.f32.mrb[0].mxu0
    %3634 = vmatprep.mubr.f32.mxu0 0.0
    %v3635 = vand.u32 %v3226, 4294901760
    %v3636 = vsub.f32 %v3226, %v3635
    %v3637 = vand.u32 %v3636, 4294901760
    %3638 = vmatmul.mubr.f32.gmra.mrb[0].mxu0 %v3637
    %v3639 = vpop.f32.mrb[0].mxu0
    %v3640 = vadd.f32 %v3540, %v3639
    %v3641 = vpop.f32.mrb[0].mxu0
    %3642 = vmatprep.mubr.f32.mxu0 0.0
    %v3643 = vand.u32 %v3229, 4294901760
    %v3644 = vsub.f32 %v3229, %v3643
    %v3645 = vand.u32 %v3644, 4294901760
    %3646 = vmatmul.mubr.f32.gmra.mrb[0].mxu0 %v3645
    %v3647 = vpop.f32.mrb[0].mxu0
    %v3648 = vadd.f32 %v3547, %v3647
    %v3649 = vpop.f32.mrb[0].mxu0
    %3650 = vdwg.mxu0
    %3651 = vmatprep.subr.mxu0 0.0
    %v3652 = vand.u32 %v3220, 4294901760
    %v3653 = vsub.f32 %v3220, %v3652
    %v3654 = vand.u32 %v3653, 4294901760
    %3655 = vmatpush1.xpose.msra.mxu0 %v3654
    %3656 = vmatprep.subr.mxu0 0.0
    %v3657 = vand.u32 %v3223, 4294901760
    %v3658 = vsub.f32 %v3223, %v3657
    %v3659 = vand.u32 %v3658, 4294901760
    %3660 = vmatpush1.xpose.msra.mxu0 %v3659
    %3661 = vmatprep.subr.mxu0 0.0
    %v3662 = vand.u32 %v3226, 4294901760
    %v3663 = vsub.f32 %v3226, %v3662
    %v3664 = vand.u32 %v3663, 4294901760
    %3665 = vmatpush1.xpose.msra.mxu0 %v3664
    %3666 = vmatprep.subr.mxu0 0.0
    %v3667 = vand.u32 %v3229, 4294901760
    %v3668 = vsub.f32 %v3229, %v3667
    %v3669 = vand.u32 %v3668, 4294901760
    %3670 = vmatpush1.xpose.msra.mxu0 %v3669
    %3671 = vmatprep.subr.mxu0 0.0
    %3672 = vmatpush1.xpose.msra.mxu0 0.0
    %3673 = vmatprep.subr.mxu0 0.0
    %3674 = vmatpush1.xpose.msra.mxu0 0.0
    %3675 = vmatprep.subr.mxu0 0.0
    %3676 = vmatpush1.xpose.msra.mxu0 0.0
    %3677 = vmatprep.subr.mxu0 0.0
    %3678 = vmatpush1.xpose.msra.mxu0 0.0
    %3679 = vmatprep.subr.mxu0 0.0
    %3680 = vmatpush1.xpose.msra.mxu0 0.0
    %3681 = vmatprep.subr.mxu0 0.0
    %3682 = vmatpush1.xpose.msra.mxu0 0.0
    %3683 = vmatprep.subr.mxu0 0.0
    %3684 = vmatpush1.xpose.msra.mxu0 0.0
    %3685 = vmatprep.subr.mxu0 0.0
    %3686 = vmatpush1.xpose.msra.mxu0 0.0
    %3687 = vmatprep.subr.mxu0 0.0
    %3688 = vmatpush1.xpose.msra.mxu0 0.0
    %3689 = vmatprep.subr.mxu0 0.0
    %3690 = vmatpush1.xpose.msra.mxu0 0.0
    %3691 = vmatprep.subr.mxu0 0.0
    %3692 = vmatpush1.xpose.msra.mxu0 0.0
    %3693 = vmatprep.subr.mxu0 0.0
    %3694 = vmatpush1.xpose.msra.mxu0 0.0
    %3695 = vmatprep.subr.mxu0 0.0
    %3696 = vmatpush1.xpose.msra.mxu0 0.0
    %3697 = vmatprep.subr.mxu0 0.0
    %3698 = vmatpush1.xpose.msra.mxu0 0.0
    %3699 = vmatprep.subr.mxu0 0.0
    %3700 = vmatpush1.xpose.msra.mxu0 0.0
    %3701 = vmatprep.subr.mxu0 0.0
    %3702 = vmatpush1.xpose.msra.mxu0 0.0
    %3703 = vmatprep.subr.mxu0 0.0
    %3704 = vmatpush1.xpose.msra.mxu0 0.0
    %3705 = vmatprep.subr.mxu0 0.0
    %3706 = vmatpush1.xpose.msra.mxu0 0.0
    %3707 = vmatprep.subr.mxu0 0.0
    %3708 = vmatpush1.xpose.msra.mxu0 0.0
    %3709 = vmatprep.subr.mxu0 0.0
    %3710 = vmatpush1.xpose.msra.mxu0 0.0
    %3711 = vmatprep.subr.mxu0 0.0
    %3712 = vmatpush1.xpose.msra.mxu0 0.0
    %3713 = vmatprep.subr.mxu0 0.0
    %3714 = vmatpush1.xpose.msra.mxu0 0.0
    %3715 = vmatprep.subr.mxu0 0.0
    %3716 = vmatpush1.xpose.msra.mxu0 0.0
    %3717 = vmatprep.subr.mxu0 0.0
    %3718 = vmatpush1.xpose.msra.mxu0 0.0
    %3719 = vmatprep.subr.mxu0 0.0
    %3720 = vmatpush1.xpose.msra.mxu0 0.0
    %3721 = vmatprep.subr.mxu0 0.0
    %3722 = vmatpush1.xpose.msra.mxu0 0.0
    %3723 = vmatprep.subr.mxu0 0.0
    %3724 = vmatpush1.xpose.msra.mxu0 0.0
    %3725 = vmatprep.subr.mxu0 0.0
    %3726 = vmatpush1.xpose.msra.mxu0 0.0
    %3727 = vmatprep.mubr.f32.mxu0 0.0
    %v3728 = vand.u32 %v3220, 4294901760
    %3729 = vmatmul.mubr.f32.gmra.mrb[0].mxu0 %v3728
    %v3730 = vpop.f32.mrb[0].mxu0
    %v3731 = vadd.f32 %v3624, %v3730
    %v3732 = vpop.f32.mrb[0].mxu0
    %3733 = vmatprep.mubr.f32.mxu0 0.0
    %v3734 = vand.u32 %v3223, 4294901760
    %3735 = vmatmul.mubr.f32.gmra.mrb[0].mxu0 %v3734
    %v3736 = vpop.f32.mrb[0].mxu0
    %v3737 = vadd.f32 %v3632, %v3736
    %v3738 = vpop.f32.mrb[0].mxu0
    %3739 = vmatprep.mubr.f32.mxu0 0.0
    %v3740 = vand.u32 %v3226, 4294901760
    %3741 = vmatmul.mubr.f32.gmra.mrb[0].mxu0 %v3740
    %v3742 = vpop.f32.mrb[0].mxu0
    %v3743 = vadd.f32 %v3640, %v3742
    %v3744 = vpop.f32.mrb[0].mxu0
    %3745 = vmatprep.mubr.f32.mxu0 0.0
    %v3746 = vand.u32 %v3229, 4294901760
    %3747 = vmatmul.mubr.f32.gmra.mrb[0].mxu0 %v3746
    %v3748 = vpop.f32.mrb[0].mxu0
    %v3749 = vadd.f32 %v3648, %v3748
    %v3750 = vpop.f32.mrb[0].mxu0
    %3751 = vdwg.mxu0
    %3752 = vmatprep.subr.mxu0 0.0
    %v3753 = vand.u32 %v3220, 4294901760
    %3754 = vmatpush1.xpose.msra.mxu0 %v3753
    %3755 = vmatprep.subr.mxu0 0.0
    %v3756 = vand.u32 %v3223, 4294901760
    %3757 = vmatpush1.xpose.msra.mxu0 %v3756
    %3758 = vmatprep.subr.mxu0 0.0
    %v3759 = vand.u32 %v3226, 4294901760
    %3760 = vmatpush1.xpose.msra.mxu0 %v3759
    %3761 = vmatprep.subr.mxu0 0.0
    %v3762 = vand.u32 %v3229, 4294901760
    %3763 = vmatpush1.xpose.msra.mxu0 %v3762
    %3764 = vmatprep.subr.mxu0 0.0
    %3765 = vmatpush1.xpose.msra.mxu0 0.0
    %3766 = vmatprep.subr.mxu0 0.0
    %3767 = vmatpush1.xpose.msra.mxu0 0.0
    %3768 = vmatprep.subr.mxu0 0.0
    %3769 = vmatpush1.xpose.msra.mxu0 0.0
    %3770 = vmatprep.subr.mxu0 0.0
    %3771 = vmatpush1.xpose.msra.mxu0 0.0
    %3772 = vmatprep.subr.mxu0 0.0
    %3773 = vmatpush1.xpose.msra.mxu0 0.0
    %3774 = vmatprep.subr.mxu0 0.0
    %3775 = vmatpush1.xpose.msra.mxu0 0.0
    %3776 = vmatprep.subr.mxu0 0.0
    %3777 = vmatpush1.xpose.msra.mxu0 0.0
    %3778 = vmatprep.subr.mxu0 0.0
    %3779 = vmatpush1.xpose.msra.mxu0 0.0
    %3780 = vmatprep.subr.mxu0 0.0
    %3781 = vmatpush1.xpose.msra.mxu0 0.0
    %3782 = vmatprep.subr.mxu0 0.0
    %3783 = vmatpush1.xpose.msra.mxu0 0.0
    %3784 = vmatprep.subr.mxu0 0.0
    %3785 = vmatpush1.xpose.msra.mxu0 0.0
    %3786 = vmatprep.subr.mxu0 0.0
    %3787 = vmatpush1.xpose.msra.mxu0 0.0
    %3788 = vmatprep.subr.mxu0 0.0
    %3789 = vmatpush1.xpose.msra.mxu0 0.0
    %3790 = vmatprep.subr.mxu0 0.0
    %3791 = vmatpush1.xpose.msra.mxu0 0.0
    %3792 = vmatprep.subr.mxu0 0.0
    %3793 = vmatpush1.xpose.msra.mxu0 0.0
    %3794 = vmatprep.subr.mxu0 0.0
    %3795 = vmatpush1.xpose.msra.mxu0 0.0
    %3796 = vmatprep.subr.mxu0 0.0
    %3797 = vmatpush1.xpose.msra.mxu0 0.0
    %3798 = vmatprep.subr.mxu0 0.0
    %3799 = vmatpush1.xpose.msra.mxu0 0.0
    %3800 = vmatprep.subr.mxu0 0.0
    %3801 = vmatpush1.xpose.msra.mxu0 0.0
    %3802 = vmatprep.subr.mxu0 0.0
    %3803 = vmatpush1.xpose.msra.mxu0 0.0
    %3804 = vmatprep.subr.mxu0 0.0
    %3805 = vmatpush1.xpose.msra.mxu0 0.0
    %3806 = vmatprep.subr.mxu0 0.0
    %3807 = vmatpush1.xpose.msra.mxu0 0.0
    %3808 = vmatprep.subr.mxu0 0.0
    %3809 = vmatpush1.xpose.msra.mxu0 0.0
    %3810 = vmatprep.subr.mxu0 0.0
    %3811 = vmatpush1.xpose.msra.mxu0 0.0
    %3812 = vmatprep.subr.mxu0 0.0
    %3813 = vmatpush1.xpose.msra.mxu0 0.0
    %3814 = vmatprep.subr.mxu0 0.0
    %3815 = vmatpush1.xpose.msra.mxu0 0.0
    %3816 = vmatprep.subr.mxu0 0.0
    %3817 = vmatpush1.xpose.msra.mxu0 0.0
    %3818 = vmatprep.subr.mxu0 0.0
    %3819 = vmatpush1.xpose.msra.mxu0 0.0
    %3820 = vmatprep.mubr.f32.mxu0 0.0
    %v3821 = vand.u32 %v3220, 4294901760
    %3822 = vmatmul.mubr.f32.gmra.mrb[0].mxu0 %v3821
    %v3823 = vpop.f32.mrb[0].mxu0
    %v3824 = vadd.f32 %v3731, %v3823
    %v3825 = vpop.f32.mrb[0].mxu0
    %3826 = vmatprep.mubr.f32.mxu0 0.0
    %v3827 = vand.u32 %v3223, 4294901760
    %3828 = vmatmul.mubr.f32.gmra.mrb[0].mxu0 %v3827
    %v3829 = vpop.f32.mrb[0].mxu0
    %v3830 = vadd.f32 %v3737, %v3829
    %v3831 = vpop.f32.mrb[0].mxu0
    %3832 = vmatprep.mubr.f32.mxu0 0.0
    %v3833 = vand.u32 %v3226, 4294901760
    %3834 = vmatmul.mubr.f32.gmra.mrb[0].mxu0 %v3833
    %v3835 = vpop.f32.mrb[0].mxu0
    %v3836 = vadd.f32 %v3743, %v3835
    %v3837 = vpop.f32.mrb[0].mxu0
    %3838 = vmatprep.mubr.f32.mxu0 0.0
    %v3839 = vand.u32 %v3229, 4294901760
    %3840 = vmatmul.mubr.f32.gmra.mrb[0].mxu0 %v3839
    %v3841 = vpop.f32.mrb[0].mxu0
    %v3842 = vadd.f32 %v3749, %v3841
    %v3843 = vpop.f32.mrb[0].mxu0
    %3844 = vdwg.mxu0
    %v3846 = vsel %vm88, %v80, 0
    %v3849 = vsel %vm88, %v81, 0
    %v3852 = vsel %vm88, %v82, 0
    %v3855 = vsel %vm88, %v83, 0
    %3857 = vmatprep.subr.mxu0 0.0
    %v3858 = vand.u32 %v3846, 4294901760
    %3859 = vmatpush1.xpose.msra.mxu0 %v3858
    %3860 = vmatprep.subr.mxu0 0.0
    %v3861 = vand.u32 %v3849, 4294901760
    %3862 = vmatpush1.xpose.msra.mxu0 %v3861
    %3863 = vmatprep.subr.mxu0 0.0
    %v3864 = vand.u32 %v3852, 4294901760
    %3865 = vmatpush1.xpose.msra.mxu0 %v3864
    %3866 = vmatprep.subr.mxu0 0.0
    %v3867 = vand.u32 %v3855, 4294901760
    %3868 = vmatpush1.xpose.msra.mxu0 %v3867
    %3869 = vmatprep.subr.mxu0 0.0
    %3870 = vmatpush1.xpose.msra.mxu0 0.0
    %3871 = vmatprep.subr.mxu0 0.0
    %3872 = vmatpush1.xpose.msra.mxu0 0.0
    %3873 = vmatprep.subr.mxu0 0.0
    %3874 = vmatpush1.xpose.msra.mxu0 0.0
    %3875 = vmatprep.subr.mxu0 0.0
    %3876 = vmatpush1.xpose.msra.mxu0 0.0
    %3877 = vmatprep.subr.mxu0 0.0
    %3878 = vmatpush1.xpose.msra.mxu0 0.0
    %3879 = vmatprep.subr.mxu0 0.0
    %3880 = vmatpush1.xpose.msra.mxu0 0.0
    %3881 = vmatprep.subr.mxu0 0.0
    %3882 = vmatpush1.xpose.msra.mxu0 0.0
    %3883 = vmatprep.subr.mxu0 0.0
    %3884 = vmatpush1.xpose.msra.mxu0 0.0
    %3885 = vmatprep.subr.mxu0 0.0
    %3886 = vmatpush1.xpose.msra.mxu0 0.0
    %3887 = vmatprep.subr.mxu0 0.0
    %3888 = vmatpush1.xpose.msra.mxu0 0.0
    %3889 = vmatprep.subr.mxu0 0.0
    %3890 = vmatpush1.xpose.msra.mxu0 0.0
    %3891 = vmatprep.subr.mxu0 0.0
    %3892 = vmatpush1.xpose.msra.mxu0 0.0
    %3893 = vmatprep.subr.mxu0 0.0
    %3894 = vmatpush1.xpose.msra.mxu0 0.0
    %3895 = vmatprep.subr.mxu0 0.0
    %3896 = vmatpush1.xpose.msra.mxu0 0.0
    %3897 = vmatprep.subr.mxu0 0.0
    %3898 = vmatpush1.xpose.msra.mxu0 0.0
    %3899 = vmatprep.subr.mxu0 0.0
    %3900 = vmatpush1.xpose.msra.mxu0 0.0
    %3901 = vmatprep.subr.mxu0 0.0
    %3902 = vmatpush1.xpose.msra.mxu0 0.0
    %3903 = vmatprep.subr.mxu0 0.0
    %3904 = vmatpush1.xpose.msra.mxu0 0.0
    %3905 = vmatprep.subr.mxu0 0.0
    %3906 = vmatpush1.xpose.msra.mxu0 0.0
    %3907 = vmatprep.subr.mxu0 0.0
    %3908 = vmatpush1.xpose.msra.mxu0 0.0
    %3909 = vmatprep.subr.mxu0 0.0
    %3910 = vmatpush1.xpose.msra.mxu0 0.0
    %3911 = vmatprep.subr.mxu0 0.0
    %3912 = vmatpush1.xpose.msra.mxu0 0.0
    %3913 = vmatprep.subr.mxu0 0.0
    %3914 = vmatpush1.xpose.msra.mxu0 0.0
    %3915 = vmatprep.subr.mxu0 0.0
    %3916 = vmatpush1.xpose.msra.mxu0 0.0
    %3917 = vmatprep.subr.mxu0 0.0
    %3918 = vmatpush1.xpose.msra.mxu0 0.0
    %3919 = vmatprep.subr.mxu0 0.0
    %3920 = vmatpush1.xpose.msra.mxu0 0.0
    %3921 = vmatprep.subr.mxu0 0.0
    %3922 = vmatpush1.xpose.msra.mxu0 0.0
    %3923 = vmatprep.subr.mxu0 0.0
    %3924 = vmatpush1.xpose.msra.mxu0 0.0
    %3925 = vmatprep.mubr.f32.mxu0 0.0
    %v3926 = vand.u32 %v3846, 4294901760
    %v3927 = vsub.f32 %v3846, %v3926
    %v3928 = vand.u32 %v3927, 4294901760
    %v3929 = vsub.f32 %v3927, %v3928
    %v3930 = vand.u32 %v3929, 4294901760
    %3931 = vmatmul.mubr.f32.gmra.mrb[0].mxu0 %v3930
    %v3932 = vpop.f32.mrb[0].mxu0
    %v3933 = vadd.f32 0.0, %v3932
    %v3934 = vpop.f32.mrb[0].mxu0
    %3935 = vmatprep.mubr.f32.mxu0 0.0
    %v3936 = vand.u32 %v3849, 4294901760
    %v3937 = vsub.f32 %v3849, %v3936
    %v3938 = vand.u32 %v3937, 4294901760
    %v3939 = vsub.f32 %v3937, %v3938
    %v3940 = vand.u32 %v3939, 4294901760
    %3941 = vmatmul.mubr.f32.gmra.mrb[0].mxu0 %v3940
    %v3942 = vpop.f32.mrb[0].mxu0
    %v3943 = vadd.f32 0.0, %v3942
    %v3944 = vpop.f32.mrb[0].mxu0
    %3945 = vmatprep.mubr.f32.mxu0 0.0
    %v3946 = vand.u32 %v3852, 4294901760
    %v3947 = vsub.f32 %v3852, %v3946
    %v3948 = vand.u32 %v3947, 4294901760
    %v3949 = vsub.f32 %v3947, %v3948
    %v3950 = vand.u32 %v3949, 4294901760
    %3951 = vmatmul.mubr.f32.gmra.mrb[0].mxu0 %v3950
    %v3952 = vpop.f32.mrb[0].mxu0
    %v3953 = vadd.f32 0.0, %v3952
    %v3954 = vpop.f32.mrb[0].mxu0
    %3955 = vmatprep.mubr.f32.mxu0 0.0
    %v3956 = vand.u32 %v3855, 4294901760
    %v3957 = vsub.f32 %v3855, %v3956
    %v3958 = vand.u32 %v3957, 4294901760
    %v3959 = vsub.f32 %v3957, %v3958
    %v3960 = vand.u32 %v3959, 4294901760
    %3961 = vmatmul.mubr.f32.gmra.mrb[0].mxu0 %v3960
    %v3962 = vpop.f32.mrb[0].mxu0
    %v3963 = vadd.f32 0.0, %v3962
    %v3964 = vpop.f32.mrb[0].mxu0
    %3965 = vdwg.mxu0
    %3966 = vmatprep.subr.mxu0 0.0
    %v3967 = vand.u32 %v3846, 4294901760
    %v3968 = vsub.f32 %v3846, %v3967
    %v3969 = vand.u32 %v3968, 4294901760
    %v3970 = vsub.f32 %v3968, %v3969
    %v3971 = vand.u32 %v3970, 4294901760
    %3972 = vmatpush1.xpose.msra.mxu0 %v3971
    %3973 = vmatprep.subr.mxu0 0.0
    %v3974 = vand.u32 %v3849, 4294901760
    %v3975 = vsub.f32 %v3849, %v3974
    %v3976 = vand.u32 %v3975, 4294901760
    %v3977 = vsub.f32 %v3975, %v3976
    %v3978 = vand.u32 %v3977, 4294901760
    %3979 = vmatpush1.xpose.msra.mxu0 %v3978
    %3980 = vmatprep.subr.mxu0 0.0
    %v3981 = vand.u32 %v3852, 4294901760
    %v3982 = vsub.f32 %v3852, %v3981
    %v3983 = vand.u32 %v3982, 4294901760
    %v3984 = vsub.f32 %v3982, %v3983
    %v3985 = vand.u32 %v3984, 4294901760
    %3986 = vmatpush1.xpose.msra.mxu0 %v3985
    %3987 = vmatprep.subr.mxu0 0.0
    %v3988 = vand.u32 %v3855, 4294901760
    %v3989 = vsub.f32 %v3855, %v3988
    %v3990 = vand.u32 %v3989, 4294901760
    %v3991 = vsub.f32 %v3989, %v3990
    %v3992 = vand.u32 %v3991, 4294901760
    %3993 = vmatpush1.xpose.msra.mxu0 %v3992
    %3994 = vmatprep.subr.mxu0 0.0
    %3995 = vmatpush1.xpose.msra.mxu0 0.0
    %3996 = vmatprep.subr.mxu0 0.0
    %3997 = vmatpush1.xpose.msra.mxu0 0.0
    %3998 = vmatprep.subr.mxu0 0.0
    %3999 = vmatpush1.xpose.msra.mxu0 0.0
    %4000 = vmatprep.subr.mxu0 0.0
    %4001 = vmatpush1.xpose.msra.mxu0 0.0
    %4002 = vmatprep.subr.mxu0 0.0
    %4003 = vmatpush1.xpose.msra.mxu0 0.0
    %4004 = vmatprep.subr.mxu0 0.0
    %4005 = vmatpush1.xpose.msra.mxu0 0.0
    %4006 = vmatprep.subr.mxu0 0.0
    %4007 = vmatpush1.xpose.msra.mxu0 0.0
    %4008 = vmatprep.subr.mxu0 0.0
    %4009 = vmatpush1.xpose.msra.mxu0 0.0
    %4010 = vmatprep.subr.mxu0 0.0
    %4011 = vmatpush1.xpose.msra.mxu0 0.0
    %4012 = vmatprep.subr.mxu0 0.0
    %4013 = vmatpush1.xpose.msra.mxu0 0.0
    %4014 = vmatprep.subr.mxu0 0.0
    %4015 = vmatpush1.xpose.msra.mxu0 0.0
    %4016 = vmatprep.subr.mxu0 0.0
    %4017 = vmatpush1.xpose.msra.mxu0 0.0
    %4018 = vmatprep.subr.mxu0 0.0
    %4019 = vmatpush1.xpose.msra.mxu0 0.0
    %4020 = vmatprep.subr.mxu0 0.0
    %4021 = vmatpush1.xpose.msra.mxu0 0.0
    %4022 = vmatprep.subr.mxu0 0.0
    %4023 = vmatpush1.xpose.msra.mxu0 0.0
    %4024 = vmatprep.subr.mxu0 0.0
    %4025 = vmatpush1.xpose.msra.mxu0 0.0
    %4026 = vmatprep.subr.mxu0 0.0
    %4027 = vmatpush1.xpose.msra.mxu0 0.0
    %4028 = vmatprep.subr.mxu0 0.0
    %4029 = vmatpush1.xpose.msra.mxu0 0.0
    %4030 = vmatprep.subr.mxu0 0.0
    %4031 = vmatpush1.xpose.msra.mxu0 0.0
    %4032 = vmatprep.subr.mxu0 0.0
    %4033 = vmatpush1.xpose.msra.mxu0 0.0
    %4034 = vmatprep.subr.mxu0 0.0
    %4035 = vmatpush1.xpose.msra.mxu0 0.0
    %4036 = vmatprep.subr.mxu0 0.0
    %4037 = vmatpush1.xpose.msra.mxu0 0.0
    %4038 = vmatprep.subr.mxu0 0.0
    %4039 = vmatpush1.xpose.msra.mxu0 0.0
    %4040 = vmatprep.subr.mxu0 0.0
    %4041 = vmatpush1.xpose.msra.mxu0 0.0
    %4042 = vmatprep.subr.mxu0 0.0
    %4043 = vmatpush1.xpose.msra.mxu0 0.0
    %4044 = vmatprep.subr.mxu0 0.0
    %4045 = vmatpush1.xpose.msra.mxu0 0.0
    %4046 = vmatprep.subr.mxu0 0.0
    %4047 = vmatpush1.xpose.msra.mxu0 0.0
    %4048 = vmatprep.subr.mxu0 0.0
    %4049 = vmatpush1.xpose.msra.mxu0 0.0
    %4050 = vmatprep.mubr.f32.mxu0 0.0
    %v4051 = vand.u32 %v3846, 4294901760
    %4052 = vmatmul.mubr.f32.gmra.mrb[0].mxu0 %v4051
    %v4053 = vpop.f32.mrb[0].mxu0
    %v4054 = vadd.f32 %v3933, %v4053
    %v4055 = vpop.f32.mrb[0].mxu0
    %4056 = vmatprep.mubr.f32.mxu0 0.0
    %v4057 = vand.u32 %v3849, 4294901760
    %4058 = vmatmul.mubr.f32.gmra.mrb[0].mxu0 %v4057
    %v4059 = vpop.f32.mrb[0].mxu0
    %v4060 = vadd.f32 %v3943, %v4059
    %v4061 = vpop.f32.mrb[0].mxu0
    %4062 = vmatprep.mubr.f32.mxu0 0.0
    %v4063 = vand.u32 %v3852, 4294901760
    %4064 = vmatmul.mubr.f32.gmra.mrb[0].mxu0 %v4063
    %v4065 = vpop.f32.mrb[0].mxu0
    %v4066 = vadd.f32 %v3953, %v4065
    %v4067 = vpop.f32.mrb[0].mxu0
    %4068 = vmatprep.mubr.f32.mxu0 0.0
    %v4069 = vand.u32 %v3855, 4294901760
    %4070 = vmatmul.mubr.f32.gmra.mrb[0].mxu0 %v4069
    %v4071 = vpop.f32.mrb[0].mxu0
    %v4072 = vadd.f32 %v3963, %v4071
    %v4073 = vpop.f32.mrb[0].mxu0
    %4074 = vdwg.mxu0
    %4075 = vmatprep.subr.mxu0 0.0
    %v4076 = vand.u32 %v3846, 4294901760
    %v4077 = vsub.f32 %v3846, %v4076
    %4078 = vmatpush1.xpose.msra.mxu0 %v4077
    %4079 = vmatprep.subr.mxu0 0.0
    %v4080 = vand.u32 %v3849, 4294901760
    %v4081 = vsub.f32 %v3849, %v4080
    %4082 = vmatpush1.xpose.msra.mxu0 %v4081
    %4083 = vmatprep.subr.mxu0 0.0
    %v4084 = vand.u32 %v3852, 4294901760
    %v4085 = vsub.f32 %v3852, %v4084
    %4086 = vmatpush1.xpose.msra.mxu0 %v4085
    %4087 = vmatprep.subr.mxu0 0.0
    %v4088 = vand.u32 %v3855, 4294901760
    %v4089 = vsub.f32 %v3855, %v4088
    %4090 = vmatpush1.xpose.msra.mxu0 %v4089
    %4091 = vmatprep.subr.mxu0 0.0
    %4092 = vmatpush1.xpose.msra.mxu0 0.0
    %4093 = vmatprep.subr.mxu0 0.0
    %4094 = vmatpush1.xpose.msra.mxu0 0.0
    %4095 = vmatprep.subr.mxu0 0.0
    %4096 = vmatpush1.xpose.msra.mxu0 0.0
    %4097 = vmatprep.subr.mxu0 0.0
    %4098 = vmatpush1.xpose.msra.mxu0 0.0
    %4099 = vmatprep.subr.mxu0 0.0
    %4100 = vmatpush1.xpose.msra.mxu0 0.0
    %4101 = vmatprep.subr.mxu0 0.0
    %4102 = vmatpush1.xpose.msra.mxu0 0.0
    %4103 = vmatprep.subr.mxu0 0.0
    %4104 = vmatpush1.xpose.msra.mxu0 0.0
    %4105 = vmatprep.subr.mxu0 0.0
    %4106 = vmatpush1.xpose.msra.mxu0 0.0
    %4107 = vmatprep.subr.mxu0 0.0
    %4108 = vmatpush1.xpose.msra.mxu0 0.0
    %4109 = vmatprep.subr.mxu0 0.0
    %4110 = vmatpush1.xpose.msra.mxu0 0.0
    %4111 = vmatprep.subr.mxu0 0.0
    %4112 = vmatpush1.xpose.msra.mxu0 0.0
    %4113 = vmatprep.subr.mxu0 0.0
    %4114 = vmatpush1.xpose.msra.mxu0 0.0
    %4115 = vmatprep.subr.mxu0 0.0
    %4116 = vmatpush1.xpose.msra.mxu0 0.0
    %4117 = vmatprep.subr.mxu0 0.0
    %4118 = vmatpush1.xpose.msra.mxu0 0.0
    %4119 = vmatprep.subr.mxu0 0.0
    %4120 = vmatpush1.xpose.msra.mxu0 0.0
    %4121 = vmatprep.subr.mxu0 0.0
    %4122 = vmatpush1.xpose.msra.mxu0 0.0
    %4123 = vmatprep.subr.mxu0 0.0
    %4124 = vmatpush1.xpose.msra.mxu0 0.0
    %4125 = vmatprep.subr.mxu0 0.0
    %4126 = vmatpush1.xpose.msra.mxu0 0.0
    %4127 = vmatprep.subr.mxu0 0.0
    %4128 = vmatpush1.xpose.msra.mxu0 0.0
    %4129 = vmatprep.subr.mxu0 0.0
    %4130 = vmatpush1.xpose.msra.mxu0 0.0
    %4131 = vmatprep.subr.mxu0 0.0
    %4132 = vmatpush1.xpose.msra.mxu0 0.0
    %4133 = vmatprep.subr.mxu0 0.0
    %4134 = vmatpush1.xpose.msra.mxu0 0.0
    %4135 = vmatprep.subr.mxu0 0.0
    %4136 = vmatpush1.xpose.msra.mxu0 0.0
    %4137 = vmatprep.subr.mxu0 0.0
    %4138 = vmatpush1.xpose.msra.mxu0 0.0
    %4139 = vmatprep.subr.mxu0 0.0
    %4140 = vmatpush1.xpose.msra.mxu0 0.0
    %4141 = vmatprep.subr.mxu0 0.0
    %4142 = vmatpush1.xpose.msra.mxu0 0.0
    %4143 = vmatprep.subr.mxu0 0.0
    %4144 = vmatpush1.xpose.msra.mxu0 0.0
    %4145 = vmatprep.subr.mxu0 0.0
    %4146 = vmatpush1.xpose.msra.mxu0 0.0
    %4147 = vmatprep.mubr.f32.mxu0 0.0
    %v4148 = vand.u32 %v3846, 4294901760
    %v4149 = vsub.f32 %v3846, %v4148
    %4150 = vmatmul.mubr.f32.gmra.mrb[0].mxu0 %v4149
    %v4151 = vpop.f32.mrb[0].mxu0
    %v4152 = vadd.f32 %v4054, %v4151
    %v4153 = vpop.f32.mrb[0].mxu0
    %4154 = vmatprep.mubr.f32.mxu0 0.0
    %v4155 = vand.u32 %v3849, 4294901760
    %v4156 = vsub.f32 %v3849, %v4155
    %4157 = vmatmul.mubr.f32.gmra.mrb[0].mxu0 %v4156
    %v4158 = vpop.f32.mrb[0].mxu0
    %v4159 = vadd.f32 %v4060, %v4158
    %v4160 = vpop.f32.mrb[0].mxu0
    %4161 = vmatprep.mubr.f32.mxu0 0.0
    %v4162 = vand.u32 %v3852, 4294901760
    %v4163 = vsub.f32 %v3852, %v4162
    %4164 = vmatmul.mubr.f32.gmra.mrb[0].mxu0 %v4163
    %v4165 = vpop.f32.mrb[0].mxu0
    %v4166 = vadd.f32 %v4066, %v4165
    %v4167 = vpop.f32.mrb[0].mxu0
    %4168 = vmatprep.mubr.f32.mxu0 0.0
    %v4169 = vand.u32 %v3855, 4294901760
    %v4170 = vsub.f32 %v3855, %v4169
    %4171 = vmatmul.mubr.f32.gmra.mrb[0].mxu0 %v4170
    %v4172 = vpop.f32.mrb[0].mxu0
    %v4173 = vadd.f32 %v4072, %v4172
    %v4174 = vpop.f32.mrb[0].mxu0
    %4175 = vdwg.mxu0
    %4176 = vmatprep.subr.mxu0 0.0
    %v4177 = vand.u32 %v3846, 4294901760
    %4178 = vmatpush1.xpose.msra.mxu0 %v4177
    %4179 = vmatprep.subr.mxu0 0.0
    %v4180 = vand.u32 %v3849, 4294901760
    %4181 = vmatpush1.xpose.msra.mxu0 %v4180
    %4182 = vmatprep.subr.mxu0 0.0
    %v4183 = vand.u32 %v3852, 4294901760
    %4184 = vmatpush1.xpose.msra.mxu0 %v4183
    %4185 = vmatprep.subr.mxu0 0.0
    %v4186 = vand.u32 %v3855, 4294901760
    %4187 = vmatpush1.xpose.msra.mxu0 %v4186
    %4188 = vmatprep.subr.mxu0 0.0
    %4189 = vmatpush1.xpose.msra.mxu0 0.0
    %4190 = vmatprep.subr.mxu0 0.0
    %4191 = vmatpush1.xpose.msra.mxu0 0.0
    %4192 = vmatprep.subr.mxu0 0.0
    %4193 = vmatpush1.xpose.msra.mxu0 0.0
    %4194 = vmatprep.subr.mxu0 0.0
    %4195 = vmatpush1.xpose.msra.mxu0 0.0
    %4196 = vmatprep.subr.mxu0 0.0
    %4197 = vmatpush1.xpose.msra.mxu0 0.0
    %4198 = vmatprep.subr.mxu0 0.0
    %4199 = vmatpush1.xpose.msra.mxu0 0.0
    %4200 = vmatprep.subr.mxu0 0.0
    %4201 = vmatpush1.xpose.msra.mxu0 0.0
    %4202 = vmatprep.subr.mxu0 0.0
    %4203 = vmatpush1.xpose.msra.mxu0 0.0
    %4204 = vmatprep.subr.mxu0 0.0
    %4205 = vmatpush1.xpose.msra.mxu0 0.0
    %4206 = vmatprep.subr.mxu0 0.0
    %4207 = vmatpush1.xpose.msra.mxu0 0.0
    %4208 = vmatprep.subr.mxu0 0.0
    %4209 = vmatpush1.xpose.msra.mxu0 0.0
    %4210 = vmatprep.subr.mxu0 0.0
    %4211 = vmatpush1.xpose.msra.mxu0 0.0
    %4212 = vmatprep.subr.mxu0 0.0
    %4213 = vmatpush1.xpose.msra.mxu0 0.0
    %4214 = vmatprep.subr.mxu0 0.0
    %4215 = vmatpush1.xpose.msra.mxu0 0.0
    %4216 = vmatprep.subr.mxu0 0.0
    %4217 = vmatpush1.xpose.msra.mxu0 0.0
    %4218 = vmatprep.subr.mxu0 0.0
    %4219 = vmatpush1.xpose.msra.mxu0 0.0
    %4220 = vmatprep.subr.mxu0 0.0
    %4221 = vmatpush1.xpose.msra.mxu0 0.0
    %4222 = vmatprep.subr.mxu0 0.0
    %4223 = vmatpush1.xpose.msra.mxu0 0.0
    %4224 = vmatprep.subr.mxu0 0.0
    %4225 = vmatpush1.xpose.msra.mxu0 0.0
    %4226 = vmatprep.subr.mxu0 0.0
    %4227 = vmatpush1.xpose.msra.mxu0 0.0
    %4228 = vmatprep.subr.mxu0 0.0
    %4229 = vmatpush1.xpose.msra.mxu0 0.0
    %4230 = vmatprep.subr.mxu0 0.0
    %4231 = vmatpush1.xpose.msra.mxu0 0.0
    %4232 = vmatprep.subr.mxu0 0.0
    %4233 = vmatpush1.xpose.msra.mxu0 0.0
    %4234 = vmatprep.subr.mxu0 0.0
    %4235 = vmatpush1.xpose.msra.mxu0 0.0
    %4236 = vmatprep.subr.mxu0 0.0
    %4237 = vmatpush1.xpose.msra.mxu0 0.0
    %4238 = vmatprep.subr.mxu0 0.0
    %4239 = vmatpush1.xpose.msra.mxu0 0.0
    %4240 = vmatprep.subr.mxu0 0.0
    %4241 = vmatpush1.xpose.msra.mxu0 0.0
    %4242 = vmatprep.subr.mxu0 0.0
    %4243 = vmatpush1.xpose.msra.mxu0 0.0
    %4244 = vmatprep.mubr.f32.mxu0 0.0
    %v4245 = vand.u32 %v3846, 4294901760
    %v4246 = vsub.f32 %v3846, %v4245
    %v4247 = vand.u32 %v4246, 4294901760
    %4248 = vmatmul.mubr.f32.gmra.mrb[0].mxu0 %v4247
    %v4249 = vpop.f32.mrb[0].mxu0
    %v4250 = vadd.f32 %v4152, %v4249
    %v4251 = vpop.f32.mrb[0].mxu0
    %4252 = vmatprep.mubr.f32.mxu0 0.0
    %v4253 = vand.u32 %v3849, 4294901760
    %v4254 = vsub.f32 %v3849, %v4253
    %v4255 = vand.u32 %v4254, 4294901760
    %4256 = vmatmul.mubr.f32.gmra.mrb[0].mxu0 %v4255
    %v4257 = vpop.f32.mrb[0].mxu0
    %v4258 = vadd.f32 %v4159, %v4257
    %v4259 = vpop.f32.mrb[0].mxu0
    %4260 = vmatprep.mubr.f32.mxu0 0.0
    %v4261 = vand.u32 %v3852, 4294901760
    %v4262 = vsub.f32 %v3852, %v4261
    %v4263 = vand.u32 %v4262, 4294901760
    %4264 = vmatmul.mubr.f32.gmra.mrb[0].mxu0 %v4263
    %v4265 = vpop.f32.mrb[0].mxu0
    %v4266 = vadd.f32 %v4166, %v4265
    %v4267 = vpop.f32.mrb[0].mxu0
    %4268 = vmatprep.mubr.f32.mxu0 0.0
    %v4269 = vand.u32 %v3855, 4294901760
    %v4270 = vsub.f32 %v3855, %v4269
    %v4271 = vand.u32 %v4270, 4294901760
    %4272 = vmatmul.mubr.f32.gmra.mrb[0].mxu0 %v4271
    %v4273 = vpop.f32.mrb[0].mxu0
    %v4274 = vadd.f32 %v4173, %v4273
    %v4275 = vpop.f32.mrb[0].mxu0
    %4276 = vdwg.mxu0
    %4277 = vmatprep.subr.mxu0 0.0
    %v4278 = vand.u32 %v3846, 4294901760
    %v4279 = vsub.f32 %v3846, %v4278
    %v4280 = vand.u32 %v4279, 4294901760
    %4281 = vmatpush1.xpose.msra.mxu0 %v4280
    %4282 = vmatprep.subr.mxu0 0.0
    %v4283 = vand.u32 %v3849, 4294901760
    %v4284 = vsub.f32 %v3849, %v4283
    %v4285 = vand.u32 %v4284, 4294901760
    %4286 = vmatpush1.xpose.msra.mxu0 %v4285
    %4287 = vmatprep.subr.mxu0 0.0
    %v4288 = vand.u32 %v3852, 4294901760
    %v4289 = vsub.f32 %v3852, %v4288
    %v4290 = vand.u32 %v4289, 4294901760
    %4291 = vmatpush1.xpose.msra.mxu0 %v4290
    %4292 = vmatprep.subr.mxu0 0.0
    %v4293 = vand.u32 %v3855, 4294901760
    %v4294 = vsub.f32 %v3855, %v4293
    %v4295 = vand.u32 %v4294, 4294901760
    %4296 = vmatpush1.xpose.msra.mxu0 %v4295
    %4297 = vmatprep.subr.mxu0 0.0
    %4298 = vmatpush1.xpose.msra.mxu0 0.0
    %4299 = vmatprep.subr.mxu0 0.0
    %4300 = vmatpush1.xpose.msra.mxu0 0.0
    %4301 = vmatprep.subr.mxu0 0.0
    %4302 = vmatpush1.xpose.msra.mxu0 0.0
    %4303 = vmatprep.subr.mxu0 0.0
    %4304 = vmatpush1.xpose.msra.mxu0 0.0
    %4305 = vmatprep.subr.mxu0 0.0
    %4306 = vmatpush1.xpose.msra.mxu0 0.0
    %4307 = vmatprep.subr.mxu0 0.0
    %4308 = vmatpush1.xpose.msra.mxu0 0.0
    %4309 = vmatprep.subr.mxu0 0.0
    %4310 = vmatpush1.xpose.msra.mxu0 0.0
    %4311 = vmatprep.subr.mxu0 0.0
    %4312 = vmatpush1.xpose.msra.mxu0 0.0
    %4313 = vmatprep.subr.mxu0 0.0
    %4314 = vmatpush1.xpose.msra.mxu0 0.0
    %4315 = vmatprep.subr.mxu0 0.0
    %4316 = vmatpush1.xpose.msra.mxu0 0.0
    %4317 = vmatprep.subr.mxu0 0.0
    %4318 = vmatpush1.xpose.msra.mxu0 0.0
    %4319 = vmatprep.subr.mxu0 0.0
    %4320 = vmatpush1.xpose.msra.mxu0 0.0
    %4321 = vmatprep.subr.mxu0 0.0
    %4322 = vmatpush1.xpose.msra.mxu0 0.0
    %4323 = vmatprep.subr.mxu0 0.0
    %4324 = vmatpush1.xpose.msra.mxu0 0.0
    %4325 = vmatprep.subr.mxu0 0.0
    %4326 = vmatpush1.xpose.msra.mxu0 0.0
    %4327 = vmatprep.subr.mxu0 0.0
    %4328 = vmatpush1.xpose.msra.mxu0 0.0
    %4329 = vmatprep.subr.mxu0 0.0
    %4330 = vmatpush1.xpose.msra.mxu0 0.0
    %4331 = vmatprep.subr.mxu0 0.0
    %4332 = vmatpush1.xpose.msra.mxu0 0.0
    %4333 = vmatprep.subr.mxu0 0.0
    %4334 = vmatpush1.xpose.msra.mxu0 0.0
    %4335 = vmatprep.subr.mxu0 0.0
    %4336 = vmatpush1.xpose.msra.mxu0 0.0
    %4337 = vmatprep.subr.mxu0 0.0
    %4338 = vmatpush1.xpose.msra.mxu0 0.0
    %4339 = vmatprep.subr.mxu0 0.0
    %4340 = vmatpush1.xpose.msra.mxu0 0.0
    %4341 = vmatprep.subr.mxu0 0.0
    %4342 = vmatpush1.xpose.msra.mxu0 0.0
    %4343 = vmatprep.subr.mxu0 0.0
    %4344 = vmatpush1.xpose.msra.mxu0 0.0
    %4345 = vmatprep.subr.mxu0 0.0
    %4346 = vmatpush1.xpose.msra.mxu0 0.0
    %4347 = vmatprep.subr.mxu0 0.0
    %4348 = vmatpush1.xpose.msra.mxu0 0.0
    %4349 = vmatprep.subr.mxu0 0.0
    %4350 = vmatpush1.xpose.msra.mxu0 0.0
    %4351 = vmatprep.subr.mxu0 0.0
    %4352 = vmatpush1.xpose.msra.mxu0 0.0
    %4353 = vmatprep.mubr.f32.mxu0 0.0
    %v4354 = vand.u32 %v3846, 4294901760
    %4355 = vmatmul.mubr.f32.gmra.mrb[0].mxu0 %v4354
    %v4356 = vpop.f32.mrb[0].mxu0
    %v4357 = vadd.f32 %v4250, %v4356
    %v4358 = vpop.f32.mrb[0].mxu0
    %4359 = vmatprep.mubr.f32.mxu0 0.0
    %v4360 = vand.u32 %v3849, 4294901760
    %4361 = vmatmul.mubr.f32.gmra.mrb[0].mxu0 %v4360
    %v4362 = vpop.f32.mrb[0].mxu0
    %v4363 = vadd.f32 %v4258, %v4362
    %v4364 = vpop.f32.mrb[0].mxu0
    %4365 = vmatprep.mubr.f32.mxu0 0.0
    %v4366 = vand.u32 %v3852, 4294901760
    %4367 = vmatmul.mubr.f32.gmra.mrb[0].mxu0 %v4366
    %v4368 = vpop.f32.mrb[0].mxu0
    %v4369 = vadd.f32 %v4266, %v4368
    %v4370 = vpop.f32.mrb[0].mxu0
    %4371 = vmatprep.mubr.f32.mxu0 0.0
    %v4372 = vand.u32 %v3855, 4294901760
    %4373 = vmatmul.mubr.f32.gmra.mrb[0].mxu0 %v4372
    %v4374 = vpop.f32.mrb[0].mxu0
    %v4375 = vadd.f32 %v4274, %v4374
    %v4376 = vpop.f32.mrb[0].mxu0
    %4377 = vdwg.mxu0
    %4378 = vmatprep.subr.mxu0 0.0
    %v4379 = vand.u32 %v3846, 4294901760
    %4380 = vmatpush1.xpose.msra.mxu0 %v4379
    %4381 = vmatprep.subr.mxu0 0.0
    %v4382 = vand.u32 %v3849, 4294901760
    %4383 = vmatpush1.xpose.msra.mxu0 %v4382
    %4384 = vmatprep.subr.mxu0 0.0
    %v4385 = vand.u32 %v3852, 4294901760
    %4386 = vmatpush1.xpose.msra.mxu0 %v4385
    %4387 = vmatprep.subr.mxu0 0.0
    %v4388 = vand.u32 %v3855, 4294901760
    %4389 = vmatpush1.xpose.msra.mxu0 %v4388
    %4390 = vmatprep.subr.mxu0 0.0
    %4391 = vmatpush1.xpose.msra.mxu0 0.0
    %4392 = vmatprep.subr.mxu0 0.0
    %4393 = vmatpush1.xpose.msra.mxu0 0.0
    %4394 = vmatprep.subr.mxu0 0.0
    %4395 = vmatpush1.xpose.msra.mxu0 0.0
    %4396 = vmatprep.subr.mxu0 0.0
    %4397 = vmatpush1.xpose.msra.mxu0 0.0
    %4398 = vmatprep.subr.mxu0 0.0
    %4399 = vmatpush1.xpose.msra.mxu0 0.0
    %4400 = vmatprep.subr.mxu0 0.0
    %4401 = vmatpush1.xpose.msra.mxu0 0.0
    %4402 = vmatprep.subr.mxu0 0.0
    %4403 = vmatpush1.xpose.msra.mxu0 0.0
    %4404 = vmatprep.subr.mxu0 0.0
    %4405 = vmatpush1.xpose.msra.mxu0 0.0
    %4406 = vmatprep.subr.mxu0 0.0
    %4407 = vmatpush1.xpose.msra.mxu0 0.0
    %4408 = vmatprep.subr.mxu0 0.0
    %4409 = vmatpush1.xpose.msra.mxu0 0.0
    %4410 = vmatprep.subr.mxu0 0.0
    %4411 = vmatpush1.xpose.msra.mxu0 0.0
    %4412 = vmatprep.subr.mxu0 0.0
    %4413 = vmatpush1.xpose.msra.mxu0 0.0
    %4414 = vmatprep.subr.mxu0 0.0
    %4415 = vmatpush1.xpose.msra.mxu0 0.0
    %4416 = vmatprep.subr.mxu0 0.0
    %4417 = vmatpush1.xpose.msra.mxu0 0.0
    %4418 = vmatprep.subr.mxu0 0.0
    %4419 = vmatpush1.xpose.msra.mxu0 0.0
    %4420 = vmatprep.subr.mxu0 0.0
    %4421 = vmatpush1.xpose.msra.mxu0 0.0
    %4422 = vmatprep.subr.mxu0 0.0
    %4423 = vmatpush1.xpose.msra.mxu0 0.0
    %4424 = vmatprep.subr.mxu0 0.0
    %4425 = vmatpush1.xpose.msra.mxu0 0.0
    %4426 = vmatprep.subr.mxu0 0.0
    %4427 = vmatpush1.xpose.msra.mxu0 0.0
    %4428 = vmatprep.subr.mxu0 0.0
    %4429 = vmatpush1.xpose.msra.mxu0 0.0
    %4430 = vmatprep.subr.mxu0 0.0
    %4431 = vmatpush1.xpose.msra.mxu0 0.0
    %4432 = vmatprep.subr.mxu0 0.0
    %4433 = vmatpush1.xpose.msra.mxu0 0.0
    %4434 = vmatprep.subr.mxu0 0.0
    %4435 = vmatpush1.xpose.msra.mxu0 0.0
    %4436 = vmatprep.subr.mxu0 0.0
    %4437 = vmatpush1.xpose.msra.mxu0 0.0
    %4438 = vmatprep.subr.mxu0 0.0
    %4439 = vmatpush1.xpose.msra.mxu0 0.0
    %4440 = vmatprep.subr.mxu0 0.0
    %4441 = vmatpush1.xpose.msra.mxu0 0.0
    %4442 = vmatprep.subr.mxu0 0.0
    %4443 = vmatpush1.xpose.msra.mxu0 0.0
    %4444 = vmatprep.subr.mxu0 0.0
    %4445 = vmatpush1.xpose.msra.mxu0 0.0
    %4446 = vmatprep.mubr.f32.mxu0 0.0
    %v4447 = vand.u32 %v3846, 4294901760
    %4448 = vmatmul.mubr.f32.gmra.mrb[0].mxu0 %v4447
    %v4449 = vpop.f32.mrb[0].mxu0
    %v4450 = vadd.f32 %v4357, %v4449
    %v4451 = vpop.f32.mrb[0].mxu0
    %4452 = vmatprep.mubr.f32.mxu0 0.0
    %v4453 = vand.u32 %v3849, 4294901760
    %4454 = vmatmul.mubr.f32.gmra.mrb[0].mxu0 %v4453
    %v4455 = vpop.f32.mrb[0].mxu0
    %v4456 = vadd.f32 %v4363, %v4455
    %v4457 = vpop.f32.mrb[0].mxu0
    %4458 = vmatprep.mubr.f32.mxu0 0.0
    %v4459 = vand.u32 %v3852, 4294901760
    %4460 = vmatmul.mubr.f32.gmra.mrb[0].mxu0 %v4459
    %v4461 = vpop.f32.mrb[0].mxu0
    %v4462 = vadd.f32 %v4369, %v4461
    %v4463 = vpop.f32.mrb[0].mxu0
    %4464 = vmatprep.mubr.f32.mxu0 0.0
    %v4465 = vand.u32 %v3855, 4294901760
    %4466 = vmatmul.mubr.f32.gmra.mrb[0].mxu0 %v4465
    %v4467 = vpop.f32.mrb[0].mxu0
    %v4468 = vadd.f32 %v4375, %v4467
    %v4469 = vpop.f32.mrb[0].mxu0
    %4470 = vdwg.mxu0
    %v4472 = vsel %vm88, %v84, 0
    %v4475 = vsel %vm88, %v85, 0
    %v4478 = vsel %vm88, %v86, 0
    %v4481 = vsel %vm88, %v87, 0
    %4483 = vmatprep.subr.mxu0 0.0
    %v4484 = vand.u32 %v4472, 4294901760
    %4485 = vmatpush1.xpose.msra.mxu0 %v4484
    %4486 = vmatprep.subr.mxu0 0.0
    %v4487 = vand.u32 %v4475, 4294901760
    %4488 = vmatpush1.xpose.msra.mxu0 %v4487
    %4489 = vmatprep.subr.mxu0 0.0
    %v4490 = vand.u32 %v4478, 4294901760
    %4491 = vmatpush1.xpose.msra.mxu0 %v4490
    %4492 = vmatprep.subr.mxu0 0.0
    %v4493 = vand.u32 %v4481, 4294901760
    %4494 = vmatpush1.xpose.msra.mxu0 %v4493
    %4495 = vmatprep.subr.mxu0 0.0
    %4496 = vmatpush1.xpose.msra.mxu0 0.0
    %4497 = vmatprep.subr.mxu0 0.0
    %4498 = vmatpush1.xpose.msra.mxu0 0.0
    %4499 = vmatprep.subr.mxu0 0.0
    %4500 = vmatpush1.xpose.msra.mxu0 0.0
    %4501 = vmatprep.subr.mxu0 0.0
    %4502 = vmatpush1.xpose.msra.mxu0 0.0
    %4503 = vmatprep.subr.mxu0 0.0
    %4504 = vmatpush1.xpose.msra.mxu0 0.0
    %4505 = vmatprep.subr.mxu0 0.0
    %4506 = vmatpush1.xpose.msra.mxu0 0.0
    %4507 = vmatprep.subr.mxu0 0.0
    %4508 = vmatpush1.xpose.msra.mxu0 0.0
    %4509 = vmatprep.subr.mxu0 0.0
    %4510 = vmatpush1.xpose.msra.mxu0 0.0
    %4511 = vmatprep.subr.mxu0 0.0
    %4512 = vmatpush1.xpose.msra.mxu0 0.0
    %4513 = vmatprep.subr.mxu0 0.0
    %4514 = vmatpush1.xpose.msra.mxu0 0.0
    %4515 = vmatprep.subr.mxu0 0.0
    %4516 = vmatpush1.xpose.msra.mxu0 0.0
    %4517 = vmatprep.subr.mxu0 0.0
    %4518 = vmatpush1.xpose.msra.mxu0 0.0
    %4519 = vmatprep.subr.mxu0 0.0
    %4520 = vmatpush1.xpose.msra.mxu0 0.0
    %4521 = vmatprep.subr.mxu0 0.0
    %4522 = vmatpush1.xpose.msra.mxu0 0.0
    %4523 = vmatprep.subr.mxu0 0.0
    %4524 = vmatpush1.xpose.msra.mxu0 0.0
    %4525 = vmatprep.subr.mxu0 0.0
    %4526 = vmatpush1.xpose.msra.mxu0 0.0
    %4527 = vmatprep.subr.mxu0 0.0
    %4528 = vmatpush1.xpose.msra.mxu0 0.0
    %4529 = vmatprep.subr.mxu0 0.0
    %4530 = vmatpush1.xpose.msra.mxu0 0.0
    %4531 = vmatprep.subr.mxu0 0.0
    %4532 = vmatpush1.xpose.msra.mxu0 0.0
    %4533 = vmatprep.subr.mxu0 0.0
    %4534 = vmatpush1.xpose.msra.mxu0 0.0
    %4535 = vmatprep.subr.mxu0 0.0
    %4536 = vmatpush1.xpose.msra.mxu0 0.0
    %4537 = vmatprep.subr.mxu0 0.0
    %4538 = vmatpush1.xpose.msra.mxu0 0.0
    %4539 = vmatprep.subr.mxu0 0.0
    %4540 = vmatpush1.xpose.msra.mxu0 0.0
    %4541 = vmatprep.subr.mxu0 0.0
    %4542 = vmatpush1.xpose.msra.mxu0 0.0
    %4543 = vmatprep.subr.mxu0 0.0
    %4544 = vmatpush1.xpose.msra.mxu0 0.0
    %4545 = vmatprep.subr.mxu0 0.0
    %4546 = vmatpush1.xpose.msra.mxu0 0.0
    %4547 = vmatprep.subr.mxu0 0.0
    %4548 = vmatpush1.xpose.msra.mxu0 0.0
    %4549 = vmatprep.subr.mxu0 0.0
    %4550 = vmatpush1.xpose.msra.mxu0 0.0
    %4551 = vmatprep.mubr.f32.mxu0 0.0
    %v4552 = vand.u32 %v4472, 4294901760
    %v4553 = vsub.f32 %v4472, %v4552
    %v4554 = vand.u32 %v4553, 4294901760
    %v4555 = vsub.f32 %v4553, %v4554
    %v4556 = vand.u32 %v4555, 4294901760
    %4557 = vmatmul.mubr.f32.gmra.mrb[0].mxu0 %v4556
    %v4558 = vpop.f32.mrb[0].mxu0
    %v4559 = vadd.f32 0.0, %v4558
    %v4560 = vpop.f32.mrb[0].mxu0
    %4561 = vmatprep.mubr.f32.mxu0 0.0
    %v4562 = vand.u32 %v4475, 4294901760
    %v4563 = vsub.f32 %v4475, %v4562
    %v4564 = vand.u32 %v4563, 4294901760
    %v4565 = vsub.f32 %v4563, %v4564
    %v4566 = vand.u32 %v4565, 4294901760
    %4567 = vmatmul.mubr.f32.gmra.mrb[0].mxu0 %v4566
    %v4568 = vpop.f32.mrb[0].mxu0
    %v4569 = vadd.f32 0.0, %v4568
    %v4570 = vpop.f32.mrb[0].mxu0
    %4571 = vmatprep.mubr.f32.mxu0 0.0
    %v4572 = vand.u32 %v4478, 4294901760
    %v4573 = vsub.f32 %v4478, %v4572
    %v4574 = vand.u32 %v4573, 4294901760
    %v4575 = vsub.f32 %v4573, %v4574
    %v4576 = vand.u32 %v4575, 4294901760
    %4577 = vmatmul.mubr.f32.gmra.mrb[0].mxu0 %v4576
    %v4578 = vpop.f32.mrb[0].mxu0
    %v4579 = vadd.f32 0.0, %v4578
    %v4580 = vpop.f32.mrb[0].mxu0
    %4581 = vmatprep.mubr.f32.mxu0 0.0
    %v4582 = vand.u32 %v4481, 4294901760
    %v4583 = vsub.f32 %v4481, %v4582
    %v4584 = vand.u32 %v4583, 4294901760
    %v4585 = vsub.f32 %v4583, %v4584
    %v4586 = vand.u32 %v4585, 4294901760
    %4587 = vmatmul.mubr.f32.gmra.mrb[0].mxu0 %v4586
    %v4588 = vpop.f32.mrb[0].mxu0
    %v4589 = vadd.f32 0.0, %v4588
    %v4590 = vpop.f32.mrb[0].mxu0
    %4591 = vdwg.mxu0
    %4592 = vmatprep.subr.mxu0 0.0
    %v4593 = vand.u32 %v4472, 4294901760
    %v4594 = vsub.f32 %v4472, %v4593
    %v4595 = vand.u32 %v4594, 4294901760
    %v4596 = vsub.f32 %v4594, %v4595
    %v4597 = vand.u32 %v4596, 4294901760
    %4598 = vmatpush1.xpose.msra.mxu0 %v4597
    %4599 = vmatprep.subr.mxu0 0.0
    %v4600 = vand.u32 %v4475, 4294901760
    %v4601 = vsub.f32 %v4475, %v4600
    %v4602 = vand.u32 %v4601, 4294901760
    %v4603 = vsub.f32 %v4601, %v4602
    %v4604 = vand.u32 %v4603, 4294901760
    %4605 = vmatpush1.xpose.msra.mxu0 %v4604
    %4606 = vmatprep.subr.mxu0 0.0
    %v4607 = vand.u32 %v4478, 4294901760
    %v4608 = vsub.f32 %v4478, %v4607
    %v4609 = vand.u32 %v4608, 4294901760
    %v4610 = vsub.f32 %v4608, %v4609
    %v4611 = vand.u32 %v4610, 4294901760
    %4612 = vmatpush1.xpose.msra.mxu0 %v4611
    %4613 = vmatprep.subr.mxu0 0.0
    %v4614 = vand.u32 %v4481, 4294901760
    %v4615 = vsub.f32 %v4481, %v4614
    %v4616 = vand.u32 %v4615, 4294901760
    %v4617 = vsub.f32 %v4615, %v4616
    %v4618 = vand.u32 %v4617, 4294901760
    %4619 = vmatpush1.xpose.msra.mxu0 %v4618
    %4620 = vmatprep.subr.mxu0 0.0
    %4621 = vmatpush1.xpose.msra.mxu0 0.0
    %4622 = vmatprep.subr.mxu0 0.0
    %4623 = vmatpush1.xpose.msra.mxu0 0.0
    %4624 = vmatprep.subr.mxu0 0.0
    %4625 = vmatpush1.xpose.msra.mxu0 0.0
    %4626 = vmatprep.subr.mxu0 0.0
    %4627 = vmatpush1.xpose.msra.mxu0 0.0
    %4628 = vmatprep.subr.mxu0 0.0
    %4629 = vmatpush1.xpose.msra.mxu0 0.0
    %4630 = vmatprep.subr.mxu0 0.0
    %4631 = vmatpush1.xpose.msra.mxu0 0.0
    %4632 = vmatprep.subr.mxu0 0.0
    %4633 = vmatpush1.xpose.msra.mxu0 0.0
    %4634 = vmatprep.subr.mxu0 0.0
    %4635 = vmatpush1.xpose.msra.mxu0 0.0
    %4636 = vmatprep.subr.mxu0 0.0
    %4637 = vmatpush1.xpose.msra.mxu0 0.0
    %4638 = vmatprep.subr.mxu0 0.0
    %4639 = vmatpush1.xpose.msra.mxu0 0.0
    %4640 = vmatprep.subr.mxu0 0.0
    %4641 = vmatpush1.xpose.msra.mxu0 0.0
    %4642 = vmatprep.subr.mxu0 0.0
    %4643 = vmatpush1.xpose.msra.mxu0 0.0
    %4644 = vmatprep.subr.mxu0 0.0
    %4645 = vmatpush1.xpose.msra.mxu0 0.0
    %4646 = vmatprep.subr.mxu0 0.0
    %4647 = vmatpush1.xpose.msra.mxu0 0.0
    %4648 = vmatprep.subr.mxu0 0.0
    %4649 = vmatpush1.xpose.msra.mxu0 0.0
    %4650 = vmatprep.subr.mxu0 0.0
    %4651 = vmatpush1.xpose.msra.mxu0 0.0
    %4652 = vmatprep.subr.mxu0 0.0
    %4653 = vmatpush1.xpose.msra.mxu0 0.0
    %4654 = vmatprep.subr.mxu0 0.0
    %4655 = vmatpush1.xpose.msra.mxu0 0.0
    %4656 = vmatprep.subr.mxu0 0.0
    %4657 = vmatpush1.xpose.msra.mxu0 0.0
    %4658 = vmatprep.subr.mxu0 0.0
    %4659 = vmatpush1.xpose.msra.mxu0 0.0
    %4660 = vmatprep.subr.mxu0 0.0
    %4661 = vmatpush1.xpose.msra.mxu0 0.0
    %4662 = vmatprep.subr.mxu0 0.0
    %4663 = vmatpush1.xpose.msra.mxu0 0.0
    %4664 = vmatprep.subr.mxu0 0.0
    %4665 = vmatpush1.xpose.msra.mxu0 0.0
    %4666 = vmatprep.subr.mxu0 0.0
    %4667 = vmatpush1.xpose.msra.mxu0 0.0
    %4668 = vmatprep.subr.mxu0 0.0
    %4669 = vmatpush1.xpose.msra.mxu0 0.0
    %4670 = vmatprep.subr.mxu0 0.0
    %4671 = vmatpush1.xpose.msra.mxu0 0.0
    %4672 = vmatprep.subr.mxu0 0.0
    %4673 = vmatpush1.xpose.msra.mxu0 0.0
    %4674 = vmatprep.subr.mxu0 0.0
    %4675 = vmatpush1.xpose.msra.mxu0 0.0
    %4676 = vmatprep.mubr.f32.mxu0 0.0
    %v4677 = vand.u32 %v4472, 4294901760
    %4678 = vmatmul.mubr.f32.gmra.mrb[0].mxu0 %v4677
    %v4679 = vpop.f32.mrb[0].mxu0
    %v4680 = vadd.f32 %v4559, %v4679
    %v4681 = vpop.f32.mrb[0].mxu0
    %4682 = vmatprep.mubr.f32.mxu0 0.0
    %v4683 = vand.u32 %v4475, 4294901760
    %4684 = vmatmul.mubr.f32.gmra.mrb[0].mxu0 %v4683
    %v4685 = vpop.f32.mrb[0].mxu0
    %v4686 = vadd.f32 %v4569, %v4685
    %v4687 = vpop.f32.mrb[0].mxu0
    %4688 = vmatprep.mubr.f32.mxu0 0.0
    %v4689 = vand.u32 %v4478, 4294901760
    %4690 = vmatmul.mubr.f32.gmra.mrb[0].mxu0 %v4689
    %v4691 = vpop.f32.mrb[0].mxu0
    %v4692 = vadd.f32 %v4579, %v4691
    %v4693 = vpop.f32.mrb[0].mxu0
    %4694 = vmatprep.mubr.f32.mxu0 0.0
    %v4695 = vand.u32 %v4481, 4294901760
    %4696 = vmatmul.mubr.f32.gmra.mrb[0].mxu0 %v4695
    %v4697 = vpop.f32.mrb[0].mxu0
    %v4698 = vadd.f32 %v4589, %v4697
    %v4699 = vpop.f32.mrb[0].mxu0
    %4700 = vdwg.mxu0
    %4701 = vmatprep.subr.mxu0 0.0
    %v4702 = vand.u32 %v4472, 4294901760
    %v4703 = vsub.f32 %v4472, %v4702
    %4704 = vmatpush1.xpose.msra.mxu0 %v4703
    %4705 = vmatprep.subr.mxu0 0.0
    %v4706 = vand.u32 %v4475, 4294901760
    %v4707 = vsub.f32 %v4475, %v4706
    %4708 = vmatpush1.xpose.msra.mxu0 %v4707
    %4709 = vmatprep.subr.mxu0 0.0
    %v4710 = vand.u32 %v4478, 4294901760
    %v4711 = vsub.f32 %v4478, %v4710
    %4712 = vmatpush1.xpose.msra.mxu0 %v4711
    %4713 = vmatprep.subr.mxu0 0.0
    %v4714 = vand.u32 %v4481, 4294901760
    %v4715 = vsub.f32 %v4481, %v4714
    %4716 = vmatpush1.xpose.msra.mxu0 %v4715
    %4717 = vmatprep.subr.mxu0 0.0
    %4718 = vmatpush1.xpose.msra.mxu0 0.0
    %4719 = vmatprep.subr.mxu0 0.0
    %4720 = vmatpush1.xpose.msra.mxu0 0.0
    %4721 = vmatprep.subr.mxu0 0.0
    %4722 = vmatpush1.xpose.msra.mxu0 0.0
    %4723 = vmatprep.subr.mxu0 0.0
    %4724 = vmatpush1.xpose.msra.mxu0 0.0
    %4725 = vmatprep.subr.mxu0 0.0
    %4726 = vmatpush1.xpose.msra.mxu0 0.0
    %4727 = vmatprep.subr.mxu0 0.0
    %4728 = vmatpush1.xpose.msra.mxu0 0.0
    %4729 = vmatprep.subr.mxu0 0.0
    %4730 = vmatpush1.xpose.msra.mxu0 0.0
    %4731 = vmatprep.subr.mxu0 0.0
    %4732 = vmatpush1.xpose.msra.mxu0 0.0
    %4733 = vmatprep.subr.mxu0 0.0
    %4734 = vmatpush1.xpose.msra.mxu0 0.0
    %4735 = vmatprep.subr.mxu0 0.0
    %4736 = vmatpush1.xpose.msra.mxu0 0.0
    %4737 = vmatprep.subr.mxu0 0.0
    %4738 = vmatpush1.xpose.msra.mxu0 0.0
    %4739 = vmatprep.subr.mxu0 0.0
    %4740 = vmatpush1.xpose.msra.mxu0 0.0
    %4741 = vmatprep.subr.mxu0 0.0
    %4742 = vmatpush1.xpose.msra.mxu0 0.0
    %4743 = vmatprep.subr.mxu0 0.0
    %4744 = vmatpush1.xpose.msra.mxu0 0.0
    %4745 = vmatprep.subr.mxu0 0.0
    %4746 = vmatpush1.xpose.msra.mxu0 0.0
    %4747 = vmatprep.subr.mxu0 0.0
    %4748 = vmatpush1.xpose.msra.mxu0 0.0
    %4749 = vmatprep.subr.mxu0 0.0
    %4750 = vmatpush1.xpose.msra.mxu0 0.0
    %4751 = vmatprep.subr.mxu0 0.0
    %4752 = vmatpush1.xpose.msra.mxu0 0.0
    %4753 = vmatprep.subr.mxu0 0.0
    %4754 = vmatpush1.xpose.msra.mxu0 0.0
    %4755 = vmatprep.subr.mxu0 0.0
    %4756 = vmatpush1.xpose.msra.mxu0 0.0
    %4757 = vmatprep.subr.mxu0 0.0
    %4758 = vmatpush1.xpose.msra.mxu0 0.0
    %4759 = vmatprep.subr.mxu0 0.0
    %4760 = vmatpush1.xpose.msra.mxu0 0.0
    %4761 = vmatprep.subr.mxu0 0.0
    %4762 = vmatpush1.xpose.msra.mxu0 0.0
    %4763 = vmatprep.subr.mxu0 0.0
    %4764 = vmatpush1.xpose.msra.mxu0 0.0
    %4765 = vmatprep.subr.mxu0 0.0
    %4766 = vmatpush1.xpose.msra.mxu0 0.0
    %4767 = vmatprep.subr.mxu0 0.0
    %4768 = vmatpush1.xpose.msra.mxu0 0.0
    %4769 = vmatprep.subr.mxu0 0.0
    %4770 = vmatpush1.xpose.msra.mxu0 0.0
    %4771 = vmatprep.subr.mxu0 0.0
    %4772 = vmatpush1.xpose.msra.mxu0 0.0
    %4773 = vmatprep.mubr.f32.mxu0 0.0
    %v4774 = vand.u32 %v4472, 4294901760
    %v4775 = vsub.f32 %v4472, %v4774
    %4776 = vmatmul.mubr.f32.gmra.mrb[0].mxu0 %v4775
    %v4777 = vpop.f32.mrb[0].mxu0
    %v4778 = vadd.f32 %v4680, %v4777
    %v4779 = vpop.f32.mrb[0].mxu0
    %4780 = vmatprep.mubr.f32.mxu0 0.0
    %v4781 = vand.u32 %v4475, 4294901760
    %v4782 = vsub.f32 %v4475, %v4781
    %4783 = vmatmul.mubr.f32.gmra.mrb[0].mxu0 %v4782
    %v4784 = vpop.f32.mrb[0].mxu0
    %v4785 = vadd.f32 %v4686, %v4784
    %v4786 = vpop.f32.mrb[0].mxu0
    %4787 = vmatprep.mubr.f32.mxu0 0.0
    %v4788 = vand.u32 %v4478, 4294901760
    %v4789 = vsub.f32 %v4478, %v4788
    %4790 = vmatmul.mubr.f32.gmra.mrb[0].mxu0 %v4789
    %v4791 = vpop.f32.mrb[0].mxu0
    %v4792 = vadd.f32 %v4692, %v4791
    %v4793 = vpop.f32.mrb[0].mxu0
    %4794 = vmatprep.mubr.f32.mxu0 0.0
    %v4795 = vand.u32 %v4481, 4294901760
    %v4796 = vsub.f32 %v4481, %v4795
    %4797 = vmatmul.mubr.f32.gmra.mrb[0].mxu0 %v4796
    %v4798 = vpop.f32.mrb[0].mxu0
    %v4799 = vadd.f32 %v4698, %v4798
    %v4800 = vpop.f32.mrb[0].mxu0
    %4801 = vdwg.mxu0
    %4802 = vmatprep.subr.mxu0 0.0
    %v4803 = vand.u32 %v4472, 4294901760
    %4804 = vmatpush1.xpose.msra.mxu0 %v4803
    %4805 = vmatprep.subr.mxu0 0.0
    %v4806 = vand.u32 %v4475, 4294901760
    %4807 = vmatpush1.xpose.msra.mxu0 %v4806
    %4808 = vmatprep.subr.mxu0 0.0
    %v4809 = vand.u32 %v4478, 4294901760
    %4810 = vmatpush1.xpose.msra.mxu0 %v4809
    %4811 = vmatprep.subr.mxu0 0.0
    %v4812 = vand.u32 %v4481, 4294901760
    %4813 = vmatpush1.xpose.msra.mxu0 %v4812
    %4814 = vmatprep.subr.mxu0 0.0
    %4815 = vmatpush1.xpose.msra.mxu0 0.0
    %4816 = vmatprep.subr.mxu0 0.0
    %4817 = vmatpush1.xpose.msra.mxu0 0.0
    %4818 = vmatprep.subr.mxu0 0.0
    %4819 = vmatpush1.xpose.msra.mxu0 0.0
    %4820 = vmatprep.subr.mxu0 0.0
    %4821 = vmatpush1.xpose.msra.mxu0 0.0
    %4822 = vmatprep.subr.mxu0 0.0
    %4823 = vmatpush1.xpose.msra.mxu0 0.0
    %4824 = vmatprep.subr.mxu0 0.0
    %4825 = vmatpush1.xpose.msra.mxu0 0.0
    %4826 = vmatprep.subr.mxu0 0.0
    %4827 = vmatpush1.xpose.msra.mxu0 0.0
    %4828 = vmatprep.subr.mxu0 0.0
    %4829 = vmatpush1.xpose.msra.mxu0 0.0
    %4830 = vmatprep.subr.mxu0 0.0
    %4831 = vmatpush1.xpose.msra.mxu0 0.0
    %4832 = vmatprep.subr.mxu0 0.0
    %4833 = vmatpush1.xpose.msra.mxu0 0.0
    %4834 = vmatprep.subr.mxu0 0.0
    %4835 = vmatpush1.xpose.msra.mxu0 0.0
    %4836 = vmatprep.subr.mxu0 0.0
    %4837 = vmatpush1.xpose.msra.mxu0 0.0
    %4838 = vmatprep.subr.mxu0 0.0
    %4839 = vmatpush1.xpose.msra.mxu0 0.0
    %4840 = vmatprep.subr.mxu0 0.0
    %4841 = vmatpush1.xpose.msra.mxu0 0.0
    %4842 = vmatprep.subr.mxu0 0.0
    %4843 = vmatpush1.xpose.msra.mxu0 0.0
    %4844 = vmatprep.subr.mxu0 0.0
    %4845 = vmatpush1.xpose.msra.mxu0 0.0
    %4846 = vmatprep.subr.mxu0 0.0
    %4847 = vmatpush1.xpose.msra.mxu0 0.0
    %4848 = vmatprep.subr.mxu0 0.0
    %4849 = vmatpush1.xpose.msra.mxu0 0.0
    %4850 = vmatprep.subr.mxu0 0.0
    %4851 = vmatpush1.xpose.msra.mxu0 0.0
    %4852 = vmatprep.subr.mxu0 0.0
    %4853 = vmatpush1.xpose.msra.mxu0 0.0
    %4854 = vmatprep.subr.mxu0 0.0
    %4855 = vmatpush1.xpose.msra.mxu0 0.0
    %4856 = vmatprep.subr.mxu0 0.0
    %4857 = vmatpush1.xpose.msra.mxu0 0.0
    %4858 = vmatprep.subr.mxu0 0.0
    %4859 = vmatpush1.xpose.msra.mxu0 0.0
    %4860 = vmatprep.subr.mxu0 0.0
    %4861 = vmatpush1.xpose.msra.mxu0 0.0
    %4862 = vmatprep.subr.mxu0 0.0
    %4863 = vmatpush1.xpose.msra.mxu0 0.0
    %4864 = vmatprep.subr.mxu0 0.0
    %4865 = vmatpush1.xpose.msra.mxu0 0.0
    %4866 = vmatprep.subr.mxu0 0.0
    %4867 = vmatpush1.xpose.msra.mxu0 0.0
    %4868 = vmatprep.subr.mxu0 0.0
    %4869 = vmatpush1.xpose.msra.mxu0 0.0
    %4870 = vmatprep.mubr.f32.mxu0 0.0
    %v4871 = vand.u32 %v4472, 4294901760
    %v4872 = vsub.f32 %v4472, %v4871
    %v4873 = vand.u32 %v4872, 4294901760
    %4874 = vmatmul.mubr.f32.gmra.mrb[0].mxu0 %v4873
    %v4875 = vpop.f32.mrb[0].mxu0
    %v4876 = vadd.f32 %v4778, %v4875
    %v4877 = vpop.f32.mrb[0].mxu0
    %4878 = vmatprep.mubr.f32.mxu0 0.0
    %v4879 = vand.u32 %v4475, 4294901760
    %v4880 = vsub.f32 %v4475, %v4879
    %v4881 = vand.u32 %v4880, 4294901760
    %4882 = vmatmul.mubr.f32.gmra.mrb[0].mxu0 %v4881
    %v4883 = vpop.f32.mrb[0].mxu0
    %v4884 = vadd.f32 %v4785, %v4883
    %v4885 = vpop.f32.mrb[0].mxu0
    %4886 = vmatprep.mubr.f32.mxu0 0.0
    %v4887 = vand.u32 %v4478, 4294901760
    %v4888 = vsub.f32 %v4478, %v4887
    %v4889 = vand.u32 %v4888, 4294901760
    %4890 = vmatmul.mubr.f32.gmra.mrb[0].mxu0 %v4889
    %v4891 = vpop.f32.mrb[0].mxu0
    %v4892 = vadd.f32 %v4792, %v4891
    %v4893 = vpop.f32.mrb[0].mxu0
    %4894 = vmatprep.mubr.f32.mxu0 0.0
    %v4895 = vand.u32 %v4481, 4294901760
    %v4896 = vsub.f32 %v4481, %v4895
    %v4897 = vand.u32 %v4896, 4294901760
    %4898 = vmatmul.mubr.f32.gmra.mrb[0].mxu0 %v4897
    %v4899 = vpop.f32.mrb[0].mxu0
    %v4900 = vadd.f32 %v4799, %v4899
    %v4901 = vpop.f32.mrb[0].mxu0
    %4902 = vdwg.mxu0
    %4903 = vmatprep.subr.mxu0 0.0
    %v4904 = vand.u32 %v4472, 4294901760
    %v4905 = vsub.f32 %v4472, %v4904
    %v4906 = vand.u32 %v4905, 4294901760
    %4907 = vmatpush1.xpose.msra.mxu0 %v4906
    %4908 = vmatprep.subr.mxu0 0.0
    %v4909 = vand.u32 %v4475, 4294901760
    %v4910 = vsub.f32 %v4475, %v4909
    %v4911 = vand.u32 %v4910, 4294901760
    %4912 = vmatpush1.xpose.msra.mxu0 %v4911
    %4913 = vmatprep.subr.mxu0 0.0
    %v4914 = vand.u32 %v4478, 4294901760
    %v4915 = vsub.f32 %v4478, %v4914
    %v4916 = vand.u32 %v4915, 4294901760
    %4917 = vmatpush1.xpose.msra.mxu0 %v4916
    %4918 = vmatprep.subr.mxu0 0.0
    %v4919 = vand.u32 %v4481, 4294901760
    %v4920 = vsub.f32 %v4481, %v4919
    %v4921 = vand.u32 %v4920, 4294901760
    %4922 = vmatpush1.xpose.msra.mxu0 %v4921
    %4923 = vmatprep.subr.mxu0 0.0
    %4924 = vmatpush1.xpose.msra.mxu0 0.0
    %4925 = vmatprep.subr.mxu0 0.0
    %4926 = vmatpush1.xpose.msra.mxu0 0.0
    %4927 = vmatprep.subr.mxu0 0.0
    %4928 = vmatpush1.xpose.msra.mxu0 0.0
    %4929 = vmatprep.subr.mxu0 0.0
    %4930 = vmatpush1.xpose.msra.mxu0 0.0
    %4931 = vmatprep.subr.mxu0 0.0
    %4932 = vmatpush1.xpose.msra.mxu0 0.0
    %4933 = vmatprep.subr.mxu0 0.0
    %4934 = vmatpush1.xpose.msra.mxu0 0.0
    %4935 = vmatprep.subr.mxu0 0.0
    %4936 = vmatpush1.xpose.msra.mxu0 0.0
    %4937 = vmatprep.subr.mxu0 0.0
    %4938 = vmatpush1.xpose.msra.mxu0 0.0
    %4939 = vmatprep.subr.mxu0 0.0
    %4940 = vmatpush1.xpose.msra.mxu0 0.0
    %4941 = vmatprep.subr.mxu0 0.0
    %4942 = vmatpush1.xpose.msra.mxu0 0.0
    %4943 = vmatprep.subr.mxu0 0.0
    %4944 = vmatpush1.xpose.msra.mxu0 0.0
    %4945 = vmatprep.subr.mxu0 0.0
    %4946 = vmatpush1.xpose.msra.mxu0 0.0
    %4947 = vmatprep.subr.mxu0 0.0
    %4948 = vmatpush1.xpose.msra.mxu0 0.0
    %4949 = vmatprep.subr.mxu0 0.0
    %4950 = vmatpush1.xpose.msra.mxu0 0.0
    %4951 = vmatprep.subr.mxu0 0.0
    %4952 = vmatpush1.xpose.msra.mxu0 0.0
    %4953 = vmatprep.subr.mxu0 0.0
    %4954 = vmatpush1.xpose.msra.mxu0 0.0
    %4955 = vmatprep.subr.mxu0 0.0
    %4956 = vmatpush1.xpose.msra.mxu0 0.0
    %4957 = vmatprep.subr.mxu0 0.0
    %4958 = vmatpush1.xpose.msra.mxu0 0.0
    %4959 = vmatprep.subr.mxu0 0.0
    %4960 = vmatpush1.xpose.msra.mxu0 0.0
    %4961 = vmatprep.subr.mxu0 0.0
    %4962 = vmatpush1.xpose.msra.mxu0 0.0
    %4963 = vmatprep.subr.mxu0 0.0
    %4964 = vmatpush1.xpose.msra.mxu0 0.0
    %4965 = vmatprep.subr.mxu0 0.0
    %4966 = vmatpush1.xpose.msra.mxu0 0.0
    %4967 = vmatprep.subr.mxu0 0.0
    %4968 = vmatpush1.xpose.msra.mxu0 0.0
    %4969 = vmatprep.subr.mxu0 0.0
    %4970 = vmatpush1.xpose.msra.mxu0 0.0
    %4971 = vmatprep.subr.mxu0 0.0
    %4972 = vmatpush1.xpose.msra.mxu0 0.0
    %4973 = vmatprep.subr.mxu0 0.0
    %4974 = vmatpush1.xpose.msra.mxu0 0.0
    %4975 = vmatprep.subr.mxu0 0.0
    %4976 = vmatpush1.xpose.msra.mxu0 0.0
    %4977 = vmatprep.subr.mxu0 0.0
    %4978 = vmatpush1.xpose.msra.mxu0 0.0
    %4979 = vmatprep.mubr.f32.mxu0 0.0
    %v4980 = vand.u32 %v4472, 4294901760
    %4981 = vmatmul.mubr.f32.gmra.mrb[0].mxu0 %v4980
    %v4982 = vpop.f32.mrb[0].mxu0
    %v4983 = vadd.f32 %v4876, %v4982
    %v4984 = vpop.f32.mrb[0].mxu0
    %4985 = vmatprep.mubr.f32.mxu0 0.0
    %v4986 = vand.u32 %v4475, 4294901760
    %4987 = vmatmul.mubr.f32.gmra.mrb[0].mxu0 %v4986
    %v4988 = vpop.f32.mrb[0].mxu0
    %v4989 = vadd.f32 %v4884, %v4988
    %v4990 = vpop.f32.mrb[0].mxu0
    %4991 = vmatprep.mubr.f32.mxu0 0.0
    %v4992 = vand.u32 %v4478, 4294901760
    %4993 = vmatmul.mubr.f32.gmra.mrb[0].mxu0 %v4992
    %v4994 = vpop.f32.mrb[0].mxu0
    %v4995 = vadd.f32 %v4892, %v4994
    %v4996 = vpop.f32.mrb[0].mxu0
    %4997 = vmatprep.mubr.f32.mxu0 0.0
    %v4998 = vand.u32 %v4481, 4294901760
    %4999 = vmatmul.mubr.f32.gmra.mrb[0].mxu0 %v4998
    %v5000 = vpop.f32.mrb[0].mxu0
    %v5001 = vadd.f32 %v4900, %v5000
    %v5002 = vpop.f32.mrb[0].mxu0
    %5003 = vdwg.mxu0
    %5004 = vmatprep.subr.mxu0 0.0
    %v5005 = vand.u32 %v4472, 4294901760
    %5006 = vmatpush1.xpose.msra.mxu0 %v5005
    %5007 = vmatprep.subr.mxu0 0.0
    %v5008 = vand.u32 %v4475, 4294901760
    %5009 = vmatpush1.xpose.msra.mxu0 %v5008
    %5010 = vmatprep.subr.mxu0 0.0
    %v5011 = vand.u32 %v4478, 4294901760
    %5012 = vmatpush1.xpose.msra.mxu0 %v5011
    %5013 = vmatprep.subr.mxu0 0.0
    %v5014 = vand.u32 %v4481, 4294901760
    %5015 = vmatpush1.xpose.msra.mxu0 %v5014
    %5016 = vmatprep.subr.mxu0 0.0
    %5017 = vmatpush1.xpose.msra.mxu0 0.0
    %5018 = vmatprep.subr.mxu0 0.0
    %5019 = vmatpush1.xpose.msra.mxu0 0.0
    %5020 = vmatprep.subr.mxu0 0.0
    %5021 = vmatpush1.xpose.msra.mxu0 0.0
    %5022 = vmatprep.subr.mxu0 0.0
    %5023 = vmatpush1.xpose.msra.mxu0 0.0
    %5024 = vmatprep.subr.mxu0 0.0
    %5025 = vmatpush1.xpose.msra.mxu0 0.0
    %5026 = vmatprep.subr.mxu0 0.0
    %5027 = vmatpush1.xpose.msra.mxu0 0.0
    %5028 = vmatprep.subr.mxu0 0.0
    %5029 = vmatpush1.xpose.msra.mxu0 0.0
    %5030 = vmatprep.subr.mxu0 0.0
    %5031 = vmatpush1.xpose.msra.mxu0 0.0
    %5032 = vmatprep.subr.mxu0 0.0
    %5033 = vmatpush1.xpose.msra.mxu0 0.0
    %5034 = vmatprep.subr.mxu0 0.0
    %5035 = vmatpush1.xpose.msra.mxu0 0.0
    %5036 = vmatprep.subr.mxu0 0.0
    %5037 = vmatpush1.xpose.msra.mxu0 0.0
    %5038 = vmatprep.subr.mxu0 0.0
    %5039 = vmatpush1.xpose.msra.mxu0 0.0
    %5040 = vmatprep.subr.mxu0 0.0
    %5041 = vmatpush1.xpose.msra.mxu0 0.0
    %5042 = vmatprep.subr.mxu0 0.0
    %5043 = vmatpush1.xpose.msra.mxu0 0.0
    %5044 = vmatprep.subr.mxu0 0.0
    %5045 = vmatpush1.xpose.msra.mxu0 0.0
    %5046 = vmatprep.subr.mxu0 0.0
    %5047 = vmatpush1.xpose.msra.mxu0 0.0
    %5048 = vmatprep.subr.mxu0 0.0
    %5049 = vmatpush1.xpose.msra.mxu0 0.0
    %5050 = vmatprep.subr.mxu0 0.0
    %5051 = vmatpush1.xpose.msra.mxu0 0.0
    %5052 = vmatprep.subr.mxu0 0.0
    %5053 = vmatpush1.xpose.msra.mxu0 0.0
    %5054 = vmatprep.subr.mxu0 0.0
    %5055 = vmatpush1.xpose.msra.mxu0 0.0
    %5056 = vmatprep.subr.mxu0 0.0
    %5057 = vmatpush1.xpose.msra.mxu0 0.0
    %5058 = vmatprep.subr.mxu0 0.0
    %5059 = vmatpush1.xpose.msra.mxu0 0.0
    %5060 = vmatprep.subr.mxu0 0.0
    %5061 = vmatpush1.xpose.msra.mxu0 0.0
    %5062 = vmatprep.subr.mxu0 0.0
    %5063 = vmatpush1.xpose.msra.mxu0 0.0
    %5064 = vmatprep.subr.mxu0 0.0
    %5065 = vmatpush1.xpose.msra.mxu0 0.0
    %5066 = vmatprep.subr.mxu0 0.0
    %5067 = vmatpush1.xpose.msra.mxu0 0.0
    %5068 = vmatprep.subr.mxu0 0.0
    %5069 = vmatpush1.xpose.msra.mxu0 0.0
    %5070 = vmatprep.subr.mxu0 0.0
    %5071 = vmatpush1.xpose.msra.mxu0 0.0
    %5072 = vmatprep.mubr.f32.mxu0 0.0
    %v5073 = vand.u32 %v4472, 4294901760
    %5074 = vmatmul.mubr.f32.gmra.mrb[0].mxu0 %v5073
    %v5075 = vpop.f32.mrb[0].mxu0
    %v5076 = vadd.f32 %v4983, %v5075
    %v5077 = vpop.f32.mrb[0].mxu0
    %5078 = vmatprep.mubr.f32.mxu0 0.0
    %v5079 = vand.u32 %v4475, 4294901760
    %5080 = vmatmul.mubr.f32.gmra.mrb[0].mxu0 %v5079
    %v5081 = vpop.f32.mrb[0].mxu0
    %v5082 = vadd.f32 %v4989, %v5081
    %v5083 = vpop.f32.mrb[0].mxu0
    %5084 = vmatprep.mubr.f32.mxu0 0.0
    %v5085 = vand.u32 %v4478, 4294901760
    %5086 = vmatmul.mubr.f32.gmra.mrb[0].mxu0 %v5085
    %v5087 = vpop.f32.mrb[0].mxu0
    %v5088 = vadd.f32 %v4995, %v5087
    %v5089 = vpop.f32.mrb[0].mxu0
    %5090 = vmatprep.mubr.f32.mxu0 0.0
    %v5091 = vand.u32 %v4481, 4294901760
    %5092 = vmatmul.mubr.f32.gmra.mrb[0].mxu0 %v5091
    %v5093 = vpop.f32.mrb[0].mxu0
    %v5094 = vadd.f32 %v5001, %v5093
    %v5095 = vpop.f32.mrb[0].mxu0
    %5096 = vdwg.mxu0
    %v5097 = vlaneseq
    %v5098 = vshrl.u32 %v5097, 7
    %v5099 = vadd.s32 %v5098, 8
    %v5100 = vadd.s32 %v5098, 16
    %v5101 = vadd.s32 %v5098, 24
    %vm5102 = vcmp.eq.s32.totalorder %v5098, %v38
    %vm5103 = vcmp.eq.s32.totalorder %v5099, %v38
    %vm5104 = vcmp.eq.s32.totalorder %v5100, %v38
    %vm5105 = vcmp.eq.s32.totalorder %v5101, %v38
    %v5106 = vsel %vm5102, 1, 0
    %v5107 = vsel %vm5103, 1, 0
    %v5108 = vsel %vm5104, 1, 0
    %v5109 = vsel %vm5105, 1, 0
    %v5110 = vcvt.s32.f32 %v5106
    %v5111 = vcvt.s32.f32 %v5107
    %v5112 = vcvt.s32.f32 %v5108
    %v5113 = vcvt.s32.f32 %v5109
    %v5114 = vsub.f32 %v694, %v5110
    %v5115 = vsub.f32 %v700, %v5111
    %v5116 = vsub.f32 %v706, %v5112
    %v5117 = vsub.f32 %v712, %v5113
    %v5118 = vsub.f32 %v1320, %v5110
    %v5119 = vsub.f32 %v1326, %v5111
    %v5120 = vsub.f32 %v1332, %v5112
    %v5121 = vsub.f32 %v1338, %v5113
    %v5122 = vsub.f32 %v1946, %v5110
    %v5123 = vsub.f32 %v1952, %v5111
    %v5124 = vsub.f32 %v1958, %v5112
    %v5125 = vsub.f32 %v1964, %v5113
    %v5126 = vsub.f32 %v2572, %v5110
    %v5127 = vsub.f32 %v2578, %v5111
    %v5128 = vsub.f32 %v2584, %v5112
    %v5129 = vsub.f32 %v2590, %v5113
    %v5130 = vsub.f32 %v3198, %v5110
    %v5131 = vsub.f32 %v3204, %v5111
    %v5132 = vsub.f32 %v3210, %v5112
    %v5133 = vsub.f32 %v3216, %v5113
    %v5134 = vsub.f32 %v3824, %v5110
    %v5135 = vsub.f32 %v3830, %v5111
    %v5136 = vsub.f32 %v3836, %v5112
    %v5137 = vsub.f32 %v3842, %v5113
    %v5138 = vsub.f32 %v4450, %v5110
    %v5139 = vsub.f32 %v4456, %v5111
    %v5140 = vsub.f32 %v4462, %v5112
    %v5141 = vsub.f32 %v4468, %v5113
    %v5142 = vsub.f32 %v5076, %v5110
    %v5143 = vsub.f32 %v5082, %v5111
    %v5144 = vsub.f32 %v5088, %v5112
    %v5145 = vsub.f32 %v5094, %v5113
    %v5146 = vmul.f32 %v5114, %v5114
    %v5147 = vmul.f32 %v5115, %v5115
    %v5148 = vmul.f32 %v5116, %v5116
    %v5149 = vmul.f32 %v5117, %v5117
    %v5150 = vmul.f32 %v5118, %v5118
    %v5151 = vmul.f32 %v5119, %v5119
    %v5152 = vmul.f32 %v5120, %v5120
    %v5153 = vmul.f32 %v5121, %v5121
    %v5154 = vmul.f32 %v5122, %v5122
    %v5155 = vmul.f32 %v5123, %v5123
    %v5156 = vmul.f32 %v5124, %v5124
    %v5157 = vmul.f32 %v5125, %v5125
    %v5158 = vmul.f32 %v5126, %v5126
    %v5159 = vmul.f32 %v5127, %v5127
    %v5160 = vmul.f32 %v5128, %v5128
    %v5161 = vmul.f32 %v5129, %v5129
    %v5162 = vmul.f32 %v5130, %v5130
    %v5163 = vmul.f32 %v5131, %v5131
    %v5164 = vmul.f32 %v5132, %v5132
    %v5165 = vmul.f32 %v5133, %v5133
    %v5166 = vmul.f32 %v5134, %v5134
    %v5167 = vmul.f32 %v5135, %v5135
    %v5168 = vmul.f32 %v5136, %v5136
    %v5169 = vmul.f32 %v5137, %v5137
    %v5170 = vmul.f32 %v5138, %v5138
    %v5171 = vmul.f32 %v5139, %v5139
    %v5172 = vmul.f32 %v5140, %v5140
    %v5173 = vmul.f32 %v5141, %v5141
    %v5174 = vmul.f32 %v5142, %v5142
    %v5175 = vmul.f32 %v5143, %v5143
    %v5176 = vmul.f32 %v5144, %v5144
    %v5177 = vmul.f32 %v5145, %v5145
    %v5178 = vsel %vm88, %v5146, 0.0
    %5179 = vadd.xlane.f32.xlu0 %v5178
    %v5180 = vpop.xlane.xlu0 %5179
    %v5181 = vsel %vm88, %v5147, 0.0
    %5182 = vadd.xlane.f32.xlu0 %v5181
    %v5183 = vpop.xlane.xlu0 %5182
    %v5184 = vsel %vm88, %v5148, 0.0
    %5185 = vadd.xlane.f32.xlu0 %v5184
    %v5186 = vpop.xlane.xlu0 %5185
    %v5187 = vsel %vm88, %v5149, 0.0
    %5188 = vadd.xlane.f32.xlu0 %v5187
    %v5189 = vpop.xlane.xlu0 %5188
    %v5190 = vsel %vm88, %v5150, 0.0
    %5191 = vadd.xlane.f32.xlu0 %v5190
    %v5192 = vpop.xlane.xlu0 %5191
    %v5193 = vsel %vm88, %v5151, 0.0
    %5194 = vadd.xlane.f32.xlu0 %v5193
    %v5195 = vpop.xlane.xlu0 %5194
    %v5196 = vsel %vm88, %v5152, 0.0
    %5197 = vadd.xlane.f32.xlu0 %v5196
    %v5198 = vpop.xlane.xlu0 %5197
    %v5199 = vsel %vm88, %v5153, 0.0
    %5200 = vadd.xlane.f32.xlu0 %v5199
    %v5201 = vpop.xlane.xlu0 %5200
    %v5202 = vsel %vm88, %v5154, 0.0
    %5203 = vadd.xlane.f32.xlu0 %v5202
    %v5204 = vpop.xlane.xlu0 %5203
    %v5205 = vsel %vm88, %v5155, 0.0
    %5206 = vadd.xlane.f32.xlu0 %v5205
    %v5207 = vpop.xlane.xlu0 %5206
    %v5208 = vsel %vm88, %v5156, 0.0
    %5209 = vadd.xlane.f32.xlu0 %v5208
    %v5210 = vpop.xlane.xlu0 %5209
    %v5211 = vsel %vm88, %v5157, 0.0
    %5212 = vadd.xlane.f32.xlu0 %v5211
    %v5213 = vpop.xlane.xlu0 %5212
    %v5214 = vsel %vm88, %v5158, 0.0
    %5215 = vadd.xlane.f32.xlu0 %v5214
    %v5216 = vpop.xlane.xlu0 %5215
    %v5217 = vsel %vm88, %v5159, 0.0
    %5218 = vadd.xlane.f32.xlu0 %v5217
    %v5219 = vpop.xlane.xlu0 %5218
    %v5220 = vsel %vm88, %v5160, 0.0
    %5221 = vadd.xlane.f32.xlu0 %v5220
    %v5222 = vpop.xlane.xlu0 %5221
    %v5223 = vsel %vm88, %v5161, 0.0
    %5224 = vadd.xlane.f32.xlu0 %v5223
    %v5225 = vpop.xlane.xlu0 %5224
    %v5226 = vsel %vm88, %v5162, 0.0
    %5227 = vadd.xlane.f32.xlu0 %v5226
    %v5228 = vpop.xlane.xlu0 %5227
    %v5229 = vsel %vm88, %v5163, 0.0
    %5230 = vadd.xlane.f32.xlu0 %v5229
    %v5231 = vpop.xlane.xlu0 %5230
    %v5232 = vsel %vm88, %v5164, 0.0
    %5233 = vadd.xlane.f32.xlu0 %v5232
    %v5234 = vpop.xlane.xlu0 %5233
    %v5235 = vsel %vm88, %v5165, 0.0
    %5236 = vadd.xlane.f32.xlu0 %v5235
    %v5237 = vpop.xlane.xlu0 %5236
    %v5238 = vsel %vm88, %v5166, 0.0
    %5239 = vadd.xlane.f32.xlu0 %v5238
    %v5240 = vpop.xlane.xlu0 %5239
    %v5241 = vsel %vm88, %v5167, 0.0
    %5242 = vadd.xlane.f32.xlu0 %v5241
    %v5243 = vpop.xlane.xlu0 %5242
    %v5244 = vsel %vm88, %v5168, 0.0
    %5245 = vadd.xlane.f32.xlu0 %v5244
    %v5246 = vpop.xlane.xlu0 %5245
    %v5247 = vsel %vm88, %v5169, 0.0
    %5248 = vadd.xlane.f32.xlu0 %v5247
    %v5249 = vpop.xlane.xlu0 %5248
    %v5250 = vsel %vm88, %v5170, 0.0
    %5251 = vadd.xlane.f32.xlu0 %v5250
    %v5252 = vpop.xlane.xlu0 %5251
    %v5253 = vsel %vm88, %v5171, 0.0
    %5254 = vadd.xlane.f32.xlu0 %v5253
    %v5255 = vpop.xlane.xlu0 %5254
    %v5256 = vsel %vm88, %v5172, 0.0
    %5257 = vadd.xlane.f32.xlu0 %v5256
    %v5258 = vpop.xlane.xlu0 %5257
    %v5259 = vsel %vm88, %v5173, 0.0
    %5260 = vadd.xlane.f32.xlu0 %v5259
    %v5261 = vpop.xlane.xlu0 %5260
    %v5262 = vsel %vm88, %v5174, 0.0
    %5263 = vadd.xlane.f32.xlu0 %v5262
    %v5264 = vpop.xlane.xlu0 %5263
    %v5265 = vsel %vm88, %v5175, 0.0
    %5266 = vadd.xlane.f32.xlu0 %v5265
    %v5267 = vpop.xlane.xlu0 %5266
    %v5268 = vsel %vm88, %v5176, 0.0
    %5269 = vadd.xlane.f32.xlu0 %v5268
    %v5270 = vpop.xlane.xlu0 %5269
    %v5271 = vsel %vm88, %v5177, 0.0
    %5272 = vadd.xlane.f32.xlu0 %v5271
    %v5273 = vpop.xlane.xlu0 %5272
    %v5306 = vlaneseq
    %v5307 = vshrl.u32 %v5306, 7
    %v5308 = vsub.s32 %v38, %v5307
    %v5309 = vrot.slane %v5180, %v5308
    %v5310 = vadd.s32 %v38, 4294967288
    %v5311 = vlaneseq
    %v5312 = vshrl.u32 %v5311, 7
    %v5313 = vsub.s32 %v5310, %v5312
    %v5314 = vrot.slane %v5183, %v5313
    %vm5315 = vcmask 130112
    %v5316 = vsel %vm5315, %v5314, %v5309
    %v5317 = vadd.s32 %v38, 4294967280
    %v5318 = vlaneseq
    %v5319 = vshrl.u32 %v5318, 7
    %v5320 = vsub.s32 %v5317, %v5319
    %v5321 = vrot.slane %v5186, %v5320
    %vm5322 = vcmask 195712
    %v5323 = vsel %vm5322, %v5321, %v5316
    %v5324 = vadd.s32 %v38, 4294967272
    %v5325 = vlaneseq
    %v5326 = vshrl.u32 %v5325, 7
    %v5327 = vsub.s32 %v5324, %v5326
    %v5328 = vrot.slane %v5189, %v5327
    %vm5329 = vcmask 261312
    %v5330 = vsel %vm5329, %v5328, %v5323
    %v5331 = vlaneseq
    %v5332 = vshrl.u32 %v5331, 7
    %v5333 = vsub.s32 %v38, %v5332
    %v5334 = vrot.slane %v5192, %v5333
    %v5335 = vlaneseq
    %v5336 = vshrl.u32 %v5335, 7
    %v5337 = vsub.s32 %v5310, %v5336
    %v5338 = vrot.slane %v5195, %v5337
    %v5339 = vsel %vm5315, %v5338, %v5334
    %v5340 = vlaneseq
    %v5341 = vshrl.u32 %v5340, 7
    %v5342 = vsub.s32 %v5317, %v5341
    %v5343 = vrot.slane %v5198, %v5342
    %v5344 = vsel %vm5322, %v5343, %v5339
    %v5345 = vlaneseq
    %v5346 = vshrl.u32 %v5345, 7
    %v5347 = vsub.s32 %v5324, %v5346
    %v5348 = vrot.slane %v5201, %v5347
    %v5349 = vsel %vm5329, %v5348, %v5344
    %v5350 = vlaneseq
    %v5351 = vshrl.u32 %v5350, 7
    %v5352 = vsub.s32 %v38, %v5351
    %v5353 = vrot.slane %v5204, %v5352
    %v5354 = vlaneseq
    %v5355 = vshrl.u32 %v5354, 7
    %v5356 = vsub.s32 %v5310, %v5355
    %v5357 = vrot.slane %v5207, %v5356
    %v5358 = vsel %vm5315, %v5357, %v5353
    %v5359 = vlaneseq
    %v5360 = vshrl.u32 %v5359, 7
    %v5361 = vsub.s32 %v5317, %v5360
    %v5362 = vrot.slane %v5210, %v5361
    %v5363 = vsel %vm5322, %v5362, %v5358
    %v5364 = vlaneseq
    %v5365 = vshrl.u32 %v5364, 7
    %v5366 = vsub.s32 %v5324, %v5365
    %v5367 = vrot.slane %v5213, %v5366
    %v5368 = vsel %vm5329, %v5367, %v5363
    %v5369 = vlaneseq
    %v5370 = vshrl.u32 %v5369, 7
    %v5371 = vsub.s32 %v38, %v5370
    %v5372 = vrot.slane %v5216, %v5371
    %v5373 = vlaneseq
    %v5374 = vshrl.u32 %v5373, 7
    %v5375 = vsub.s32 %v5310, %v5374
    %v5376 = vrot.slane %v5219, %v5375
    %v5377 = vsel %vm5315, %v5376, %v5372
    %v5378 = vlaneseq
    %v5379 = vshrl.u32 %v5378, 7
    %v5380 = vsub.s32 %v5317, %v5379
    %v5381 = vrot.slane %v5222, %v5380
    %v5382 = vsel %vm5322, %v5381, %v5377
    %v5383 = vlaneseq
    %v5384 = vshrl.u32 %v5383, 7
    %v5385 = vsub.s32 %v5324, %v5384
    %v5386 = vrot.slane %v5225, %v5385
    %v5387 = vsel %vm5329, %v5386, %v5382
    %v5388 = vlaneseq
    %v5389 = vshrl.u32 %v5388, 7
    %v5390 = vsub.s32 %v38, %v5389
    %v5391 = vrot.slane %v5228, %v5390
    %v5392 = vlaneseq
    %v5393 = vshrl.u32 %v5392, 7
    %v5394 = vsub.s32 %v5310, %v5393
    %v5395 = vrot.slane %v5231, %v5394
    %v5396 = vsel %vm5315, %v5395, %v5391
    %v5397 = vlaneseq
    %v5398 = vshrl.u32 %v5397, 7
    %v5399 = vsub.s32 %v5317, %v5398
    %v5400 = vrot.slane %v5234, %v5399
    %v5401 = vsel %vm5322, %v5400, %v5396
    %v5402 = vlaneseq
    %v5403 = vshrl.u32 %v5402, 7
    %v5404 = vsub.s32 %v5324, %v5403
    %v5405 = vrot.slane %v5237, %v5404
    %v5406 = vsel %vm5329, %v5405, %v5401
    %v5407 = vlaneseq
    %v5408 = vshrl.u32 %v5407, 7
    %v5409 = vsub.s32 %v38, %v5408
    %v5410 = vrot.slane %v5240, %v5409
    %v5411 = vlaneseq
    %v5412 = vshrl.u32 %v5411, 7
    %v5413 = vsub.s32 %v5310, %v5412
    %v5414 = vrot.slane %v5243, %v5413
    %v5415 = vsel %vm5315, %v5414, %v5410
    %v5416 = vlaneseq
    %v5417 = vshrl.u32 %v5416, 7
    %v5418 = vsub.s32 %v5317, %v5417
    %v5419 = vrot.slane %v5246, %v5418
    %v5420 = vsel %vm5322, %v5419, %v5415
    %v5421 = vlaneseq
    %v5422 = vshrl.u32 %v5421, 7
    %v5423 = vsub.s32 %v5324, %v5422
    %v5424 = vrot.slane %v5249, %v5423
    %v5425 = vsel %vm5329, %v5424, %v5420
    %v5426 = vlaneseq
    %v5427 = vshrl.u32 %v5426, 7
    %v5428 = vsub.s32 %v38, %v5427
    %v5429 = vrot.slane %v5252, %v5428
    %v5430 = vlaneseq
    %v5431 = vshrl.u32 %v5430, 7
    %v5432 = vsub.s32 %v5310, %v5431
    %v5433 = vrot.slane %v5255, %v5432
    %v5434 = vsel %vm5315, %v5433, %v5429
    %v5435 = vlaneseq
    %v5436 = vshrl.u32 %v5435, 7
    %v5437 = vsub.s32 %v5317, %v5436
    %v5438 = vrot.slane %v5258, %v5437
    %v5439 = vsel %vm5322, %v5438, %v5434
    %v5440 = vlaneseq
    %v5441 = vshrl.u32 %v5440, 7
    %v5442 = vsub.s32 %v5324, %v5441
    %v5443 = vrot.slane %v5261, %v5442
    %v5444 = vsel %vm5329, %v5443, %v5439
    %v5445 = vlaneseq
    %v5446 = vshrl.u32 %v5445, 7
    %v5447 = vsub.s32 %v38, %v5446
    %v5448 = vrot.slane %v5264, %v5447
    %v5449 = vlaneseq
    %v5450 = vshrl.u32 %v5449, 7
    %v5451 = vsub.s32 %v5310, %v5450
    %v5452 = vrot.slane %v5267, %v5451
    %v5453 = vsel %vm5315, %v5452, %v5448
    %v5454 = vlaneseq
    %v5455 = vshrl.u32 %v5454, 7
    %v5456 = vsub.s32 %v5317, %v5455
    %v5457 = vrot.slane %v5270, %v5456
    %v5458 = vsel %vm5322, %v5457, %v5453
    %v5459 = vlaneseq
    %v5460 = vshrl.u32 %v5459, 7
    %v5461 = vsub.s32 %v5324, %v5460
    %v5462 = vrot.slane %v5273, %v5461
    %v5463 = vsel %vm5329, %v5462, %v5458
    %vm5464 = vcmask 1041409
    %v5465 = vsel %vm5464, %v5349, %v5330
    %vm5466 = vcmask 1042434
    %v5467 = vsel %vm5466, %v5368, %v5465
    %vm5468 = vcmask 1043459
    %v5469 = vsel %vm5468, %v5387, %v5467
    %vm5470 = vcmask 1044484
    %v5471 = vsel %vm5470, %v5406, %v5469
    %vm5472 = vcmask 1045509
    %v5473 = vsel %vm5472, %v5425, %v5471
    %vm5474 = vcmask 1046534
    %v5475 = vsel %vm5474, %v5444, %v5473
    %vm5476 = vcmask 1047559
    %v5477 = vsel %vm5476, %v5463, %v5475
    %v5479 = vsel %vm88, %v5477, 0.0
    %5480 = vadd.xlane.f32.xlu0 %v5479
    %v5481 = vpop.xlane.xlu0 %5480
    %v5482 = vrsqrt.pop %v5481
    %v5483 = vmul.f32 %v5481, %v5482
    %vm5484 = vcmp.eq.f32.partialorder %v5481, inf
    %v5485 = vsel %vm5484, %v5481, %v5483
    %vm5486 = vcmp.eq.f32.partialorder %v5481, 0.0
    %v5487 = vand.u32 %v5481, 2147483648
    %v5488 = vsel %vm5486, %v5487, %v5485
    %vm5489 = vcmask 7168
    %v5490 = vsel %vm5489, %v5488, 0.0
    %5491 = vadd.xlane.f32.xlu0 %v5490
    %v5492 = vpop.xlane.xlu0 %5491
    %v5493 = vrot.slane %v5492, 4
    %v5494 = vadd.f32 %v5492, %v5493
    %v5495 = vrot.slane %v5494, 2
    %v5496 = vadd.f32 %v5494, %v5495
    %v5497 = vrot.slane %v5496, 1
    %v5498 = vadd.f32 %v5496, %v5497
    %s5499 = vtos %v5498
    %s5500 = sld [smem:[#allocation5]]
    %s5501 = smul.f32 %s5499, 0.001
    %s5502 = sadd.f32 %s55, %s5501
    %s5503 = smul.f32 %s5502, 0.125
    %s5504 = sadd.f32 %s5500, %s5503
    %s5505 = scalar_lea.smem [#allocation5], 0
    %5506 = sst [smem:[%s5505]] %s5504
    // Predicated region
    $region22: #{tpu_custom_call.1} parent=1 // pred_check
      _
    $region23: #{tpu_custom_call.1} parent=1 // pred_check_branch
      %5508 = sbr.rel (0) target = $region25
    $region24: #{tpu_custom_call.1} parent=1 // pred_region
      %s5510 = ssub.s32 16, 16
      %5511 = vsyncadd [#allocation4], %s5510
      %5514 = dma.smem_to_hbm [#allocation5], 16, %s3, [#allocation4]
    $region25: #{tpu_custom_call.1} parent=1 // pred_fallthru
      _
    // Predicated region
    $region26: #{tpu_custom_call.1} parent=1 // pred_check
      _
    $region27: #{tpu_custom_call.1} parent=1 // pred_check_branch
      %5516 = sbr.rel (0) target = $region29
    $region28: #{tpu_custom_call.1} parent=1 // pred_region
      %5517 = dma.done [#allocation4], 16
    $region29: #{tpu_custom_call.1} parent=1 // pred_fallthru
      _
    %5518 = sfence
    %5519 = vsyncpa [#allocation3], 1
    %5520 = vsyncpa [#allocation4], 1

</llo_original>
